<compile_context>
chip_gen: v5e
topology: v5e:2x2
jax: 0.10.0
libtpu: 0.0.40
codegen_flags: <defaults>
</compile_context>

<pallas_src>
import jax
import jax.numpy as jnp
from jax import lax
from jax.experimental import pallas as pl
from jax.experimental.pallas import tpu as pltpu

LANE = 128             # TPU lane width: feature dims padded to a multiple of this
TILE_E = 256           # edge rows per grid step
TILE_NB = 128          # node block width for gather/scatter selectors (stays in vregs)
TILE_NR = 256          # node rows per grid step in the node-update kernel
_VMEM_LIMIT = 48 * 1024 * 1024   # safe on v5e/v6e (128 MiB) and v7x (64 MiB physical)


def _round_up(x, m):
    return ((x + m - 1) // m) * m


def _pad2(x, rows, cols):
    return jnp.pad(x, ((0, rows - x.shape[0]), (0, cols - x.shape[1])))


# ---------------------------------------------------------------------------
# Kernel 1: msg = nh[src] * eh   (gather tiled over node blocks)
#   grid = (edge tiles [parallel], node blocks [arbitrary / reduction])
# ---------------------------------------------------------------------------
def _gather_msg_kernel(src_ref, nh_ref, eh_ref, msg_ref):
    nb = pl.program_id(1)

    @pl.when(nb == 0)
    def _init():
        msg_ref[...] = jnp.zeros_like(msg_ref)

    te = src_ref.shape[0]
    tn = nh_ref.shape[0]
    node_ids = lax.broadcasted_iota(jnp.int32, (te, tn), 1) + nb * tn
    # One-hot selector for the current node block only (in-register, bf16-exact).
    sel = (node_ids == src_ref[...]).astype(jnp.bfloat16)                # [TE, TNB]
    msg_ref[...] += jnp.dot(sel, nh_ref[...].astype(jnp.bfloat16),
                            preferred_element_type=jnp.float32)          # partial nh[src]

    @pl.when(nb == pl.num_programs(1) - 1)
    def _finalize():
        msg_ref[...] = msg_ref[...] * eh_ref[...]


def gather_msg(src_col, nh_p, eh_p):
    e_pad, d_p = eh_p.shape
    n_pad = nh_p.shape[0]
    return pl.pallas_call(
        _gather_msg_kernel,
        out_shape=jax.ShapeDtypeStruct((e_pad, d_p), jnp.float32),
        grid=(e_pad // TILE_E, n_pad // TILE_NB),
        in_specs=[
            pl.BlockSpec((TILE_E, 1), lambda eb, nb: (eb, 0)),      # src ids (column)
            pl.BlockSpec((TILE_NB, d_p), lambda eb, nb: (nb, 0)),   # nh node block
            pl.BlockSpec((TILE_E, d_p), lambda eb, nb: (eb, 0)),    # eh edge tile
        ],
        out_specs=pl.BlockSpec((TILE_E, d_p), lambda eb, nb: (eb, 0)),   # msg (accumulator)
        compiler_params=pltpu.CompilerParams(
            dimension_semantics=("parallel", "arbitrary"),
            vmem_limit_bytes=_VMEM_LIMIT),
        cost_estimate=pl.CostEstimate(
            flops=2 * e_pad * n_pad * d_p + e_pad * d_p,
            transcendentals=0,
            bytes_accessed=4 * (3 * e_pad * d_p + n_pad * d_p + e_pad)),
    )(src_col, nh_p, eh_p)


# ---------------------------------------------------------------------------
# Kernel 2: nz = scatter_add(msg, dst)   (scatter tiled over node blocks)
#   grid = (node blocks [parallel -> megacore on v7x], edge tiles [arbitrary])
#   dst selector built PRE-TRANSPOSED ([node_block, TILE_E]) from a lane-major
#   (1, TILE_E) dst block, so the contraction is a plain [TNB,TE]@[TE,D] dot.
# ---------------------------------------------------------------------------
def _scatter_nz_kernel(dst_ref, msg_ref, nz_ref):
    eb = pl.program_id(1)

    @pl.when(eb == 0)
    def _init():
        nz_ref[...] = jnp.zeros_like(nz_ref)

    tn = nz_ref.shape[0]
    te = msg_ref.shape[0]
    node_ids = lax.broadcasted_iota(jnp.int32, (tn, te), 0) + pl.program_id(0) * tn
    sel_t = (node_ids == dst_ref[...]).astype(jnp.bfloat16)              # [TNB, TE]
    nz_ref[...] += jnp.dot(sel_t, msg_ref[...].astype(jnp.bfloat16),
                           preferred_element_type=jnp.float32)


def scatter_nz(dst_row, msg_p, n_pad):
    e_pad, d_p = msg_p.shape
    return pl.pallas_call(
        _scatter_nz_kernel,
        out_shape=jax.ShapeDtypeStruct((n_pad, d_p), jnp.float32),
        grid=(n_pad // TILE_NB, e_pad // TILE_E),
        in_specs=[
            pl.BlockSpec((1, TILE_E), lambda nb, eb: (0, eb)),      # dst ids (lane-major)
            pl.BlockSpec((TILE_E, d_p), lambda nb, eb: (eb, 0)),    # msg edge tile
        ],
        out_specs=pl.BlockSpec((TILE_NB, d_p), lambda nb, eb: (nb, 0)),  # nz (accumulator)
        compiler_params=pltpu.CompilerParams(
            dimension_semantics=("parallel", "arbitrary"),
            vmem_limit_bytes=_VMEM_LIMIT),
        cost_estimate=pl.CostEstimate(
            flops=2 * e_pad * n_pad * d_p,
            transcendentals=0,
            bytes_accessed=4 * (e_pad * d_p + n_pad * d_p + e_pad)),
    )(dst_row, msg_p)


# ---------------------------------------------------------------------------
# Kernel 3: node path, fused  (1+eps)*nh + nz  ->  Linear -> ReLU -> Linear
#   (eps in SMEM; 256-row tiles; single 'parallel' grid axis)
# ---------------------------------------------------------------------------
def _node_update_kernel(eps_ref, nh_ref, nz_ref, w1_ref, b1_ref, w2_ref, b2_ref,
                        out_ref):
    scale = 1.0 + eps_ref[0]
    pre = scale * nh_ref[...] + nz_ref[...]
    h = jnp.dot(pre, w1_ref[...], preferred_element_type=jnp.float32) + b1_ref[...]
    h = jnp.maximum(h, 0.0)
    out_ref[...] = (jnp.dot(h, w2_ref[...], preferred_element_type=jnp.float32)
                    + b2_ref[...])


def node_update(eps, nh_p, nz_p, w1, b1, w2, b2):
    n_pad, d_p = nh_p.shape
    h_p = w1.shape[1]
    o_p = w2.shape[1]
    return pl.pallas_call(
        _node_update_kernel,
        out_shape=jax.ShapeDtypeStruct((n_pad, o_p), jnp.float32),
        grid=(n_pad // TILE_NR,),
        in_specs=[
            pl.BlockSpec(memory_space=pltpu.MemorySpace.SMEM),       # eps scalar
            pl.BlockSpec((TILE_NR, d_p), lambda i: (i, 0)),          # nh tile
            pl.BlockSpec((TILE_NR, d_p), lambda i: (i, 0)),          # nz tile
            pl.BlockSpec((d_p, h_p), lambda i: (0, 0)),              # W1 (resident)
            pl.BlockSpec((1, h_p), lambda i: (0, 0)),                # b1
            pl.BlockSpec((h_p, o_p), lambda i: (0, 0)),              # W2
            pl.BlockSpec((1, o_p), lambda i: (0, 0)),                # b2
        ],
        out_specs=pl.BlockSpec((TILE_NR, o_p), lambda i: (i, 0)),
        compiler_params=pltpu.CompilerParams(
            dimension_semantics=("parallel",),
            vmem_limit_bytes=_VMEM_LIMIT),
        cost_estimate=pl.CostEstimate(
            flops=2 * n_pad * (d_p * h_p + h_p * o_p),
            transcendentals=0,
            bytes_accessed=4 * (2 * n_pad * d_p + n_pad * o_p
                                + d_p * h_p + h_p * o_p)),
    )(eps, nh_p, nz_p, w1, b1, w2, b2)


# ---------------------------------------------------------------------------
# Kernel 4: edge path, fused  (1+eps)*eh + nz[src] - nz[dst]  -> MLP
#   grid = (edge tiles [parallel], node blocks [arbitrary / reduction])
#   nz[src]-nz[dst] per node block is ONE matmul against a {-1,0,+1} bf16
#   selector (built with a single int32 subtract + one cast), accumulated in a
#   VMEM scratch; eps-combine + 2-layer MLP fused at the last node block.
# ---------------------------------------------------------------------------
def _edge_update_kernel(eps_ref, src_ref, dst_ref, eh_ref, nz_ref,
                        w1_ref, b1_ref, w2_ref, b2_ref, out_ref, acc_ref):
    nb = pl.program_id(1)

    @pl.when(nb == 0)
    def _init():
        acc_ref[...] = jnp.zeros_like(acc_ref)

    te = src_ref.shape[0]
    tn = nz_ref.shape[0]
    node_ids = lax.broadcasted_iota(jnp.int32, (te, tn), 1) + nb * tn
    diff_i = ((node_ids == src_ref[...]).astype(jnp.int32)
              - (node_ids == dst_ref[...]).astype(jnp.int32))
    diff = diff_i.astype(jnp.bfloat16)                                   # single convert
    acc_ref[...] += jnp.dot(diff, nz_ref[...].astype(jnp.bfloat16),
                            preferred_element_type=jnp.float32)          # nz[src]-nz[dst]

    @pl.when(nb == pl.num_programs(1) - 1)
    def _finalize():
        scale = 1.0 + eps_ref[0]
        pre = scale * eh_ref[...] + acc_ref[...]
        h = (jnp.dot(pre, w1_ref[...], preferred_element_type=jnp.float32)
             + b1_ref[...])
        h = jnp.maximum(h, 0.0)
        out_ref[...] = (jnp.dot(h, w2_ref[...], preferred_element_type=jnp.float32)
                        + b2_ref[...])


def edge_update(eps, src_col, dst_col, eh_p, nz_p, w1, b1, w2, b2):
    e_pad, d_p = eh_p.shape
    n_pad = nz_p.shape[0]
    h_p = w1.shape[1]
    o_p = w2.shape[1]
    return pl.pallas_call(
        _edge_update_kernel,
        out_shape=jax.ShapeDtypeStruct((e_pad, o_p), jnp.float32),
        grid=(e_pad // TILE_E, n_pad // TILE_NB),
        in_specs=[
            pl.BlockSpec(memory_space=pltpu.MemorySpace.SMEM),       # eps scalar
            pl.BlockSpec((TILE_E, 1), lambda eb, nb: (eb, 0)),       # src ids
            pl.BlockSpec((TILE_E, 1), lambda eb, nb: (eb, 0)),       # dst ids
            pl.BlockSpec((TILE_E, d_p), lambda eb, nb: (eb, 0)),     # eh tile
            pl.BlockSpec((TILE_NB, d_p), lambda eb, nb: (nb, 0)),    # nz node block
            pl.BlockSpec((d_p, h_p), lambda eb, nb: (0, 0)),         # W1 (resident)
            pl.BlockSpec((1, h_p), lambda eb, nb: (0, 0)),           # b1
            pl.BlockSpec((h_p, o_p), lambda eb, nb: (0, 0)),         # W2
            pl.BlockSpec((1, o_p), lambda eb, nb: (0, 0)),           # b2
        ],
        out_specs=pl.BlockSpec((TILE_E, o_p), lambda eb, nb: (eb, 0)),
        scratch_shapes=[pltpu.VMEM((TILE_E, d_p), jnp.float32)],
        compiler_params=pltpu.CompilerParams(
            dimension_semantics=("parallel", "arbitrary"),
            vmem_limit_bytes=_VMEM_LIMIT),
        cost_estimate=pl.CostEstimate(
            flops=2 * e_pad * (n_pad * d_p + d_p * h_p + h_p * o_p),
            transcendentals=0,
            bytes_accessed=4 * (e_pad * d_p + n_pad * d_p + e_pad * o_p
                                + d_p * h_p + h_p * o_p + 2 * e_pad)),
    )(eps, src_col, dst_col, eh_p, nz_p, w1, b1, w2, b2)


# ---------------------------------------------------------------------------
# Module wrapper
# ---------------------------------------------------------------------------
def init_params(key, input_dim, hidden_dim, output_dim):
    ks = jax.random.split(key, 8)
    s1 = 1.0 / jnp.sqrt(jnp.float32(input_dim))
    s2 = 1.0 / jnp.sqrt(jnp.float32(hidden_dim))
    return {
        "nf_w1": jax.random.normal(ks[0], (input_dim, hidden_dim), jnp.float32) * s1,
        "nf_b1": jax.random.normal(ks[1], (1, hidden_dim), jnp.float32) * 0.01,
        "nf_w2": jax.random.normal(ks[2], (hidden_dim, output_dim), jnp.float32) * s2,
        "nf_b2": jax.random.normal(ks[3], (1, output_dim), jnp.float32) * 0.01,
        "ef_w1": jax.random.normal(ks[4], (input_dim, hidden_dim), jnp.float32) * s1,
        "ef_b1": jax.random.normal(ks[5], (1, hidden_dim), jnp.float32) * 0.01,
        "ef_w2": jax.random.normal(ks[6], (hidden_dim, output_dim), jnp.float32) * s2,
        "ef_b2": jax.random.normal(ks[7], (1, output_dim), jnp.float32) * 0.01,
        "nf_eps": jnp.zeros((1,), jnp.float32),   # torch init: 0.0
        "ef_eps": jnp.zeros((1,), jnp.float32),
    }


@jax.jit
def gin_layer_w_ef_update(params, nh, eh, edge_index):
    """Forward pass matching GINlayer_w_ef_update.forward."""
    n, d = nh.shape
    e = eh.shape[0]
    h = params["nf_w1"].shape[1]
    o = params["nf_w2"].shape[1]

    n_pad = _round_up(n, max(TILE_NR, TILE_NB))
    e_pad = _round_up(e, TILE_E)
    d_pad = _round_up(d, LANE)
    h_pad = _round_up(h, LANE)
    o_pad = _round_up(o, LANE)

    nh_p = _pad2(nh.astype(jnp.float32), n_pad, d_pad)
    eh_p = _pad2(eh.astype(jnp.float32), e_pad, d_pad)

    # Padded edges point at node 0 but carry all-zero edge features, so they add
    # nothing to the scatter; their MLP outputs are sliced away below.
    src = jnp.pad(edge_index[0].astype(jnp.int32), (0, e_pad - e))
    dst = jnp.pad(edge_index[1].astype(jnp.int32), (0, e_pad - e))
    src_col = src.reshape(e_pad, 1)          # sublane-major (compare vs. row ids)
    dst_col = dst.reshape(e_pad, 1)
    dst_row = dst.reshape(1, e_pad)          # lane-major (pre-transposed scatter selector)

    nf_eps = params["nf_eps"].reshape(1).astype(jnp.float32)
    ef_eps = params["ef_eps"].reshape(1).astype(jnp.float32)

    nf_w1 = _pad2(params["nf_w1"], d_pad, h_pad)
    nf_b1 = _pad2(params["nf_b1"], 1, h_pad)
    nf_w2 = _pad2(params["nf_w2"], h_pad, o_pad)
    nf_b2 = _pad2(params["nf_b2"], 1, o_pad)
    ef_w1 = _pad2(params["ef_w1"], d_pad, h_pad)
    ef_b1 = _pad2(params["ef_b1"], 1, h_pad)
    ef_w2 = _pad2(params["ef_w2"], h_pad, o_pad)
    ef_b2 = _pad2(params["ef_b2"], 1, o_pad)

    msg = gather_msg(src_col, nh_p, eh_p)                              # [e_pad, d_pad]
    nz = scatter_nz(dst_row, msg, n_pad)                               # [n_pad, d_pad]
    n_h = node_update(nf_eps, nh_p, nz, nf_w1, nf_b1, nf_w2, nf_b2)    # [n_pad, o_pad]
    e_h = edge_update(ef_eps, src_col, dst_col, eh_p, nz,
                      ef_w1, ef_b1, ef_w2, ef_b2)                      # [e_pad, o_pad]
    return n_h[:n, :o], e_h[:e, :o]


# ---------------------------------------------------------------------------
# Pure-JAX reference (for correctness check)
# ---------------------------------------------------------------------------
def _reference(params, nh, eh, edge_index):
    src, dst = edge_index[0], edge_index[1]
    msg = nh[src] * eh
    nz = jax.ops.segment_sum(msg, dst, num_segments=nh.shape[0])
    n_pre = (1.0 + params["nf_eps"][0]) * nh + nz
    e_pre = (1.0 + params["ef_eps"][0]) * eh + nz[src] - nz[dst]

    def mlp(x, w1, b1, w2, b2):
        return jnp.maximum(x @ w1 + b1, 0.0) @ w2 + b2

    return (mlp(n_pre, params["nf_w1"], params["nf_b1"],
                params["nf_w2"], params["nf_b2"]),
            mlp(e_pre, params["ef_w1"], params["ef_b1"],
                params["ef_w2"], params["ef_b2"]))


if __name__ == "__main__":
    key = jax.random.PRNGKey(0)
    k_param, k_nh, k_eh, k_src, k_dst = jax.random.split(key, 5)

    # Small shapes; exercise row padding plus multi-step node-block reductions.
    N, E = 50, 200
    INPUT_DIM, HIDDEN_DIM, OUTPUT_DIM = 8, 32, 8

    params = init_params(k_param, INPUT_DIM, HIDDEN_DIM, OUTPUT_DIM)
    nh = jax.random.normal(k_nh, (N, INPUT_DIM), jnp.float32)
    eh = jax.random.normal(k_eh, (E, INPUT_DIM), jnp.float32)
    src = jax.random.randint(k_src, (E,), 0, N, dtype=jnp.int32)
    dst = jax.random.randint(k_dst, (E,), 0, N, dtype=jnp.int32)
    edge_index = jnp.stack([src, dst], axis=0)   # [2, E]

    n_h, e_h = gin_layer_w_ef_update(params, nh, eh, edge_index)
    jax.block_until_ready((n_h, e_h))

    assert n_h.shape == (N, OUTPUT_DIM) and e_h.shape == (E, OUTPUT_DIM)
    ref_n, ref_e = _reference(params, nh, eh, edge_index)
    # Tolerance covers bf16 MXU operands in the gather/scatter selectors
    # (structural bugs would show up as O(1) errors, well above this).
    assert bool(jnp.allclose(n_h, ref_n, rtol=2e-2, atol=2e-2))
    assert bool(jnp.allclose(e_h, ref_e, rtol=2e-2, atol=2e-2))
    print("KERNEL_OK")
</pallas_src>

<mosaic_0001>
module attributes {stable_mosaic.version = 11 : i64} {
  func.func @_gather_msg_kernel(%arg0: i32, %arg1: i32, %arg2: memref<256x1xi32, #tpu.memory_space<vmem>>, %arg3: memref<128x128xf32, #tpu.memory_space<vmem>>, %arg4: memref<256x128xf32, #tpu.memory_space<vmem>>, %arg5: memref<256x128xf32, #tpu.memory_space<vmem>>) attributes {dimension_semantics = [#tpu.dimension_semantics<parallel>, #tpu.dimension_semantics<arbitrary>], iteration_bounds = array<i64: 1, 2>, scalar_prefetch = 0 : i64, scratch_operands = 0 : i64, tpu.core_type = #tpu.core_type<tc>, window_params = [{transform_indices = @transform_0, window_bounds = array<i64: 256, 1>}, {transform_indices = @transform_1, window_bounds = array<i64: 128, 128>}, {transform_indices = @transform_2, window_bounds = array<i64: 256, 128>}, {transform_indices = @transform_3, window_bounds = array<i64: 256, 128>}]} {
    %c0_i32 = arith.constant 0 : i32
    %0 = arith.cmpi eq, %arg1, %c0_i32 : i32
    %1 = arith.extui %0 : i1 to i32
    %c0_i32_0 = arith.constant 0 : i32
    %2 = arith.cmpi ne, %1, %c0_i32_0 : i32
    scf.if %2 {
      %cst_9 = arith.constant 0.000000e+00 : f32
      %22 = vector.broadcast %cst_9 : f32 to vector<256x128xf32>
      %c0_10 = arith.constant 0 : index
      %c0_11 = arith.constant 0 : index
      %23 = vector.load %arg5[%c0_10, %c0_11] : memref<256x128xf32, #tpu.memory_space<vmem>>, vector<256x128xf32>
      tpu.vector_store %arg5[%c0_10, %c0_11], %22 {strides = array<i32>} : memref<256x128xf32, #tpu.memory_space<vmem>>, vector<256x128xf32>,
    } else {
    }
    %3 = tpu.iota {dimensions = array<i32: 1>} : vector<256x128xi32>
    %c128_i32 = arith.constant 128 : i32
    %4 = arith.muli %arg1, %c128_i32 : i32
    %5 = vector.broadcast %4 : i32 to vector<256x128xi32>
    %6 = arith.addi %3, %5 : vector<256x128xi32>
    %c0 = arith.constant 0 : index
    %c0_1 = arith.constant 0 : index
    %7 = vector.load %arg2[%c0, %c0_1] : memref<256x1xi32, #tpu.memory_space<vmem>>, vector<256x1xi32>
    %8 = vector.broadcast %7 : vector<256x1xi32> to vector<256x128xi32>
    %9 = arith.cmpi eq, %6, %8 : vector<256x128xi32>
    %10 = arith.extui %9 : vector<256x128xi1> to vector<256x128xi32>
    %11 = arith.sitofp %10 : vector<256x128xi32> to vector<256x128xf32>
    %12 = arith.truncf %11 : vector<256x128xf32> to vector<256x128xbf16>
    %c0_2 = arith.constant 0 : index
    %c0_3 = arith.constant 0 : index
    %13 = vector.load %arg5[%c0_2, %c0_3] : memref<256x128xf32, #tpu.memory_space<vmem>>, vector<256x128xf32>
    %c0_4 = arith.constant 0 : index
    %c0_5 = arith.constant 0 : index
    %14 = vector.load %arg3[%c0_4, %c0_5] : memref<128x128xf32, #tpu.memory_space<vmem>>, vector<128x128xf32>
    %15 = arith.truncf %14 : vector<128x128xf32> to vector<128x128xbf16>
    %cst = arith.constant dense<0.000000e+00> : vector<256x128xf32>
    %16 = tpu.matmul %12, %15, %cst {dimension_numbers = #tpu.dot_dimension_numbers<[1], [0], [0], [1], [0, 0, 1, 1], [], []>} : vector<256x128xbf16>, vector<128x128xbf16>, vector<256x128xf32> -> vector<256x128xf32>
    %17 = arith.addf %13, %16 : vector<256x128xf32>
    %c0_6 = arith.constant 0 : index
    %c0_7 = arith.constant 0 : index
    %18 = vector.load %arg5[%c0_6, %c0_7] : memref<256x128xf32, #tpu.memory_space<vmem>>, vector<256x128xf32>
    tpu.vector_store %arg5[%c0_6, %c0_7], %17 {strides = array<i32>} : memref<256x128xf32, #tpu.memory_space<vmem>>, vector<256x128xf32>,
    %c1_i32 = arith.constant 1 : i32
    %19 = arith.cmpi eq, %arg1, %c1_i32 : i32
    %20 = arith.extui %19 : i1 to i32
    %c0_i32_8 = arith.constant 0 : i32
    %21 = arith.cmpi ne, %20, %c0_i32_8 : i32
    scf.if %21 {
      %c0_9 = arith.constant 0 : index
      %c0_10 = arith.constant 0 : index
      %22 = vector.load %arg5[%c0_9, %c0_10] : memref<256x128xf32, #tpu.memory_space<vmem>>, vector<256x128xf32>
      %c0_11 = arith.constant 0 : index
      %c0_12 = arith.constant 0 : index
      %23 = vector.load %arg4[%c0_11, %c0_12] : memref<256x128xf32, #tpu.memory_space<vmem>>, vector<256x128xf32>
      %24 = arith.mulf %22, %23 : vector<256x128xf32>
      %c0_13 = arith.constant 0 : index
      %c0_14 = arith.constant 0 : index
      %25 = vector.load %arg5[%c0_13, %c0_14] : memref<256x128xf32, #tpu.memory_space<vmem>>, vector<256x128xf32>
      tpu.vector_store %arg5[%c0_13, %c0_14], %24 {strides = array<i32>} : memref<256x128xf32, #tpu.memory_space<vmem>>, vector<256x128xf32>,
    } else {
    }
    return
  }
  func.func @transform_0(%arg0: i32, %arg1: i32) -> (i32, i32) {
    %c0_i32 = arith.constant 0 : i32
    %c0_i32_0 = arith.constant 0 : i32
    return %arg0, %c0_i32 : i32, i32
  }
  func.func @transform_1(%arg0: i32, %arg1: i32) -> (i32, i32) {
    %c0_i32 = arith.constant 0 : i32
    %c0_i32_0 = arith.constant 0 : i32
    return %arg1, %c0_i32 : i32, i32
  }
  func.func @transform_2(%arg0: i32, %arg1: i32) -> (i32, i32) {
    %c0_i32 = arith.constant 0 : i32
    %c0_i32_0 = arith.constant 0 : i32
    return %arg0, %c0_i32 : i32, i32
  }
  func.func @transform_3(%arg0: i32, %arg1: i32) -> (i32, i32) {
    %c0_i32 = arith.constant 0 : i32
    %c0_i32_0 = arith.constant 0 : i32
    return %arg0, %c0_i32 : i32, i32
  }
}

module attributes {stable_mosaic.version = 11 : i64} {
  func.func @_scatter_nz_kernel(%arg0: i32, %arg1: i32, %arg2: memref<1x256xi32, #tpu.memory_space<vmem>>, %arg3: memref<256x128xf32, #tpu.memory_space<vmem>>, %arg4: memref<128x128xf32, #tpu.memory_space<vmem>>) attributes {dimension_semantics = [#tpu.dimension_semantics<parallel>, #tpu.dimension_semantics<arbitrary>], iteration_bounds = array<i64: 2, 1>, scalar_prefetch = 0 : i64, scratch_operands = 0 : i64, tpu.core_type = #tpu.core_type<tc>, window_params = [{transform_indices = @transform_0, window_bounds = array<i64: 1, 256>}, {transform_indices = @transform_1, window_bounds = array<i64: 256, 128>}, {transform_indices = @transform_2, window_bounds = array<i64: 128, 128>}]} {
    %c0_i32 = arith.constant 0 : i32
    %0 = arith.cmpi eq, %arg1, %c0_i32 : i32
    %1 = arith.extui %0 : i1 to i32
    %c0_i32_0 = arith.constant 0 : i32
    %2 = arith.cmpi ne, %1, %c0_i32_0 : i32
    scf.if %2 {
      %cst_8 = arith.constant 0.000000e+00 : f32
      %19 = vector.broadcast %cst_8 : f32 to vector<128x128xf32>
      %c0_9 = arith.constant 0 : index
      %c0_10 = arith.constant 0 : index
      %20 = vector.load %arg4[%c0_9, %c0_10] : memref<128x128xf32, #tpu.memory_space<vmem>>, vector<128x128xf32>
      tpu.vector_store %arg4[%c0_9, %c0_10], %19 {strides = array<i32>} : memref<128x128xf32, #tpu.memory_space<vmem>>, vector<128x128xf32>,
    } else {
    }
    %3 = tpu.iota {dimensions = array<i32: 0>} : vector<128x256xi32>
    %c128_i32 = arith.constant 128 : i32
    %4 = arith.muli %arg0, %c128_i32 : i32
    %5 = vector.broadcast %4 : i32 to vector<128x256xi32>
    %6 = arith.addi %3, %5 : vector<128x256xi32>
    %c0 = arith.constant 0 : index
    %c0_1 = arith.constant 0 : index
    %7 = vector.load %arg2[%c0, %c0_1] : memref<1x256xi32, #tpu.memory_space<vmem>>, vector<1x256xi32>
    %8 = vector.broadcast %7 : vector<1x256xi32> to vector<128x256xi32>
    %9 = arith.cmpi eq, %6, %8 : vector<128x256xi32>
    %10 = arith.extui %9 : vector<128x256xi1> to vector<128x256xi32>
    %11 = arith.sitofp %10 : vector<128x256xi32> to vector<128x256xf32>
    %12 = arith.truncf %11 : vector<128x256xf32> to vector<128x256xbf16>
    %c0_2 = arith.constant 0 : index
    %c0_3 = arith.constant 0 : index
    %13 = vector.load %arg4[%c0_2, %c0_3] : memref<128x128xf32, #tpu.memory_space<vmem>>, vector<128x128xf32>
    %c0_4 = arith.constant 0 : index
    %c0_5 = arith.constant 0 : index
    %14 = vector.load %arg3[%c0_4, %c0_5] : memref<256x128xf32, #tpu.memory_space<vmem>>, vector<256x128xf32>
    %15 = arith.truncf %14 : vector<256x128xf32> to vector<256x128xbf16>
    %cst = arith.constant dense<0.000000e+00> : vector<128x128xf32>
    %16 = tpu.matmul %12, %15, %cst {dimension_numbers = #tpu.dot_dimension_numbers<[1], [0], [0], [1], [0, 0, 1, 1], [], []>} : vector<128x256xbf16>, vector<256x128xbf16>, vector<128x128xf32> -> vector<128x128xf32>
    %17 = arith.addf %13, %16 : vector<128x128xf32>
    %c0_6 = arith.constant 0 : index
    %c0_7 = arith.constant 0 : index
    %18 = vector.load %arg4[%c0_6, %c0_7] : memref<128x128xf32, #tpu.memory_space<vmem>>, vector<128x128xf32>
    tpu.vector_store %arg4[%c0_6, %c0_7], %17 {strides = array<i32>} : memref<128x128xf32, #tpu.memory_space<vmem>>, vector<128x128xf32>,
    return
  }
  func.func @transform_0(%arg0: i32, %arg1: i32) -> (i32, i32) {
    %c0_i32 = arith.constant 0 : i32
    %c0_i32_0 = arith.constant 0 : i32
    return %c0_i32, %arg1 : i32, i32
  }
  func.func @transform_1(%arg0: i32, %arg1: i32) -> (i32, i32) {
    %c0_i32 = arith.constant 0 : i32
    %c0_i32_0 = arith.constant 0 : i32
    return %arg1, %c0_i32 : i32, i32
  }
  func.func @transform_2(%arg0: i32, %arg1: i32) -> (i32, i32) {
    %c0_i32 = arith.constant 0 : i32
    %c0_i32_0 = arith.constant 0 : i32
    return %arg0, %c0_i32 : i32, i32
  }
}

module attributes {stable_mosaic.version = 11 : i64} {
  func.func @_node_update_kernel(%arg0: i32, %arg1: memref<1xf32, #tpu.memory_space<smem>>, %arg2: memref<256x128xf32, #tpu.memory_space<vmem>>, %arg3: memref<256x128xf32, #tpu.memory_space<vmem>>, %arg4: memref<128x128xf32, #tpu.memory_space<vmem>>, %arg5: memref<1x128xf32, #tpu.memory_space<vmem>>, %arg6: memref<128x128xf32, #tpu.memory_space<vmem>>, %arg7: memref<1x128xf32, #tpu.memory_space<vmem>>, %arg8: memref<256x128xf32, #tpu.memory_space<vmem>>) attributes {dimension_semantics = [#tpu.dimension_semantics<parallel>], iteration_bounds = array<i64: 1>, scalar_prefetch = 0 : i64, scratch_operands = 0 : i64, tpu.core_type = #tpu.core_type<tc>, window_params = [{transform_indices = @transform_0, window_bounds = array<i64: 1>}, {transform_indices = @transform_1, window_bounds = array<i64: 256, 128>}, {transform_indices = @transform_2, window_bounds = array<i64: 256, 128>}, {pipeline_mode = #tpu.pipeline_mode<synchronous>, transform_indices = @transform_3, window_bounds = array<i64: 128, 128>}, {pipeline_mode = #tpu.pipeline_mode<synchronous>, transform_indices = @transform_4, window_bounds = array<i64: 1, 128>}, {pipeline_mode = #tpu.pipeline_mode<synchronous>, transform_indices = @transform_5, window_bounds = array<i64: 128, 128>}, {pipeline_mode = #tpu.pipeline_mode<synchronous>, transform_indices = @transform_6, window_bounds = array<i64: 1, 128>}, {transform_indices = @transform_7, window_bounds = array<i64: 256, 128>}]} {
    %c0 = arith.constant 0 : index
    %0 = memref.load %arg1[%c0] : memref<1xf32, #tpu.memory_space<smem>>
    %cst = arith.constant 1.000000e+00 : f32
    %1 = arith.addf %cst, %0 : f32
    %c0_0 = arith.constant 0 : index
    %c0_1 = arith.constant 0 : index
    %2 = vector.load %arg2[%c0_0, %c0_1] : memref<256x128xf32, #tpu.memory_space<vmem>>, vector<256x128xf32>
    %3 = vector.broadcast %1 : f32 to vector<256x128xf32>
    %4 = arith.mulf %3, %2 : vector<256x128xf32>
    %c0_2 = arith.constant 0 : index
    %c0_3 = arith.constant 0 : index
    %5 = vector.load %arg3[%c0_2, %c0_3] : memref<256x128xf32, #tpu.memory_space<vmem>>, vector<256x128xf32>
    %6 = arith.addf %4, %5 : vector<256x128xf32>
    %c0_4 = arith.constant 0 : index
    %c0_5 = arith.constant 0 : index
    %7 = vector.load %arg4[%c0_4, %c0_5] : memref<128x128xf32, #tpu.memory_space<vmem>>, vector<128x128xf32>
    %cst_6 = arith.constant dense<0.000000e+00> : vector<256x128xf32>
    %8 = tpu.matmul %6, %7, %cst_6 {dimension_numbers = #tpu.dot_dimension_numbers<[1], [0], [0], [1], [0, 0, 1, 1], [], []>} : vector<256x128xf32>, vector<128x128xf32>, vector<256x128xf32> -> vector<256x128xf32>
    %c0_7 = arith.constant 0 : index
    %c0_8 = arith.constant 0 : index
    %9 = vector.load %arg5[%c0_7, %c0_8] : memref<1x128xf32, #tpu.memory_space<vmem>>, vector<1x128xf32>
    %10 = vector.broadcast %9 : vector<1x128xf32> to vector<256x128xf32>
    %11 = arith.addf %8, %10 : vector<256x128xf32>
    %cst_9 = arith.constant 0.000000e+00 : f32
    %12 = vector.broadcast %cst_9 : f32 to vector<256x128xf32>
    %13 = arith.maximumf %11, %12 : vector<256x128xf32>
    %c0_10 = arith.constant 0 : index
    %c0_11 = arith.constant 0 : index
    %14 = vector.load %arg6[%c0_10, %c0_11] : memref<128x128xf32, #tpu.memory_space<vmem>>, vector<128x128xf32>
    %cst_12 = arith.constant dense<0.000000e+00> : vector<256x128xf32>
    %15 = tpu.matmul %13, %14, %cst_12 {dimension_numbers = #tpu.dot_dimension_numbers<[1], [0], [0], [1], [0, 0, 1, 1], [], []>} : vector<256x128xf32>, vector<128x128xf32>, vector<256x128xf32> -> vector<256x128xf32>
    %c0_13 = arith.constant 0 : index
    %c0_14 = arith.constant 0 : index
    %16 = vector.load %arg7[%c0_13, %c0_14] : memref<1x128xf32, #tpu.memory_space<vmem>>, vector<1x128xf32>
    %17 = vector.broadcast %16 : vector<1x128xf32> to vector<256x128xf32>
    %18 = arith.addf %15, %17 : vector<256x128xf32>
    %c0_15 = arith.constant 0 : index
    %c0_16 = arith.constant 0 : index
    %19 = vector.load %arg8[%c0_15, %c0_16] : memref<256x128xf32, #tpu.memory_space<vmem>>, vector<256x128xf32>
    tpu.vector_store %arg8[%c0_15, %c0_16], %18 {strides = array<i32>} : memref<256x128xf32, #tpu.memory_space<vmem>>, vector<256x128xf32>,
    return
  }
  func.func @transform_0(%arg0: i32) -> i32 {
    %c0_i32 = arith.constant 0 : i32
    %c0_i32_0 = arith.constant 0 : i32
    return %c0_i32 : i32
  }
  func.func @transform_1(%arg0: i32) -> (i32, i32) {
    %c0_i32 = arith.constant 0 : i32
    %c0_i32_0 = arith.constant 0 : i32
    return %arg0, %c0_i32 : i32, i32
  }
  func.func @transform_2(%arg0: i32) -> (i32, i32) {
    %c0_i32 = arith.constant 0 : i32
    %c0_i32_0 = arith.constant 0 : i32
    return %arg0, %c0_i32 : i32, i32
  }
  func.func @transform_3(%arg0: i32) -> (i32, i32) {
    %c0_i32 = arith.constant 0 : i32
    %c0_i32_0 = arith.constant 0 : i32
    %c0_i32_1 = arith.constant 0 : i32
    return %c0_i32, %c0_i32_0 : i32, i32
  }
  func.func @transform_4(%arg0: i32) -> (i32, i32) {
    %c0_i32 = arith.constant 0 : i32
    %c0_i32_0 = arith.constant 0 : i32
    %c0_i32_1 = arith.constant 0 : i32
    return %c0_i32, %c0_i32_0 : i32, i32
  }
  func.func @transform_5(%arg0: i32) -> (i32, i32) {
    %c0_i32 = arith.constant 0 : i32
    %c0_i32_0 = arith.constant 0 : i32
    %c0_i32_1 = arith.constant 0 : i32
    return %c0_i32, %c0_i32_0 : i32, i32
  }
  func.func @transform_6(%arg0: i32) -> (i32, i32) {
    %c0_i32 = arith.constant 0 : i32
    %c0_i32_0 = arith.constant 0 : i32
    %c0_i32_1 = arith.constant 0 : i32
    return %c0_i32, %c0_i32_0 : i32, i32
  }
  func.func @transform_7(%arg0: i32) -> (i32, i32) {
    %c0_i32 = arith.constant 0 : i32
    %c0_i32_0 = arith.constant 0 : i32
    return %arg0, %c0_i32 : i32, i32
  }
}

module attributes {stable_mosaic.version = 11 : i64} {
  func.func @_edge_update_kernel(%arg0: i32, %arg1: i32, %arg2: memref<1xf32, #tpu.memory_space<smem>>, %arg3: memref<256x1xi32, #tpu.memory_space<vmem>>, %arg4: memref<256x1xi32, #tpu.memory_space<vmem>>, %arg5: memref<256x128xf32, #tpu.memory_space<vmem>>, %arg6: memref<128x128xf32, #tpu.memory_space<vmem>>, %arg7: memref<128x128xf32, #tpu.memory_space<vmem>>, %arg8: memref<1x128xf32, #tpu.memory_space<vmem>>, %arg9: memref<128x128xf32, #tpu.memory_space<vmem>>, %arg10: memref<1x128xf32, #tpu.memory_space<vmem>>, %arg11: memref<256x128xf32, #tpu.memory_space<vmem>>, %arg12: memref<256x128xf32, #tpu.memory_space<vmem>>) attributes {dimension_semantics = [#tpu.dimension_semantics<parallel>, #tpu.dimension_semantics<arbitrary>], iteration_bounds = array<i64: 1, 2>, scalar_prefetch = 0 : i64, scratch_operands = 1 : i64, tpu.core_type = #tpu.core_type<tc>, window_params = [{transform_indices = @transform_0, window_bounds = array<i64: 1>}, {transform_indices = @transform_1, window_bounds = array<i64: 256, 1>}, {transform_indices = @transform_2, window_bounds = array<i64: 256, 1>}, {transform_indices = @transform_3, window_bounds = array<i64: 256, 128>}, {transform_indices = @transform_4, window_bounds = array<i64: 128, 128>}, {pipeline_mode = #tpu.pipeline_mode<synchronous>, transform_indices = @transform_5, window_bounds = array<i64: 128, 128>}, {pipeline_mode = #tpu.pipeline_mode<synchronous>, transform_indices = @transform_6, window_bounds = array<i64: 1, 128>}, {pipeline_mode = #tpu.pipeline_mode<synchronous>, transform_indices = @transform_7, window_bounds = array<i64: 128, 128>}, {pipeline_mode = #tpu.pipeline_mode<synchronous>, transform_indices = @transform_8, window_bounds = array<i64: 1, 128>}, {transform_indices = @transform_9, window_bounds = array<i64: 256, 128>}]} {
    %c0_i32 = arith.constant 0 : i32
    %0 = arith.cmpi eq, %arg1, %c0_i32 : i32
    %1 = arith.extui %0 : i1 to i32
    %c0_i32_0 = arith.constant 0 : i32
    %2 = arith.cmpi ne, %1, %c0_i32_0 : i32
    scf.if %2 {
      %cst_11 = arith.constant 0.000000e+00 : f32
      %26 = vector.broadcast %cst_11 : f32 to vector<256x128xf32>
      %c0_12 = arith.constant 0 : index
      %c0_13 = arith.constant 0 : index
      %27 = vector.load %arg12[%c0_12, %c0_13] : memref<256x128xf32, #tpu.memory_space<vmem>>, vector<256x128xf32>
      tpu.vector_store %arg12[%c0_12, %c0_13], %26 {strides = array<i32>} : memref<256x128xf32, #tpu.memory_space<vmem>>, vector<256x128xf32>,
    } else {
    }
    %3 = tpu.iota {dimensions = array<i32: 1>} : vector<256x128xi32>
    %c128_i32 = arith.constant 128 : i32
    %4 = arith.muli %arg1, %c128_i32 : i32
    %5 = vector.broadcast %4 : i32 to vector<256x128xi32>
    %6 = arith.addi %3, %5 : vector<256x128xi32>
    %c0 = arith.constant 0 : index
    %c0_1 = arith.constant 0 : index
    %7 = vector.load %arg3[%c0, %c0_1] : memref<256x1xi32, #tpu.memory_space<vmem>>, vector<256x1xi32>
    %8 = vector.broadcast %7 : vector<256x1xi32> to vector<256x128xi32>
    %9 = arith.cmpi eq, %6, %8 : vector<256x128xi32>
    %10 = arith.extui %9 : vector<256x128xi1> to vector<256x128xi32>
    %c0_2 = arith.constant 0 : index
    %c0_3 = arith.constant 0 : index
    %11 = vector.load %arg4[%c0_2, %c0_3] : memref<256x1xi32, #tpu.memory_space<vmem>>, vector<256x1xi32>
    %12 = vector.broadcast %11 : vector<256x1xi32> to vector<256x128xi32>
    %13 = arith.cmpi eq, %6, %12 : vector<256x128xi32>
    %14 = arith.extui %13 : vector<256x128xi1> to vector<256x128xi32>
    %15 = arith.subi %10, %14 : vector<256x128xi32>
    %16 = arith.sitofp %15 : vector<256x128xi32> to vector<256x128xbf16>
    %c0_4 = arith.constant 0 : index
    %c0_5 = arith.constant 0 : index
    %17 = vector.load %arg12[%c0_4, %c0_5] : memref<256x128xf32, #tpu.memory_space<vmem>>, vector<256x128xf32>
    %c0_6 = arith.constant 0 : index
    %c0_7 = arith.constant 0 : index
    %18 = vector.load %arg6[%c0_6, %c0_7] : memref<128x128xf32, #tpu.memory_space<vmem>>, vector<128x128xf32>
    %19 = arith.truncf %18 : vector<128x128xf32> to vector<128x128xbf16>
    %cst = arith.constant dense<0.000000e+00> : vector<256x128xf32>
    %20 = tpu.matmul %16, %19, %cst {dimension_numbers = #tpu.dot_dimension_numbers<[1], [0], [0], [1], [0, 0, 1, 1], [], []>} : vector<256x128xbf16>, vector<128x128xbf16>, vector<256x128xf32> -> vector<256x128xf32>
    %21 = arith.addf %17, %20 : vector<256x128xf32>
    %c0_8 = arith.constant 0 : index
    %c0_9 = arith.constant 0 : index
    %22 = vector.load %arg12[%c0_8, %c0_9] : memref<256x128xf32, #tpu.memory_space<vmem>>, vector<256x128xf32>
    tpu.vector_store %arg12[%c0_8, %c0_9], %21 {strides = array<i32>} : memref<256x128xf32, #tpu.memory_space<vmem>>, vector<256x128xf32>,
    %c1_i32 = arith.constant 1 : i32
    %23 = arith.cmpi eq, %arg1, %c1_i32 : i32
    %24 = arith.extui %23 : i1 to i32
    %c0_i32_10 = arith.constant 0 : i32
    %25 = arith.cmpi ne, %24, %c0_i32_10 : i32
    scf.if %25 {
      %c0_11 = arith.constant 0 : index
      %26 = memref.load %arg2[%c0_11] : memref<1xf32, #tpu.memory_space<smem>>
      %cst_12 = arith.constant 1.000000e+00 : f32
      %27 = arith.addf %cst_12, %26 : f32
      %c0_13 = arith.constant 0 : index
      %c0_14 = arith.constant 0 : index
      %28 = vector.load %arg5[%c0_13, %c0_14] : memref<256x128xf32, #tpu.memory_space<vmem>>, vector<256x128xf32>
      %29 = vector.broadcast %27 : f32 to vector<256x128xf32>
      %30 = arith.mulf %29, %28 : vector<256x128xf32>
      %c0_15 = arith.constant 0 : index
      %c0_16 = arith.constant 0 : index
      %31 = vector.load %arg12[%c0_15, %c0_16] : memref<256x128xf32, #tpu.memory_space<vmem>>, vector<256x128xf32>
      %32 = arith.addf %30, %31 : vector<256x128xf32>
      %c0_17 = arith.constant 0 : index
      %c0_18 = arith.constant 0 : index
      %33 = vector.load %arg7[%c0_17, %c0_18] : memref<128x128xf32, #tpu.memory_space<vmem>>, vector<128x128xf32>
      %cst_19 = arith.constant dense<0.000000e+00> : vector<256x128xf32>
      %34 = tpu.matmul %32, %33, %cst_19 {dimension_numbers = #tpu.dot_dimension_numbers<[1], [0], [0], [1], [0, 0, 1, 1], [], []>} : vector<256x128xf32>, vector<128x128xf32>, vector<256x128xf32> -> vector<256x128xf32>
      %c0_20 = arith.constant 0 : index
      %c0_21 = arith.constant 0 : index
      %35 = vector.load %arg8[%c0_20, %c0_21] : memref<1x128xf32, #tpu.memory_space<vmem>>, vector<1x128xf32>
      %36 = vector.broadcast %35 : vector<1x128xf32> to vector<256x128xf32>
      %37 = arith.addf %34, %36 : vector<256x128xf32>
      %cst_22 = arith.constant 0.000000e+00 : f32
      %38 = vector.broadcast %cst_22 : f32 to vector<256x128xf32>
      %39 = arith.maximumf %37, %38 : vector<256x128xf32>
      %c0_23 = arith.constant 0 : index
      %c0_24 = arith.constant 0 : index
      %40 = vector.load %arg9[%c0_23, %c0_24] : memref<128x128xf32, #tpu.memory_space<vmem>>, vector<128x128xf32>
      %cst_25 = arith.constant dense<0.000000e+00> : vector<256x128xf32>
      %41 = tpu.matmul %39, %40, %cst_25 {dimension_numbers = #tpu.dot_dimension_numbers<[1], [0], [0], [1], [0, 0, 1, 1], [], []>} : vector<256x128xf32>, vector<128x128xf32>, vector<256x128xf32> -> vector<256x128xf32>
      %c0_26 = arith.constant 0 : index
      %c0_27 = arith.constant 0 : index
      %42 = vector.load %arg10[%c0_26, %c0_27] : memref<1x128xf32, #tpu.memory_space<vmem>>, vector<1x128xf32>
      %43 = vector.broadcast %42 : vector<1x128xf32> to vector<256x128xf32>
      %44 = arith.addf %41, %43 : vector<256x128xf32>
      %c0_28 = arith.constant 0 : index
      %c0_29 = arith.constant 0 : index
      %45 = vector.load %arg11[%c0_28, %c0_29] : memref<256x128xf32, #tpu.memory_space<vmem>>, vector<256x128xf32>
      tpu.vector_store %arg11[%c0_28, %c0_29], %44 {strides = array<i32>} : memref<256x128xf32, #tpu.memory_space<vmem>>, vector<256x128xf32>,
    } else {
    }
    return
  }
  func.func @transform_0(%arg0: i32, %arg1: i32) -> i32 {
    %c0_i32 = arith.constant 0 : i32
    %c0_i32_0 = arith.constant 0 : i32
    return %c0_i32 : i32
  }
  func.func @transform_1(%arg0: i32, %arg1: i32) -> (i32, i32) {
    %c0_i32 = arith.constant 0 : i32
    %c0_i32_0 = arith.constant 0 : i32
    return %arg0, %c0_i32 : i32, i32
  }
  func.func @transform_2(%arg0: i32, %arg1: i32) -> (i32, i32) {
    %c0_i32 = arith.constant 0 : i32
    %c0_i32_0 = arith.constant 0 : i32
    return %arg0, %c0_i32 : i32, i32
  }
  func.func @transform_3(%arg0: i32, %arg1: i32) -> (i32, i32) {
    %c0_i32 = arith.constant 0 : i32
    %c0_i32_0 = arith.constant 0 : i32
    return %arg0, %c0_i32 : i32, i32
  }
  func.func @transform_4(%arg0: i32, %arg1: i32) -> (i32, i32) {
    %c0_i32 = arith.constant 0 : i32
    %c0_i32_0 = arith.constant 0 : i32
    return %arg1, %c0_i32 : i32, i32
  }
  func.func @transform_5(%arg0: i32, %arg1: i32) -> (i32, i32) {
    %c0_i32 = arith.constant 0 : i32
    %c0_i32_0 = arith.constant 0 : i32
    %c0_i32_1 = arith.constant 0 : i32
    return %c0_i32, %c0_i32_0 : i32, i32
  }
  func.func @transform_6(%arg0: i32, %arg1: i32) -> (i32, i32) {
    %c0_i32 = arith.constant 0 : i32
    %c0_i32_0 = arith.constant 0 : i32
    %c0_i32_1 = arith.constant 0 : i32
    return %c0_i32, %c0_i32_0 : i32, i32
  }
  func.func @transform_7(%arg0: i32, %arg1: i32) -> (i32, i32) {
    %c0_i32 = arith.constant 0 : i32
    %c0_i32_0 = arith.constant 0 : i32
    %c0_i32_1 = arith.constant 0 : i32
    return %c0_i32, %c0_i32_0 : i32, i32
  }
  func.func @transform_8(%arg0: i32, %arg1: i32) -> (i32, i32) {
    %c0_i32 = arith.constant 0 : i32
    %c0_i32_0 = arith.constant 0 : i32
    %c0_i32_1 = arith.constant 0 : i32
    return %c0_i32, %c0_i32_0 : i32, i32
  }
  func.func @transform_9(%arg0: i32, %arg1: i32) -> (i32, i32) {
    %c0_i32 = arith.constant 0 : i32
    %c0_i32_0 = arith.constant 0 : i32
    return %arg0, %c0_i32 : i32, i32
  }
}

</mosaic_0001>

<llo_original>
// kernel: gin_layer_w_ef_update.5
$region0: #{gin_layer_w_ef_update.5}
  #allocation0 [shape = 'u32[]', space=smem, size = 0x4, offset = 0x4, fixed_abs, tag = 'smem constant byte address 0x4 - core index']
  #allocation1 [shape = 'u32[72,128]{1,0:T(1,128)}', space=vmem, size = 0x9000, scoped, tag = 'internal scratch']
  %s0 = inlined_call_operand.vmem [shape: s32[1,256], index: 0, kind: input, shape index: {}]
  %s1 = inlined_call_operand.vmem [shape: f32[256,128], index: 1, kind: input, shape index: {}]
  %s2 = inlined_call_operand.vmem [shape: f32[256,128], index: 2, kind: output, shape index: {}]
  %s3 = sld [smem:[#allocation0]]
  $region45: #{gin_layer_w_ef_update.5} parent=0
    _
  %s5 = ssub.s32 1, %s3
  %s6 = scalar_select 0, %s5, %s3
  loop: start=0, step=1, limit=4
  $region2: #{gin_layer_w_ef_update.5} parent=0 // loop_pre_header
    _
  $region3: #{gin_layer_w_ef_update.5} parent=0 // loop_header
    %s8 = sphi 0, %s12
    %p9 = scmp.ge.s32.totalorder %s8, 4
    %s15 = sphi 0, %s27
    %s16 = sphi 0, %s23
    %s17 = sphi 0, %s15
    %s18 = sphi 0, %s16
    %s19 = sphi 0, %s17
    %s20 = sphi 0, %s18
    %s30 = sphi 0, %s32
    %s33 = sphi 0, %s30
    %s34 = sphi 0, %s33
    %s50 = sphi 0, %s34
    %s56 = sphi 0, %s58
    %s59 = sphi 0, %s56
    %s60 = sphi 0, %s59
    %s76 = sphi 0, %s60
    %s82 = sphi 0, %s84
    %s85 = sphi 0, %s82
    %s86 = sphi 0, %s85
    %s102 = sphi 0, %s86
  $region4: #{gin_layer_w_ef_update.5} parent=0 // loop_header_branch
    %11 = sbr.rel (%p9) target = $region8
  $region5: #{gin_layer_w_ef_update.5} parent=0 // loop_body
    %s13 = ssub.s32 %s8, 1
    %s14 = ssub.s32 %s8, 2
    %s21 = sadd.s32 1, %s16
    %p22 = scmp.ge.s32.totalorder %s21, 1
    %s23 = scalar_select %p22, 0, %s21
    %s24 = sadd.s32 1, %s15
    %s25 = scalar_select %p22, %s24, %s15
    %p26 = scmp.ge.s32.totalorder %s25, 2
    %s27 = scalar_select %p26, 0, %s25
    %s28 = ssub.s32 %s16, %s23
    %p29 = scmp.eq.s32.totalorder %s28, 0
    %s31 = sadd.s32 %s30, 1
    %s32 = scalar_select %p29, %s30, %s31
    %p35 = pneg %p29
    %p36 = scmp.eq.s32.totalorder %s8, 1
    %p37 = por %p35, %p36
    %p38 = scmp.ne.s32.totalorder %s30, %s33
    %p39 = scmp.eq.s32.totalorder %s8, 0
    %p40 = por %p38, %p39
    %p41 = scmp.ne.s32.totalorder %s30, %s33
    %p42 = scmp.eq.s32.totalorder %s13, 1
    %p43 = por %p41, %p42
    %p44 = scmp.ne.s32.totalorder %s33, %s34
    %p45 = scmp.eq.s32.totalorder %s13, 0
    %p46 = por %p44, %p45
    %p47 = scmp.ne.s32.totalorder %s33, %s34
    %p48 = scmp.eq.s32.totalorder %s14, 1
    %p49 = por %p47, %p48
    %p51 = scmp.ne.s32.totalorder %s34, %s50
    %p52 = scmp.eq.s32.totalorder %s14, 0
    %p53 = por %p51, %p52
    %s54 = ssub.s32 %s16, %s23
    %p55 = scmp.eq.s32.totalorder %s54, 0
    %s57 = sadd.s32 %s56, 1
    %s58 = scalar_select %p55, %s56, %s57
    %p61 = pneg %p55
    %p62 = scmp.eq.s32.totalorder %s8, 1
    %p63 = por %p61, %p62
    %p64 = scmp.ne.s32.totalorder %s56, %s59
    %p65 = scmp.eq.s32.totalorder %s8, 0
    %p66 = por %p64, %p65
    %p67 = scmp.ne.s32.totalorder %s56, %s59
    %p68 = scmp.eq.s32.totalorder %s13, 1
    %p69 = por %p67, %p68
    %p70 = scmp.ne.s32.totalorder %s59, %s60
    %p71 = scmp.eq.s32.totalorder %s13, 0
    %p72 = por %p70, %p71
    %p73 = scmp.ne.s32.totalorder %s59, %s60
    %p74 = scmp.eq.s32.totalorder %s14, 1
    %p75 = por %p73, %p74
    %p77 = scmp.ne.s32.totalorder %s60, %s76
    %p78 = scmp.eq.s32.totalorder %s14, 0
    %p79 = por %p77, %p78
    %s80 = ssub.s32 %s15, %s27
    %p81 = scmp.eq.s32.totalorder %s80, 0
    %s83 = sadd.s32 %s82, 1
    %s84 = scalar_select %p81, %s82, %s83
    %p87 = pneg %p81
    %p88 = scmp.eq.s32.totalorder %s8, 1
    %p89 = por %p87, %p88
    %p90 = scmp.ne.s32.totalorder %s82, %s85
    %p91 = scmp.eq.s32.totalorder %s8, 0
    %p92 = por %p90, %p91
    %p93 = scmp.ne.s32.totalorder %s82, %s85
    %p94 = scmp.eq.s32.totalorder %s13, 1
    %p95 = por %p93, %p94
    %p96 = scmp.ne.s32.totalorder %s85, %s86
    %p97 = scmp.eq.s32.totalorder %s13, 0
    %p98 = por %p96, %p97
    %p99 = scmp.ne.s32.totalorder %s85, %s86
    %p100 = scmp.eq.s32.totalorder %s14, 1
    %p101 = por %p99, %p100
    %p103 = scmp.ne.s32.totalorder %s86, %s102
    %p104 = scmp.eq.s32.totalorder %s14, 0
    %p105 = por %p103, %p104
    %p106 = scmp.le.s32.totalorder 1, %s8
    %p107 = scmp.lt.s32.totalorder %s8, 3
    %p108 = pnand %p106, %p107
    %p109 = pneg %p108
    // Predicated region
    $region9: #{gin_layer_w_ef_update.5} parent=5 // pred_check
      _
    $region10: #{gin_layer_w_ef_update.5} parent=5 // pred_check_branch
      %111 = sbr.rel (%p108) target = $region12
    $region11: #{gin_layer_w_ef_update.5} parent=5 // pred_region
      %s112 = ssub.s32 %s8, 1
      // Predicated region
      $region13: #{gin_layer_w_ef_update.5} parent=11 // pred_check
        %p113 = pneg %p46
      $region14: #{gin_layer_w_ef_update.5} parent=11 // pred_check_branch
        %115 = sbr.rel (%p113) target = $region16
      $region15: #{gin_layer_w_ef_update.5} parent=11 // pred_region
        %s116 = smul.u32 2, %s18
        %p117 = scmp.lt.s32.totalorder %s116, 1
        %s118 = scalar_select %p117, %s116, 1
        %s119 = scalar_lea.vmem %s0, %s118
        %s120 = smul.u32 2, %s18
      $region16: #{gin_layer_w_ef_update.5} parent=11 // pred_fallthru
        _
      // Predicated region
      $region17: #{gin_layer_w_ef_update.5} parent=11 // pred_check
        %p121 = pneg %p72
      $region18: #{gin_layer_w_ef_update.5} parent=11 // pred_check_branch
        %123 = sbr.rel (%p121) target = $region20
      $region19: #{gin_layer_w_ef_update.5} parent=11 // pred_region
        %s124 = smul.u32 32, %s18
        %p125 = scmp.lt.s32.totalorder %s124, 31
        %s126 = scalar_select %p125, %s124, 31
        %s127 = smul.addr %s126, 8
        %s128 = scalar_lea.vmem %s1, %s127
        %s129 = smul.u32 32, %s18
      $region20: #{gin_layer_w_ef_update.5} parent=11 // pred_fallthru
        _
    $region12: #{gin_layer_w_ef_update.5} parent=5 // pred_fallthru
      _
    %p130 = scmp.lt.s32.totalorder %s8, 2
    // Predicated region
    $region21: #{gin_layer_w_ef_update.5} parent=5 // pred_check
      %p131 = pneg %p130
    $region22: #{gin_layer_w_ef_update.5} parent=5 // pred_check_branch
      %133 = sbr.rel (%p131) target = $region24
    $region23: #{gin_layer_w_ef_update.5} parent=5 // pred_region
      _
    $region24: #{gin_layer_w_ef_update.5} parent=5 // pred_fallthru
      _
    %p134 = scmp.le.s32.totalorder 1, %s8
    %p135 = scmp.lt.s32.totalorder %s8, 3
    %p136 = pnand %p134, %p135
    %p137 = pneg %p136
    // Predicated region
    $region25: #{gin_layer_w_ef_update.5} parent=5 // pred_check
      _
    $region26: #{gin_layer_w_ef_update.5} parent=5 // pred_check_branch
      %139 = sbr.rel (%p136) target = $region28
    $region27: #{gin_layer_w_ef_update.5} parent=5 // pred_region
      %s140 = ssub.s32 %s8, 1
      %s141 = smul.u32 2, %s18
      %p142 = scmp.lt.s32.totalorder %s141, 1
      %s143 = scalar_select %p142, %s141, 1
      %s144 = scalar_lea.vmem %s0, %s143
      %p145 = pneg %p46
      %p146 = pneg %p43
      %s147 = smul.u32 32, %s18
      %p148 = scmp.lt.s32.totalorder %s147, 31
      %s149 = scalar_select %p148, %s147, 31
      %s150 = smul.addr %s149, 8
      %s151 = scalar_lea.vmem %s1, %s150
      %p152 = pneg %p72
      %p153 = pneg %p69
      %p154 = pneg %p98
      %p155 = pneg %p95
      %s156 = smul.u32 16, %s17
      %p157 = scmp.lt.s32.totalorder %s156, 31
      %s158 = scalar_select %p157, %s156, 31
      %s159 = smul.addr %s158, 8
      %s160 = scalar_lea.vmem %s2, %s159
      %s161 = smul.u32 2, %s18
      %p162 = scmp.lt.s32.totalorder %s161, 1
      %s163 = scalar_select %p162, %s161, 1
      %s164 = scalar_lea.vmem %s0, %s163
      %s165 = smul.u32 2, %s18
      %s166 = smul.u32 32, %s18
      %p167 = scmp.lt.s32.totalorder %s166, 31
      %s168 = scalar_select %p167, %s166, 31
      %s169 = smul.addr %s168, 8
      %s170 = scalar_lea.vmem %s1, %s169
      %s171 = smul.u32 32, %s18
      %s172 = smul.u32 16, %s17
      %p173 = scmp.lt.s32.totalorder %s172, 31
      %s174 = scalar_select %p173, %s172, 31
      %s175 = smul.addr %s174, 8
      %s176 = scalar_lea.vmem %s2, %s175
      %s177 = smul.u32 16, %s17
      %p178 = scmp.eq.s32.totalorder %s18, 0
      // Predicated region
      $region29: #{gin_layer_w_ef_update.5} parent=27 // pred_check
        %p179 = pneg %p178
      $region30: #{gin_layer_w_ef_update.5} parent=27 // pred_check_branch
        %181 = sbr.rel (%p179) target = $region32
      $region31: #{gin_layer_w_ef_update.5} parent=27 // pred_region
        %182 = vst [vmem:[%s176] sm:$0xff] 0.0
        %183 = vst [vmem:[%s176 + $0x8] sm:$0xff] 0.0
        %184 = vst [vmem:[%s176 + $0x10] sm:$0xff] 0.0
        %185 = vst [vmem:[%s176 + $0x18] sm:$0xff] 0.0
        %186 = vst [vmem:[%s176 + $0x20] sm:$0xff] 0.0
        %187 = vst [vmem:[%s176 + $0x28] sm:$0xff] 0.0
        %188 = vst [vmem:[%s176 + $0x30] sm:$0xff] 0.0
        %189 = vst [vmem:[%s176 + $0x38] sm:$0xff] 0.0
        %190 = vst [vmem:[%s176 + $0x40] sm:$0xff] 0.0
        %191 = vst [vmem:[%s176 + $0x48] sm:$0xff] 0.0
        %192 = vst [vmem:[%s176 + $0x50] sm:$0xff] 0.0
        %193 = vst [vmem:[%s176 + $0x58] sm:$0xff] 0.0
        %194 = vst [vmem:[%s176 + $0x60] sm:$0xff] 0.0
        %195 = vst [vmem:[%s176 + $0x68] sm:$0xff] 0.0
        %196 = vst [vmem:[%s176 + $0x70] sm:$0xff] 0.0
        %197 = vst [vmem:[%s176 + $0x78] sm:$0xff] 0.0
      $region32: #{gin_layer_w_ef_update.5} parent=27 // pred_fallthru
        _
      %v198 = vlaneseq
      %v199 = vshrl.u32 %v198, 7
      %v200 = vadd.s32 %v199, 8
      %v201 = vadd.s32 %v199, 16
      %v202 = vadd.s32 %v199, 24
      %v203 = vadd.s32 %v199, 32
      %v204 = vadd.s32 %v199, 40
      %v205 = vadd.s32 %v199, 48
      %v206 = vadd.s32 %v199, 56
      %v207 = vadd.s32 %v199, 64
      %v208 = vadd.s32 %v199, 72
      %v209 = vadd.s32 %v199, 80
      %v210 = vadd.s32 %v199, 88
      %v211 = vadd.s32 %v199, 96
      %v212 = vadd.s32 %v199, 104
      %v213 = vadd.s32 %v199, 112
      %v214 = vadd.s32 %v199, 120
      %s215 = smul.u32 %s17, 128
      %v216 = vstv %s215
      %v217 = vadd.s32 %v199, %v216
      %v218 = vadd.s32 %v200, %v216
      %v219 = vadd.s32 %v201, %v216
      %v220 = vadd.s32 %v202, %v216
      %v221 = vadd.s32 %v203, %v216
      %v222 = vadd.s32 %v204, %v216
      %v223 = vadd.s32 %v205, %v216
      %v224 = vadd.s32 %v206, %v216
      %v225 = vadd.s32 %v207, %v216
      %v226 = vadd.s32 %v208, %v216
      %v227 = vadd.s32 %v209, %v216
      %v228 = vadd.s32 %v210, %v216
      %v229 = vadd.s32 %v211, %v216
      %v230 = vadd.s32 %v212, %v216
      %v231 = vadd.s32 %v213, %v216
      %v232 = vadd.s32 %v214, %v216
      %v233 = vld [vmem:[%s164] sm:$0x3]
      %v234 = vperm.slane %v233, 0
      %v235 = vperm.slane %v233, 1
      %vm236 = vcmp.eq.s32.totalorder %v217, %v234
      %vm237 = vcmp.eq.s32.totalorder %v217, %v235
      %vm238 = vcmp.eq.s32.totalorder %v218, %v234
      %vm239 = vcmp.eq.s32.totalorder %v218, %v235
      %vm240 = vcmp.eq.s32.totalorder %v219, %v234
      %vm241 = vcmp.eq.s32.totalorder %v219, %v235
      %vm242 = vcmp.eq.s32.totalorder %v220, %v234
      %vm243 = vcmp.eq.s32.totalorder %v220, %v235
      %vm244 = vcmp.eq.s32.totalorder %v221, %v234
      %vm245 = vcmp.eq.s32.totalorder %v221, %v235
      %vm246 = vcmp.eq.s32.totalorder %v222, %v234
      %vm247 = vcmp.eq.s32.totalorder %v222, %v235
      %vm248 = vcmp.eq.s32.totalorder %v223, %v234
      %vm249 = vcmp.eq.s32.totalorder %v223, %v235
      %vm250 = vcmp.eq.s32.totalorder %v224, %v234
      %vm251 = vcmp.eq.s32.totalorder %v224, %v235
      %vm252 = vcmp.eq.s32.totalorder %v225, %v234
      %vm253 = vcmp.eq.s32.totalorder %v225, %v235
      %vm254 = vcmp.eq.s32.totalorder %v226, %v234
      %vm255 = vcmp.eq.s32.totalorder %v226, %v235
      %vm256 = vcmp.eq.s32.totalorder %v227, %v234
      %vm257 = vcmp.eq.s32.totalorder %v227, %v235
      %vm258 = vcmp.eq.s32.totalorder %v228, %v234
      %vm259 = vcmp.eq.s32.totalorder %v228, %v235
      %vm260 = vcmp.eq.s32.totalorder %v229, %v234
      %vm261 = vcmp.eq.s32.totalorder %v229, %v235
      %vm262 = vcmp.eq.s32.totalorder %v230, %v234
      %vm263 = vcmp.eq.s32.totalorder %v230, %v235
      %vm264 = vcmp.eq.s32.totalorder %v231, %v234
      %vm265 = vcmp.eq.s32.totalorder %v231, %v235
      %vm266 = vcmp.eq.s32.totalorder %v232, %v234
      %vm267 = vcmp.eq.s32.totalorder %v232, %v235
      %v268 = vsel %vm236, 1, 0
      %v269 = vsel %vm237, 1, 0
      %v270 = vsel %vm238, 1, 0
      %v271 = vsel %vm239, 1, 0
      %v272 = vsel %vm240, 1, 0
      %v273 = vsel %vm241, 1, 0
      %v274 = vsel %vm242, 1, 0
      %v275 = vsel %vm243, 1, 0
      %v276 = vsel %vm244, 1, 0
      %v277 = vsel %vm245, 1, 0
      %v278 = vsel %vm246, 1, 0
      %v279 = vsel %vm247, 1, 0
      %v280 = vsel %vm248, 1, 0
      %v281 = vsel %vm249, 1, 0
      %v282 = vsel %vm250, 1, 0
      %v283 = vsel %vm251, 1, 0
      %v284 = vsel %vm252, 1, 0
      %v285 = vsel %vm253, 1, 0
      %v286 = vsel %vm254, 1, 0
      %v287 = vsel %vm255, 1, 0
      %v288 = vsel %vm256, 1, 0
      %v289 = vsel %vm257, 1, 0
      %v290 = vsel %vm258, 1, 0
      %v291 = vsel %vm259, 1, 0
      %v292 = vsel %vm260, 1, 0
      %v293 = vsel %vm261, 1, 0
      %v294 = vsel %vm262, 1, 0
      %v295 = vsel %vm263, 1, 0
      %v296 = vsel %vm264, 1, 0
      %v297 = vsel %vm265, 1, 0
      %v298 = vsel %vm266, 1, 0
      %v299 = vsel %vm267, 1, 0
      %v300 = vcvt.s32.f32 %v268
      %v301 = vcvt.s32.f32 %v269
      %v302 = vcvt.s32.f32 %v270
      %v303 = vcvt.s32.f32 %v271
      %v304 = vcvt.s32.f32 %v272
      %v305 = vcvt.s32.f32 %v273
      %v306 = vcvt.s32.f32 %v274
      %v307 = vcvt.s32.f32 %v275
      %v308 = vcvt.s32.f32 %v276
      %v309 = vcvt.s32.f32 %v277
      %v310 = vcvt.s32.f32 %v278
      %v311 = vcvt.s32.f32 %v279
      %v312 = vcvt.s32.f32 %v280
      %v313 = vcvt.s32.f32 %v281
      %v314 = vcvt.s32.f32 %v282
      %v315 = vcvt.s32.f32 %v283
      %v316 = vcvt.s32.f32 %v284
      %v317 = vcvt.s32.f32 %v285
      %v318 = vcvt.s32.f32 %v286
      %v319 = vcvt.s32.f32 %v287
      %v320 = vcvt.s32.f32 %v288
      %v321 = vcvt.s32.f32 %v289
      %v322 = vcvt.s32.f32 %v290
      %v323 = vcvt.s32.f32 %v291
      %v324 = vcvt.s32.f32 %v292
      %v325 = vcvt.s32.f32 %v293
      %v326 = vcvt.s32.f32 %v294
      %v327 = vcvt.s32.f32 %v295
      %v328 = vcvt.s32.f32 %v296
      %v329 = vcvt.s32.f32 %v297
      %v330 = vcvt.s32.f32 %v298
      %v331 = vcvt.s32.f32 %v299
      %v332 = vpack.c.bf16 %v302, %v300
      %v333 = vpack.c.bf16 %v303, %v301
      %v334 = vpack.c.bf16 %v306, %v304
      %v335 = vpack.c.bf16 %v307, %v305
      %v336 = vpack.c.bf16 %v310, %v308
      %v337 = vpack.c.bf16 %v311, %v309
      %v338 = vpack.c.bf16 %v314, %v312
      %v339 = vpack.c.bf16 %v315, %v313
      %v340 = vpack.c.bf16 %v318, %v316
      %v341 = vpack.c.bf16 %v319, %v317
      %v342 = vpack.c.bf16 %v322, %v320
      %v343 = vpack.c.bf16 %v323, %v321
      %v344 = vpack.c.bf16 %v326, %v324
      %v345 = vpack.c.bf16 %v327, %v325
      %v346 = vpack.c.bf16 %v330, %v328
      %v347 = vpack.c.bf16 %v331, %v329
      %v348 = vld [vmem:[%s176] sm:$0xff]
      %v349 = vld [vmem:[%s176 + $0x8] sm:$0xff]
      %v350 = vld [vmem:[%s176 + $0x10] sm:$0xff]
      %v351 = vld [vmem:[%s176 + $0x18] sm:$0xff]
      %v352 = vld [vmem:[%s176 + $0x20] sm:$0xff]
      %v353 = vld [vmem:[%s176 + $0x28] sm:$0xff]
      %v354 = vld [vmem:[%s176 + $0x30] sm:$0xff]
      %v355 = vld [vmem:[%s176 + $0x38] sm:$0xff]
      %v356 = vld [vmem:[%s176 + $0x40] sm:$0xff]
      %v357 = vld [vmem:[%s176 + $0x48] sm:$0xff]
      %v358 = vld [vmem:[%s176 + $0x50] sm:$0xff]
      %v359 = vld [vmem:[%s176 + $0x58] sm:$0xff]
      %v360 = vld [vmem:[%s176 + $0x60] sm:$0xff]
      %v361 = vld [vmem:[%s176 + $0x68] sm:$0xff]
      %v362 = vld [vmem:[%s176 + $0x70] sm:$0xff]
      %v363 = vld [vmem:[%s176 + $0x78] sm:$0xff]
      %v364 = vld [vmem:[%s170] sm:$0xff]
      %v365 = vld [vmem:[%s170 + $0x8] sm:$0xff]
      %v366 = vld [vmem:[%s170 + $0x10] sm:$0xff]
      %v367 = vld [vmem:[%s170 + $0x18] sm:$0xff]
      %v368 = vld [vmem:[%s170 + $0x20] sm:$0xff]
      %v369 = vld [vmem:[%s170 + $0x28] sm:$0xff]
      %v370 = vld [vmem:[%s170 + $0x30] sm:$0xff]
      %v371 = vld [vmem:[%s170 + $0x38] sm:$0xff]
      %v372 = vld [vmem:[%s170 + $0x40] sm:$0xff]
      %v373 = vld [vmem:[%s170 + $0x48] sm:$0xff]
      %v374 = vld [vmem:[%s170 + $0x50] sm:$0xff]
      %v375 = vld [vmem:[%s170 + $0x58] sm:$0xff]
      %v376 = vld [vmem:[%s170 + $0x60] sm:$0xff]
      %v377 = vld [vmem:[%s170 + $0x68] sm:$0xff]
      %v378 = vld [vmem:[%s170 + $0x70] sm:$0xff]
      %v379 = vld [vmem:[%s170 + $0x78] sm:$0xff]
      %v380 = vld [vmem:[%s170 + $0x80] sm:$0xff]
      %v381 = vld [vmem:[%s170 + $0x88] sm:$0xff]
      %v382 = vld [vmem:[%s170 + $0x90] sm:$0xff]
      %v383 = vld [vmem:[%s170 + $0x98] sm:$0xff]
      %v384 = vld [vmem:[%s170 + $0xa0] sm:$0xff]
      %v385 = vld [vmem:[%s170 + $0xa8] sm:$0xff]
      %v386 = vld [vmem:[%s170 + $0xb0] sm:$0xff]
      %v387 = vld [vmem:[%s170 + $0xb8] sm:$0xff]
      %v388 = vld [vmem:[%s170 + $0xc0] sm:$0xff]
      %v389 = vld [vmem:[%s170 + $0xc8] sm:$0xff]
      %v390 = vld [vmem:[%s170 + $0xd0] sm:$0xff]
      %v391 = vld [vmem:[%s170 + $0xd8] sm:$0xff]
      %v392 = vld [vmem:[%s170 + $0xe0] sm:$0xff]
      %v393 = vld [vmem:[%s170 + $0xe8] sm:$0xff]
      %v394 = vld [vmem:[%s170 + $0xf0] sm:$0xff]
      %v395 = vld [vmem:[%s170 + $0xf8] sm:$0xff]
      %v396 = vpack.c.bf16 %v365, %v364
      %v397 = vpack.c.bf16 %v367, %v366
      %v398 = vpack.c.bf16 %v369, %v368
      %v399 = vpack.c.bf16 %v371, %v370
      %v400 = vpack.c.bf16 %v373, %v372
      %v401 = vpack.c.bf16 %v375, %v374
      %v402 = vpack.c.bf16 %v377, %v376
      %v403 = vpack.c.bf16 %v379, %v378
      %v404 = vpack.c.bf16 %v381, %v380
      %v405 = vpack.c.bf16 %v383, %v382
      %v406 = vpack.c.bf16 %v385, %v384
      %v407 = vpack.c.bf16 %v387, %v386
      %v408 = vpack.c.bf16 %v389, %v388
      %v409 = vpack.c.bf16 %v391, %v390
      %v410 = vpack.c.bf16 %v393, %v392
      %v411 = vpack.c.bf16 %v395, %v394
      %412 = vmatpush.bf16.msra.mxu0 %v403
      %413 = vmatpush.bf16.msra.mxu0 %v402
      %414 = vmatpush.bf16.msra.mxu0 %v401
      %415 = vmatpush.bf16.msra.mxu0 %v400
      %416 = vmatpush.bf16.msra.mxu0 %v399
      %417 = vmatpush.bf16.msra.mxu0 %v398
      %418 = vmatpush.bf16.msra.mxu0 %v397
      %419 = vmatpush.bf16.msra.mxu0 %v396
      %420 = vmatmul.bf16.gmra.mxu0 %v332
      %v421 = vpop.f32.mrf.mxu0
      %v422 = vadd.f32 0.0, %v421
      %v423 = vpop.f32.mrf.mxu0
      %v424 = vadd.f32 0.0, %v423
      %425 = vmatmul.bf16.gmra.mxu0 %v334
      %v426 = vpop.f32.mrf.mxu0
      %v427 = vadd.f32 0.0, %v426
      %v428 = vpop.f32.mrf.mxu0
      %v429 = vadd.f32 0.0, %v428
      %430 = vmatmul.bf16.gmra.mxu0 %v336
      %v431 = vpop.f32.mrf.mxu0
      %v432 = vadd.f32 0.0, %v431
      %v433 = vpop.f32.mrf.mxu0
      %v434 = vadd.f32 0.0, %v433
      %435 = vmatmul.bf16.gmra.mxu0 %v338
      %v436 = vpop.f32.mrf.mxu0
      %v437 = vadd.f32 0.0, %v436
      %v438 = vpop.f32.mrf.mxu0
      %v439 = vadd.f32 0.0, %v438
      %440 = vmatmul.bf16.gmra.mxu0 %v340
      %v441 = vpop.f32.mrf.mxu0
      %v442 = vadd.f32 0.0, %v441
      %v443 = vpop.f32.mrf.mxu0
      %v444 = vadd.f32 0.0, %v443
      %445 = vmatmul.bf16.gmra.mxu0 %v342
      %v446 = vpop.f32.mrf.mxu0
      %v447 = vadd.f32 0.0, %v446
      %v448 = vpop.f32.mrf.mxu0
      %v449 = vadd.f32 0.0, %v448
      %450 = vmatmul.bf16.gmra.mxu0 %v344
      %v451 = vpop.f32.mrf.mxu0
      %v452 = vadd.f32 0.0, %v451
      %v453 = vpop.f32.mrf.mxu0
      %v454 = vadd.f32 0.0, %v453
      %455 = vmatmul.bf16.gmra.mxu0 %v346
      %v456 = vpop.f32.mrf.mxu0
      %v457 = vadd.f32 0.0, %v456
      %v458 = vpop.f32.mrf.mxu0
      %v459 = vadd.f32 0.0, %v458
      %460 = vdwg.mxu0
      %461 = vmatpush.bf16.msra.mxu0 %v411
      %462 = vmatpush.bf16.msra.mxu0 %v410
      %463 = vmatpush.bf16.msra.mxu0 %v409
      %464 = vmatpush.bf16.msra.mxu0 %v408
      %465 = vmatpush.bf16.msra.mxu0 %v407
      %466 = vmatpush.bf16.msra.mxu0 %v406
      %467 = vmatpush.bf16.msra.mxu0 %v405
      %468 = vmatpush.bf16.msra.mxu0 %v404
      %469 = vmatmul.bf16.gmra.mxu0 %v333
      %v470 = vpop.f32.mrf.mxu0
      %v471 = vadd.f32 %v422, %v470
      %v472 = vpop.f32.mrf.mxu0
      %v473 = vadd.f32 %v424, %v472
      %474 = vmatmul.bf16.gmra.mxu0 %v335
      %v475 = vpop.f32.mrf.mxu0
      %v476 = vadd.f32 %v427, %v475
      %v477 = vpop.f32.mrf.mxu0
      %v478 = vadd.f32 %v429, %v477
      %479 = vmatmul.bf16.gmra.mxu0 %v337
      %v480 = vpop.f32.mrf.mxu0
      %v481 = vadd.f32 %v432, %v480
      %v482 = vpop.f32.mrf.mxu0
      %v483 = vadd.f32 %v434, %v482
      %484 = vmatmul.bf16.gmra.mxu0 %v339
      %v485 = vpop.f32.mrf.mxu0
      %v486 = vadd.f32 %v437, %v485
      %v487 = vpop.f32.mrf.mxu0
      %v488 = vadd.f32 %v439, %v487
      %489 = vmatmul.bf16.gmra.mxu0 %v341
      %v490 = vpop.f32.mrf.mxu0
      %v491 = vadd.f32 %v442, %v490
      %v492 = vpop.f32.mrf.mxu0
      %v493 = vadd.f32 %v444, %v492
      %494 = vmatmul.bf16.gmra.mxu0 %v343
      %v495 = vpop.f32.mrf.mxu0
      %v496 = vadd.f32 %v447, %v495
      %v497 = vpop.f32.mrf.mxu0
      %v498 = vadd.f32 %v449, %v497
      %499 = vmatmul.bf16.gmra.mxu0 %v345
      %v500 = vpop.f32.mrf.mxu0
      %v501 = vadd.f32 %v452, %v500
      %v502 = vpop.f32.mrf.mxu0
      %v503 = vadd.f32 %v454, %v502
      %504 = vmatmul.bf16.gmra.mxu0 %v347
      %v505 = vpop.f32.mrf.mxu0
      %v506 = vadd.f32 %v457, %v505
      %v507 = vpop.f32.mrf.mxu0
      %v508 = vadd.f32 %v459, %v507
      %509 = vdwg.mxu0
      %v510 = vadd.f32 %v348, %v471
      %v511 = vadd.f32 %v349, %v473
      %v512 = vadd.f32 %v350, %v476
      %v513 = vadd.f32 %v351, %v478
      %v514 = vadd.f32 %v352, %v481
      %v515 = vadd.f32 %v353, %v483
      %v516 = vadd.f32 %v354, %v486
      %v517 = vadd.f32 %v355, %v488
      %v518 = vadd.f32 %v356, %v491
      %v519 = vadd.f32 %v357, %v493
      %v520 = vadd.f32 %v358, %v496
      %v521 = vadd.f32 %v359, %v498
      %v522 = vadd.f32 %v360, %v501
      %v523 = vadd.f32 %v361, %v503
      %v524 = vadd.f32 %v362, %v506
      %v525 = vadd.f32 %v363, %v508
      %526 = vst [vmem:[%s176] sm:$0xff] %v510
      %527 = vst [vmem:[%s176 + $0x8] sm:$0xff] %v511
      %528 = vst [vmem:[%s176 + $0x10] sm:$0xff] %v512
      %529 = vst [vmem:[%s176 + $0x18] sm:$0xff] %v513
      %530 = vst [vmem:[%s176 + $0x20] sm:$0xff] %v514
      %531 = vst [vmem:[%s176 + $0x28] sm:$0xff] %v515
      %532 = vst [vmem:[%s176 + $0x30] sm:$0xff] %v516
      %533 = vst [vmem:[%s176 + $0x38] sm:$0xff] %v517
      %534 = vst [vmem:[%s176 + $0x40] sm:$0xff] %v518
      %535 = vst [vmem:[%s176 + $0x48] sm:$0xff] %v519
      %536 = vst [vmem:[%s176 + $0x50] sm:$0xff] %v520
      %537 = vst [vmem:[%s176 + $0x58] sm:$0xff] %v521
      %538 = vst [vmem:[%s176 + $0x60] sm:$0xff] %v522
      %539 = vst [vmem:[%s176 + $0x68] sm:$0xff] %v523
      %540 = vst [vmem:[%s176 + $0x70] sm:$0xff] %v524
      %541 = vst [vmem:[%s176 + $0x78] sm:$0xff] %v525
      %s542 = smul.u32 16, %s17
      %p543 = scmp.lt.s32.totalorder %s542, 31
      %s544 = scalar_select %p543, %s542, 31
      %s545 = smul.addr %s544, 8
      %s546 = scalar_lea.vmem %s2, %s545
      // Predicated region
      $region33: #{gin_layer_w_ef_update.5} parent=27 // pred_check
        %p547 = pneg %p95
      $region34: #{gin_layer_w_ef_update.5} parent=27 // pred_check_branch
        %549 = sbr.rel (%p547) target = $region36
      $region35: #{gin_layer_w_ef_update.5} parent=27 // pred_region
        %s550 = smul.u32 16, %s17
      $region36: #{gin_layer_w_ef_update.5} parent=27 // pred_fallthru
        _
    $region28: #{gin_layer_w_ef_update.5} parent=5 // pred_fallthru
      _
    %p551 = scmp.le.s32.totalorder 2, %s8
    // Predicated region
    $region37: #{gin_layer_w_ef_update.5} parent=5 // pred_check
      %p552 = pneg %p551
    $region38: #{gin_layer_w_ef_update.5} parent=5 // pred_check_branch
      %554 = sbr.rel (%p552) target = $region40
    $region39: #{gin_layer_w_ef_update.5} parent=5 // pred_region
      %s555 = ssub.s32 %s8, 2
      // Predicated region
      $region41: #{gin_layer_w_ef_update.5} parent=39 // pred_check
        %p556 = pneg %p101
      $region42: #{gin_layer_w_ef_update.5} parent=39 // pred_check_branch
        %558 = sbr.rel (%p556) target = $region44
      $region43: #{gin_layer_w_ef_update.5} parent=39 // pred_region
        %s559 = smul.u32 16, %s19
        %p560 = scmp.lt.s32.totalorder %s559, 31
        %s561 = scalar_select %p560, %s559, 31
        %s562 = smul.addr %s561, 8
        %s563 = scalar_lea.vmem %s2, %s562
      $region44: #{gin_layer_w_ef_update.5} parent=39 // pred_fallthru
        _
    $region40: #{gin_layer_w_ef_update.5} parent=5 // pred_fallthru
      _
  $region6: #{gin_layer_w_ef_update.5} parent=0 // loop_footer
    %s12 = sadd.s32 1, %s8
  $region7: #{gin_layer_w_ef_update.5} parent=0 // loop_footer_branch
    %7 = sbr.rel target = $region3
  $region8: #{gin_layer_w_ef_update.5} parent=0 // loop_exit
    _

// kernel: gin_layer_w_ef_update.6
$region0: #{gin_layer_w_ef_update.6}
  #allocation0 [shape = 'u32[]', space=smem, size = 0x4, offset = 0x4, fixed_abs, tag = 'smem constant byte address 0x4 - core index']
  #allocation1 [shape = 'u32[72,128]{1,0:T(1,128)}', space=vmem, size = 0x9000, scoped, tag = 'internal scratch']
  #allocation2 [shape = 'f32[1]{0:T(128)S(6)}', space=smem, size = 0x200, scoped, tag = 'scoped memory for gin_layer_w_ef_update.6']
  %s0 = inlined_call_operand.<no memory space> [shape: f32[1], index: 0, kind: input, shape index: {}]
  %s1 = inlined_call_operand.vmem [shape: f32[256,128], index: 1, kind: input, shape index: {}]
  %s2 = inlined_call_operand.vmem [shape: f32[256,128], index: 2, kind: input, shape index: {}]
  %s3 = inlined_call_operand.vmem [shape: f32[128,128], index: 3, kind: input, shape index: {}]
  %s4 = inlined_call_operand.vmem [shape: f32[1,128], index: 4, kind: input, shape index: {}]
  %s5 = inlined_call_operand.vmem [shape: f32[128,128], index: 5, kind: input, shape index: {}]
  %s6 = inlined_call_operand.vmem [shape: f32[1,128], index: 6, kind: input, shape index: {}]
  %s7 = inlined_call_operand.vmem [shape: f32[256,128], index: 7, kind: output, shape index: {}]
  %s8 = sld [smem:[#allocation0]]
  $region38: #{gin_layer_w_ef_update.6} parent=0
    _
  %s10 = ssub.s32 1, %s8
  %s11 = scalar_select 0, %s10, %s8
  %12 = sst [smem:[#allocation2]] %s0
  // Predicated region
  $region2: #{gin_layer_w_ef_update.6} parent=0 // pred_check
    _
  $region3: #{gin_layer_w_ef_update.6} parent=0 // pred_check_branch
    %14 = sbr.rel (0) target = $region5
  $region4: #{gin_layer_w_ef_update.6} parent=0 // pred_region
    _
  $region5: #{gin_layer_w_ef_update.6} parent=0 // pred_fallthru
    _
  // Predicated region
  $region6: #{gin_layer_w_ef_update.6} parent=0 // pred_check
    _
  $region7: #{gin_layer_w_ef_update.6} parent=0 // pred_check_branch
    %16 = sbr.rel (0) target = $region9
  $region8: #{gin_layer_w_ef_update.6} parent=0 // pred_region
    _
  $region9: #{gin_layer_w_ef_update.6} parent=0 // pred_fallthru
    _
  // Predicated region
  $region10: #{gin_layer_w_ef_update.6} parent=0 // pred_check
    _
  $region11: #{gin_layer_w_ef_update.6} parent=0 // pred_check_branch
    %18 = sbr.rel (0) target = $region13
  $region12: #{gin_layer_w_ef_update.6} parent=0 // pred_region
    _
  $region13: #{gin_layer_w_ef_update.6} parent=0 // pred_fallthru
    _
  // Predicated region
  $region14: #{gin_layer_w_ef_update.6} parent=0 // pred_check
    _
  $region15: #{gin_layer_w_ef_update.6} parent=0 // pred_check_branch
    %20 = sbr.rel (0) target = $region17
  $region16: #{gin_layer_w_ef_update.6} parent=0 // pred_region
    _
  $region17: #{gin_layer_w_ef_update.6} parent=0 // pred_fallthru
    _
  // Predicated region
  $region18: #{gin_layer_w_ef_update.6} parent=0 // pred_check
    _
  $region19: #{gin_layer_w_ef_update.6} parent=0 // pred_check_branch
    %22 = sbr.rel (0) target = $region21
  $region20: #{gin_layer_w_ef_update.6} parent=0 // pred_region
    _
  $region21: #{gin_layer_w_ef_update.6} parent=0 // pred_fallthru
    _
  // Predicated region
  $region22: #{gin_layer_w_ef_update.6} parent=0 // pred_check
    _
  $region23: #{gin_layer_w_ef_update.6} parent=0 // pred_check_branch
    %24 = sbr.rel (0) target = $region25
  $region24: #{gin_layer_w_ef_update.6} parent=0 // pred_region
    _
  $region25: #{gin_layer_w_ef_update.6} parent=0 // pred_fallthru
    _
  // Predicated region
  $region26: #{gin_layer_w_ef_update.6} parent=0 // pred_check
    _
  $region27: #{gin_layer_w_ef_update.6} parent=0 // pred_check_branch
    %26 = sbr.rel (0) target = $region29
  $region28: #{gin_layer_w_ef_update.6} parent=0 // pred_region
    _
  $region29: #{gin_layer_w_ef_update.6} parent=0 // pred_fallthru
    _
  %s27 = sld [smem:[#allocation2]]
  %s28 = sadd.f32 %s27, 1.0
  %v29 = vld [vmem:[%s1] sm:$0xff]
  %v30 = vld [vmem:[%s1 + $0x8] sm:$0xff]
  %v31 = vld [vmem:[%s1 + $0x10] sm:$0xff]
  %v32 = vld [vmem:[%s1 + $0x18] sm:$0xff]
  %v33 = vld [vmem:[%s1 + $0x20] sm:$0xff]
  %v34 = vld [vmem:[%s1 + $0x28] sm:$0xff]
  %v35 = vld [vmem:[%s1 + $0x30] sm:$0xff]
  %v36 = vld [vmem:[%s1 + $0x38] sm:$0xff]
  %v37 = vld [vmem:[%s1 + $0x40] sm:$0xff]
  %v38 = vld [vmem:[%s1 + $0x48] sm:$0xff]
  %v39 = vld [vmem:[%s1 + $0x50] sm:$0xff]
  %v40 = vld [vmem:[%s1 + $0x58] sm:$0xff]
  %v41 = vld [vmem:[%s1 + $0x60] sm:$0xff]
  %v42 = vld [vmem:[%s1 + $0x68] sm:$0xff]
  %v43 = vld [vmem:[%s1 + $0x70] sm:$0xff]
  %v44 = vld [vmem:[%s1 + $0x78] sm:$0xff]
  %v45 = vld [vmem:[%s1 + $0x80] sm:$0xff]
  %v46 = vld [vmem:[%s1 + $0x88] sm:$0xff]
  %v47 = vld [vmem:[%s1 + $0x90] sm:$0xff]
  %v48 = vld [vmem:[%s1 + $0x98] sm:$0xff]
  %v49 = vld [vmem:[%s1 + $0xa0] sm:$0xff]
  %v50 = vld [vmem:[%s1 + $0xa8] sm:$0xff]
  %v51 = vld [vmem:[%s1 + $0xb0] sm:$0xff]
  %v52 = vld [vmem:[%s1 + $0xb8] sm:$0xff]
  %v53 = vld [vmem:[%s1 + $0xc0] sm:$0xff]
  %v54 = vld [vmem:[%s1 + $0xc8] sm:$0xff]
  %v55 = vld [vmem:[%s1 + $0xd0] sm:$0xff]
  %v56 = vld [vmem:[%s1 + $0xd8] sm:$0xff]
  %v57 = vld [vmem:[%s1 + $0xe0] sm:$0xff]
  %v58 = vld [vmem:[%s1 + $0xe8] sm:$0xff]
  %v59 = vld [vmem:[%s1 + $0xf0] sm:$0xff]
  %v60 = vld [vmem:[%s1 + $0xf8] sm:$0xff]
  %v61 = vstv %s28
  %v62 = vmul.f32 %v61, %v29
  %v63 = vmul.f32 %v61, %v30
  %v64 = vmul.f32 %v61, %v31
  %v65 = vmul.f32 %v61, %v32
  %v66 = vmul.f32 %v61, %v33
  %v67 = vmul.f32 %v61, %v34
  %v68 = vmul.f32 %v61, %v35
  %v69 = vmul.f32 %v61, %v36
  %v70 = vmul.f32 %v61, %v37
  %v71 = vmul.f32 %v61, %v38
  %v72 = vmul.f32 %v61, %v39
  %v73 = vmul.f32 %v61, %v40
  %v74 = vmul.f32 %v61, %v41
  %v75 = vmul.f32 %v61, %v42
  %v76 = vmul.f32 %v61, %v43
  %v77 = vmul.f32 %v61, %v44
  %v78 = vmul.f32 %v61, %v45
  %v79 = vmul.f32 %v61, %v46
  %v80 = vmul.f32 %v61, %v47
  %v81 = vmul.f32 %v61, %v48
  %v82 = vmul.f32 %v61, %v49
  %v83 = vmul.f32 %v61, %v50
  %v84 = vmul.f32 %v61, %v51
  %v85 = vmul.f32 %v61, %v52
  %v86 = vmul.f32 %v61, %v53
  %v87 = vmul.f32 %v61, %v54
  %v88 = vmul.f32 %v61, %v55
  %v89 = vmul.f32 %v61, %v56
  %v90 = vmul.f32 %v61, %v57
  %v91 = vmul.f32 %v61, %v58
  %v92 = vmul.f32 %v61, %v59
  %v93 = vmul.f32 %v61, %v60
  %v94 = vld [vmem:[%s2] sm:$0xff]
  %v95 = vld [vmem:[%s2 + $0x8] sm:$0xff]
  %v96 = vld [vmem:[%s2 + $0x10] sm:$0xff]
  %v97 = vld [vmem:[%s2 + $0x18] sm:$0xff]
  %v98 = vld [vmem:[%s2 + $0x20] sm:$0xff]
  %v99 = vld [vmem:[%s2 + $0x28] sm:$0xff]
  %v100 = vld [vmem:[%s2 + $0x30] sm:$0xff]
  %v101 = vld [vmem:[%s2 + $0x38] sm:$0xff]
  %v102 = vld [vmem:[%s2 + $0x40] sm:$0xff]
  %v103 = vld [vmem:[%s2 + $0x48] sm:$0xff]
  %v104 = vld [vmem:[%s2 + $0x50] sm:$0xff]
  %v105 = vld [vmem:[%s2 + $0x58] sm:$0xff]
  %v106 = vld [vmem:[%s2 + $0x60] sm:$0xff]
  %v107 = vld [vmem:[%s2 + $0x68] sm:$0xff]
  %v108 = vld [vmem:[%s2 + $0x70] sm:$0xff]
  %v109 = vld [vmem:[%s2 + $0x78] sm:$0xff]
  %v110 = vld [vmem:[%s2 + $0x80] sm:$0xff]
  %v111 = vld [vmem:[%s2 + $0x88] sm:$0xff]
  %v112 = vld [vmem:[%s2 + $0x90] sm:$0xff]
  %v113 = vld [vmem:[%s2 + $0x98] sm:$0xff]
  %v114 = vld [vmem:[%s2 + $0xa0] sm:$0xff]
  %v115 = vld [vmem:[%s2 + $0xa8] sm:$0xff]
  %v116 = vld [vmem:[%s2 + $0xb0] sm:$0xff]
  %v117 = vld [vmem:[%s2 + $0xb8] sm:$0xff]
  %v118 = vld [vmem:[%s2 + $0xc0] sm:$0xff]
  %v119 = vld [vmem:[%s2 + $0xc8] sm:$0xff]
  %v120 = vld [vmem:[%s2 + $0xd0] sm:$0xff]
  %v121 = vld [vmem:[%s2 + $0xd8] sm:$0xff]
  %v122 = vld [vmem:[%s2 + $0xe0] sm:$0xff]
  %v123 = vld [vmem:[%s2 + $0xe8] sm:$0xff]
  %v124 = vld [vmem:[%s2 + $0xf0] sm:$0xff]
  %v125 = vld [vmem:[%s2 + $0xf8] sm:$0xff]
  %v126 = vadd.f32 %v62, %v94
  %v127 = vadd.f32 %v63, %v95
  %v128 = vadd.f32 %v64, %v96
  %v129 = vadd.f32 %v65, %v97
  %v130 = vadd.f32 %v66, %v98
  %v131 = vadd.f32 %v67, %v99
  %v132 = vadd.f32 %v68, %v100
  %v133 = vadd.f32 %v69, %v101
  %v134 = vadd.f32 %v70, %v102
  %v135 = vadd.f32 %v71, %v103
  %v136 = vadd.f32 %v72, %v104
  %v137 = vadd.f32 %v73, %v105
  %v138 = vadd.f32 %v74, %v106
  %v139 = vadd.f32 %v75, %v107
  %v140 = vadd.f32 %v76, %v108
  %v141 = vadd.f32 %v77, %v109
  %v142 = vadd.f32 %v78, %v110
  %v143 = vadd.f32 %v79, %v111
  %v144 = vadd.f32 %v80, %v112
  %v145 = vadd.f32 %v81, %v113
  %v146 = vadd.f32 %v82, %v114
  %v147 = vadd.f32 %v83, %v115
  %v148 = vadd.f32 %v84, %v116
  %v149 = vadd.f32 %v85, %v117
  %v150 = vadd.f32 %v86, %v118
  %v151 = vadd.f32 %v87, %v119
  %v152 = vadd.f32 %v88, %v120
  %v153 = vadd.f32 %v89, %v121
  %v154 = vadd.f32 %v90, %v122
  %v155 = vadd.f32 %v91, %v123
  %v156 = vadd.f32 %v92, %v124
  %v157 = vadd.f32 %v93, %v125
  %v158 = vld [vmem:[%s3] sm:$0xff]
  %v159 = vld [vmem:[%s3 + $0x8] sm:$0xff]
  %v160 = vld [vmem:[%s3 + $0x10] sm:$0xff]
  %v161 = vld [vmem:[%s3 + $0x18] sm:$0xff]
  %v162 = vld [vmem:[%s3 + $0x20] sm:$0xff]
  %v163 = vld [vmem:[%s3 + $0x28] sm:$0xff]
  %v164 = vld [vmem:[%s3 + $0x30] sm:$0xff]
  %v165 = vld [vmem:[%s3 + $0x38] sm:$0xff]
  %v166 = vld [vmem:[%s3 + $0x40] sm:$0xff]
  %v167 = vld [vmem:[%s3 + $0x48] sm:$0xff]
  %v168 = vld [vmem:[%s3 + $0x50] sm:$0xff]
  %v169 = vld [vmem:[%s3 + $0x58] sm:$0xff]
  %v170 = vld [vmem:[%s3 + $0x60] sm:$0xff]
  %v171 = vld [vmem:[%s3 + $0x68] sm:$0xff]
  %v172 = vld [vmem:[%s3 + $0x70] sm:$0xff]
  %v173 = vld [vmem:[%s3 + $0x78] sm:$0xff]
  %v174 = vld [vmem:[%s4] sm:$0x1]
  %v176 = vperm.slane %v174, 0
  %178 = vmatpush.msra.mxu0 %v173
  %179 = vmatpush.msra.mxu0 %v172
  %180 = vmatpush.msra.mxu0 %v171
  %181 = vmatpush.msra.mxu0 %v170
  %182 = vmatpush.msra.mxu0 %v169
  %183 = vmatpush.msra.mxu0 %v168
  %184 = vmatpush.msra.mxu0 %v167
  %185 = vmatpush.msra.mxu0 %v166
  %186 = vmatpush.msra.mxu0 %v165
  %187 = vmatpush.msra.mxu0 %v164
  %188 = vmatpush.msra.mxu0 %v163
  %189 = vmatpush.msra.mxu0 %v162
  %190 = vmatpush.msra.mxu0 %v161
  %191 = vmatpush.msra.mxu0 %v160
  %192 = vmatpush.msra.mxu0 %v159
  %193 = vmatpush.msra.mxu0 %v158
  %194 = vmatmul.f32.gmra.mxu0 %v126
  %v195 = vpop.f32.mrf.mxu0
  %v196 = vadd.f32 %v176, %v195
  %197 = vmatmul.f32.gmra.mxu0 %v127
  %v198 = vpop.f32.mrf.mxu0
  %v199 = vadd.f32 %v176, %v198
  %200 = vmatmul.f32.gmra.mxu0 %v128
  %v201 = vpop.f32.mrf.mxu0
  %v202 = vadd.f32 %v176, %v201
  %203 = vmatmul.f32.gmra.mxu0 %v129
  %v204 = vpop.f32.mrf.mxu0
  %v205 = vadd.f32 %v176, %v204
  %206 = vmatmul.f32.gmra.mxu0 %v130
  %v207 = vpop.f32.mrf.mxu0
  %v208 = vadd.f32 %v176, %v207
  %209 = vmatmul.f32.gmra.mxu0 %v131
  %v210 = vpop.f32.mrf.mxu0
  %v211 = vadd.f32 %v176, %v210
  %212 = vmatmul.f32.gmra.mxu0 %v132
  %v213 = vpop.f32.mrf.mxu0
  %v214 = vadd.f32 %v176, %v213
  %215 = vmatmul.f32.gmra.mxu0 %v133
  %v216 = vpop.f32.mrf.mxu0
  %v217 = vadd.f32 %v176, %v216
  %218 = vmatmul.f32.gmra.mxu0 %v134
  %v219 = vpop.f32.mrf.mxu0
  %v220 = vadd.f32 %v176, %v219
  %221 = vmatmul.f32.gmra.mxu0 %v135
  %v222 = vpop.f32.mrf.mxu0
  %v223 = vadd.f32 %v176, %v222
  %224 = vmatmul.f32.gmra.mxu0 %v136
  %v225 = vpop.f32.mrf.mxu0
  %v226 = vadd.f32 %v176, %v225
  %227 = vmatmul.f32.gmra.mxu0 %v137
  %v228 = vpop.f32.mrf.mxu0
  %v229 = vadd.f32 %v176, %v228
  %230 = vmatmul.f32.gmra.mxu0 %v138
  %v231 = vpop.f32.mrf.mxu0
  %v232 = vadd.f32 %v176, %v231
  %233 = vmatmul.f32.gmra.mxu0 %v139
  %v234 = vpop.f32.mrf.mxu0
  %v235 = vadd.f32 %v176, %v234
  %236 = vmatmul.f32.gmra.mxu0 %v140
  %v237 = vpop.f32.mrf.mxu0
  %v238 = vadd.f32 %v176, %v237
  %239 = vmatmul.f32.gmra.mxu0 %v141
  %v240 = vpop.f32.mrf.mxu0
  %v241 = vadd.f32 %v176, %v240
  %242 = vmatmul.f32.gmra.mxu0 %v142
  %v243 = vpop.f32.mrf.mxu0
  %v244 = vadd.f32 %v176, %v243
  %245 = vmatmul.f32.gmra.mxu0 %v143
  %v246 = vpop.f32.mrf.mxu0
  %v247 = vadd.f32 %v176, %v246
  %248 = vmatmul.f32.gmra.mxu0 %v144
  %v249 = vpop.f32.mrf.mxu0
  %v250 = vadd.f32 %v176, %v249
  %251 = vmatmul.f32.gmra.mxu0 %v145
  %v252 = vpop.f32.mrf.mxu0
  %v253 = vadd.f32 %v176, %v252
  %254 = vmatmul.f32.gmra.mxu0 %v146
  %v255 = vpop.f32.mrf.mxu0
  %v256 = vadd.f32 %v176, %v255
  %257 = vmatmul.f32.gmra.mxu0 %v147
  %v258 = vpop.f32.mrf.mxu0
  %v259 = vadd.f32 %v176, %v258
  %260 = vmatmul.f32.gmra.mxu0 %v148
  %v261 = vpop.f32.mrf.mxu0
  %v262 = vadd.f32 %v176, %v261
  %263 = vmatmul.f32.gmra.mxu0 %v149
  %v264 = vpop.f32.mrf.mxu0
  %v265 = vadd.f32 %v176, %v264
  %266 = vmatmul.f32.gmra.mxu0 %v150
  %v267 = vpop.f32.mrf.mxu0
  %v268 = vadd.f32 %v176, %v267
  %269 = vmatmul.f32.gmra.mxu0 %v151
  %v270 = vpop.f32.mrf.mxu0
  %v271 = vadd.f32 %v176, %v270
  %272 = vmatmul.f32.gmra.mxu0 %v152
  %v273 = vpop.f32.mrf.mxu0
  %v274 = vadd.f32 %v176, %v273
  %275 = vmatmul.f32.gmra.mxu0 %v153
  %v276 = vpop.f32.mrf.mxu0
  %v277 = vadd.f32 %v176, %v276
  %278 = vmatmul.f32.gmra.mxu0 %v154
  %v279 = vpop.f32.mrf.mxu0
  %v280 = vadd.f32 %v176, %v279
  %281 = vmatmul.f32.gmra.mxu0 %v155
  %v282 = vpop.f32.mrf.mxu0
  %v283 = vadd.f32 %v176, %v282
  %284 = vmatmul.f32.gmra.mxu0 %v156
  %v285 = vpop.f32.mrf.mxu0
  %v286 = vadd.f32 %v176, %v285
  %287 = vmatmul.f32.gmra.mxu0 %v157
  %v288 = vpop.f32.mrf.mxu0
  %v289 = vadd.f32 %v176, %v288
  %290 = vdwg.mxu0
  %v291 = vmax.f32 %v196, 0.0
  %v292 = vmax.f32 %v199, 0.0
  %v293 = vmax.f32 %v202, 0.0
  %v294 = vmax.f32 %v205, 0.0
  %v295 = vmax.f32 %v208, 0.0
  %v296 = vmax.f32 %v211, 0.0
  %v297 = vmax.f32 %v214, 0.0
  %v298 = vmax.f32 %v217, 0.0
  %v299 = vmax.f32 %v220, 0.0
  %v300 = vmax.f32 %v223, 0.0
  %v301 = vmax.f32 %v226, 0.0
  %v302 = vmax.f32 %v229, 0.0
  %v303 = vmax.f32 %v232, 0.0
  %v304 = vmax.f32 %v235, 0.0
  %v305 = vmax.f32 %v238, 0.0
  %v306 = vmax.f32 %v241, 0.0
  %v307 = vmax.f32 %v244, 0.0
  %v308 = vmax.f32 %v247, 0.0
  %v309 = vmax.f32 %v250, 0.0
  %v310 = vmax.f32 %v253, 0.0
  %v311 = vmax.f32 %v256, 0.0
  %v312 = vmax.f32 %v259, 0.0
  %v313 = vmax.f32 %v262, 0.0
  %v314 = vmax.f32 %v265, 0.0
  %v315 = vmax.f32 %v268, 0.0
  %v316 = vmax.f32 %v271, 0.0
  %v317 = vmax.f32 %v274, 0.0
  %v318 = vmax.f32 %v277, 0.0
  %v319 = vmax.f32 %v280, 0.0
  %v320 = vmax.f32 %v283, 0.0
  %v321 = vmax.f32 %v286, 0.0
  %v322 = vmax.f32 %v289, 0.0
  %v323 = vld [vmem:[%s5] sm:$0xff]
  %v324 = vld [vmem:[%s5 + $0x8] sm:$0xff]
  %v325 = vld [vmem:[%s5 + $0x10] sm:$0xff]
  %v326 = vld [vmem:[%s5 + $0x18] sm:$0xff]
  %v327 = vld [vmem:[%s5 + $0x20] sm:$0xff]
  %v328 = vld [vmem:[%s5 + $0x28] sm:$0xff]
  %v329 = vld [vmem:[%s5 + $0x30] sm:$0xff]
  %v330 = vld [vmem:[%s5 + $0x38] sm:$0xff]
  %v331 = vld [vmem:[%s5 + $0x40] sm:$0xff]
  %v332 = vld [vmem:[%s5 + $0x48] sm:$0xff]
  %v333 = vld [vmem:[%s5 + $0x50] sm:$0xff]
  %v334 = vld [vmem:[%s5 + $0x58] sm:$0xff]
  %v335 = vld [vmem:[%s5 + $0x60] sm:$0xff]
  %v336 = vld [vmem:[%s5 + $0x68] sm:$0xff]
  %v337 = vld [vmem:[%s5 + $0x70] sm:$0xff]
  %v338 = vld [vmem:[%s5 + $0x78] sm:$0xff]
  %v339 = vld [vmem:[%s6] sm:$0x1]
  %v341 = vperm.slane %v339, 0
  %343 = vmatpush.msra.mxu0 %v338
  %344 = vmatpush.msra.mxu0 %v337
  %345 = vmatpush.msra.mxu0 %v336
  %346 = vmatpush.msra.mxu0 %v335
  %347 = vmatpush.msra.mxu0 %v334
  %348 = vmatpush.msra.mxu0 %v333
  %349 = vmatpush.msra.mxu0 %v332
  %350 = vmatpush.msra.mxu0 %v331
  %351 = vmatpush.msra.mxu0 %v330
  %352 = vmatpush.msra.mxu0 %v329
  %353 = vmatpush.msra.mxu0 %v328
  %354 = vmatpush.msra.mxu0 %v327
  %355 = vmatpush.msra.mxu0 %v326
  %356 = vmatpush.msra.mxu0 %v325
  %357 = vmatpush.msra.mxu0 %v324
  %358 = vmatpush.msra.mxu0 %v323
  %359 = vmatmul.f32.gmra.mxu0 %v291
  %v360 = vpop.f32.mrf.mxu0
  %v361 = vadd.f32 %v341, %v360
  %362 = vmatmul.f32.gmra.mxu0 %v292
  %v363 = vpop.f32.mrf.mxu0
  %v364 = vadd.f32 %v341, %v363
  %365 = vmatmul.f32.gmra.mxu0 %v293
  %v366 = vpop.f32.mrf.mxu0
  %v367 = vadd.f32 %v341, %v366
  %368 = vmatmul.f32.gmra.mxu0 %v294
  %v369 = vpop.f32.mrf.mxu0
  %v370 = vadd.f32 %v341, %v369
  %371 = vmatmul.f32.gmra.mxu0 %v295
  %v372 = vpop.f32.mrf.mxu0
  %v373 = vadd.f32 %v341, %v372
  %374 = vmatmul.f32.gmra.mxu0 %v296
  %v375 = vpop.f32.mrf.mxu0
  %v376 = vadd.f32 %v341, %v375
  %377 = vmatmul.f32.gmra.mxu0 %v297
  %v378 = vpop.f32.mrf.mxu0
  %v379 = vadd.f32 %v341, %v378
  %380 = vmatmul.f32.gmra.mxu0 %v298
  %v381 = vpop.f32.mrf.mxu0
  %v382 = vadd.f32 %v341, %v381
  %383 = vmatmul.f32.gmra.mxu0 %v299
  %v384 = vpop.f32.mrf.mxu0
  %v385 = vadd.f32 %v341, %v384
  %386 = vmatmul.f32.gmra.mxu0 %v300
  %v387 = vpop.f32.mrf.mxu0
  %v388 = vadd.f32 %v341, %v387
  %389 = vmatmul.f32.gmra.mxu0 %v301
  %v390 = vpop.f32.mrf.mxu0
  %v391 = vadd.f32 %v341, %v390
  %392 = vmatmul.f32.gmra.mxu0 %v302
  %v393 = vpop.f32.mrf.mxu0
  %v394 = vadd.f32 %v341, %v393
  %395 = vmatmul.f32.gmra.mxu0 %v303
  %v396 = vpop.f32.mrf.mxu0
  %v397 = vadd.f32 %v341, %v396
  %398 = vmatmul.f32.gmra.mxu0 %v304
  %v399 = vpop.f32.mrf.mxu0
  %v400 = vadd.f32 %v341, %v399
  %401 = vmatmul.f32.gmra.mxu0 %v305
  %v402 = vpop.f32.mrf.mxu0
  %v403 = vadd.f32 %v341, %v402
  %404 = vmatmul.f32.gmra.mxu0 %v306
  %v405 = vpop.f32.mrf.mxu0
  %v406 = vadd.f32 %v341, %v405
  %407 = vmatmul.f32.gmra.mxu0 %v307
  %v408 = vpop.f32.mrf.mxu0
  %v409 = vadd.f32 %v341, %v408
  %410 = vmatmul.f32.gmra.mxu0 %v308
  %v411 = vpop.f32.mrf.mxu0
  %v412 = vadd.f32 %v341, %v411
  %413 = vmatmul.f32.gmra.mxu0 %v309
  %v414 = vpop.f32.mrf.mxu0
  %v415 = vadd.f32 %v341, %v414
  %416 = vmatmul.f32.gmra.mxu0 %v310
  %v417 = vpop.f32.mrf.mxu0
  %v418 = vadd.f32 %v341, %v417
  %419 = vmatmul.f32.gmra.mxu0 %v311
  %v420 = vpop.f32.mrf.mxu0
  %v421 = vadd.f32 %v341, %v420
  %422 = vmatmul.f32.gmra.mxu0 %v312
  %v423 = vpop.f32.mrf.mxu0
  %v424 = vadd.f32 %v341, %v423
  %425 = vmatmul.f32.gmra.mxu0 %v313
  %v426 = vpop.f32.mrf.mxu0
  %v427 = vadd.f32 %v341, %v426
  %428 = vmatmul.f32.gmra.mxu0 %v314
  %v429 = vpop.f32.mrf.mxu0
  %v430 = vadd.f32 %v341, %v429
  %431 = vmatmul.f32.gmra.mxu0 %v315
  %v432 = vpop.f32.mrf.mxu0
  %v433 = vadd.f32 %v341, %v432
  %434 = vmatmul.f32.gmra.mxu0 %v316
  %v435 = vpop.f32.mrf.mxu0
  %v436 = vadd.f32 %v341, %v435
  %437 = vmatmul.f32.gmra.mxu0 %v317
  %v438 = vpop.f32.mrf.mxu0
  %v439 = vadd.f32 %v341, %v438
  %440 = vmatmul.f32.gmra.mxu0 %v318
  %v441 = vpop.f32.mrf.mxu0
  %v442 = vadd.f32 %v341, %v441
  %443 = vmatmul.f32.gmra.mxu0 %v319
  %v444 = vpop.f32.mrf.mxu0
  %v445 = vadd.f32 %v341, %v444
  %446 = vmatmul.f32.gmra.mxu0 %v320
  %v447 = vpop.f32.mrf.mxu0
  %v448 = vadd.f32 %v341, %v447
  %449 = vmatmul.f32.gmra.mxu0 %v321
  %v450 = vpop.f32.mrf.mxu0
  %v451 = vadd.f32 %v341, %v450
  %452 = vmatmul.f32.gmra.mxu0 %v322
  %v453 = vpop.f32.mrf.mxu0
  %v454 = vadd.f32 %v341, %v453
  %455 = vdwg.mxu0
  %456 = vst [vmem:[%s7] sm:$0xff] %v361
  %457 = vst [vmem:[%s7 + $0x8] sm:$0xff] %v364
  %458 = vst [vmem:[%s7 + $0x10] sm:$0xff] %v367
  %459 = vst [vmem:[%s7 + $0x18] sm:$0xff] %v370
  %460 = vst [vmem:[%s7 + $0x20] sm:$0xff] %v373
  %461 = vst [vmem:[%s7 + $0x28] sm:$0xff] %v376
  %462 = vst [vmem:[%s7 + $0x30] sm:$0xff] %v379
  %463 = vst [vmem:[%s7 + $0x38] sm:$0xff] %v382
  %464 = vst [vmem:[%s7 + $0x40] sm:$0xff] %v385
  %465 = vst [vmem:[%s7 + $0x48] sm:$0xff] %v388
  %466 = vst [vmem:[%s7 + $0x50] sm:$0xff] %v391
  %467 = vst [vmem:[%s7 + $0x58] sm:$0xff] %v394
  %468 = vst [vmem:[%s7 + $0x60] sm:$0xff] %v397
  %469 = vst [vmem:[%s7 + $0x68] sm:$0xff] %v400
  %470 = vst [vmem:[%s7 + $0x70] sm:$0xff] %v403
  %471 = vst [vmem:[%s7 + $0x78] sm:$0xff] %v406
  %472 = vst [vmem:[%s7 + $0x80] sm:$0xff] %v409
  %473 = vst [vmem:[%s7 + $0x88] sm:$0xff] %v412
  %474 = vst [vmem:[%s7 + $0x90] sm:$0xff] %v415
  %475 = vst [vmem:[%s7 + $0x98] sm:$0xff] %v418
  %476 = vst [vmem:[%s7 + $0xa0] sm:$0xff] %v421
  %477 = vst [vmem:[%s7 + $0xa8] sm:$0xff] %v424
  %478 = vst [vmem:[%s7 + $0xb0] sm:$0xff] %v427
  %479 = vst [vmem:[%s7 + $0xb8] sm:$0xff] %v430
  %480 = vst [vmem:[%s7 + $0xc0] sm:$0xff] %v433
  %481 = vst [vmem:[%s7 + $0xc8] sm:$0xff] %v436
  %482 = vst [vmem:[%s7 + $0xd0] sm:$0xff] %v439
  %483 = vst [vmem:[%s7 + $0xd8] sm:$0xff] %v442
  %484 = vst [vmem:[%s7 + $0xe0] sm:$0xff] %v445
  %485 = vst [vmem:[%s7 + $0xe8] sm:$0xff] %v448
  %486 = vst [vmem:[%s7 + $0xf0] sm:$0xff] %v451
  %487 = vst [vmem:[%s7 + $0xf8] sm:$0xff] %v454
  // Predicated region
  $region30: #{gin_layer_w_ef_update.6} parent=0 // pred_check
    _
  $region31: #{gin_layer_w_ef_update.6} parent=0 // pred_check_branch
    %489 = sbr.rel (0) target = $region33
  $region32: #{gin_layer_w_ef_update.6} parent=0 // pred_region
    _
  $region33: #{gin_layer_w_ef_update.6} parent=0 // pred_fallthru
    _
  // Predicated region
  $region34: #{gin_layer_w_ef_update.6} parent=0 // pred_check
    _
  $region35: #{gin_layer_w_ef_update.6} parent=0 // pred_check_branch
    %491 = sbr.rel (0) target = $region37
  $region36: #{gin_layer_w_ef_update.6} parent=0 // pred_region
    _
  $region37: #{gin_layer_w_ef_update.6} parent=0 // pred_fallthru
    _

// kernel: gin_layer_w_ef_update.4
$region0: #{gin_layer_w_ef_update.4}
  #allocation0 [shape = 'u32[]', space=smem, size = 0x4, offset = 0x4, fixed_abs, tag = 'smem constant byte address 0x4 - core index']
  #allocation1 [shape = 'u32[72,128]{1,0:T(1,128)}', space=vmem, size = 0x9000, scoped, tag = 'internal scratch']
  %s0 = inlined_call_operand.vmem [shape: s32[256,1], index: 0, kind: input, shape index: {}]
  %s1 = inlined_call_operand.vmem [shape: f32[256,128], index: 1, kind: input, shape index: {}]
  %s2 = inlined_call_operand.vmem [shape: f32[256,128], index: 2, kind: input, shape index: {}]
  %s3 = inlined_call_operand.vmem [shape: f32[256,128], index: 3, kind: output, shape index: {}]
  %s4 = sld [smem:[#allocation0]]
  $region53: #{gin_layer_w_ef_update.4} parent=0
    _
  %s6 = ssub.s32 1, %s4
  %s7 = scalar_select 0, %s6, %s4
  loop: start=0, step=1, limit=4
  $region2: #{gin_layer_w_ef_update.4} parent=0 // loop_pre_header
    _
  $region3: #{gin_layer_w_ef_update.4} parent=0 // loop_header
    %s9 = sphi 0, %s13
    %p10 = scmp.ge.s32.totalorder %s9, 4
    %s16 = sphi 0, %s28
    %s17 = sphi 0, %s24
    %s18 = sphi 0, %s16
    %s19 = sphi 0, %s17
    %s20 = sphi 0, %s18
    %s21 = sphi 0, %s19
    %s31 = sphi 0, %s33
    %s34 = sphi 0, %s31
    %s35 = sphi 0, %s34
    %s51 = sphi 0, %s35
    %s57 = sphi 0, %s59
    %s60 = sphi 0, %s57
    %s61 = sphi 0, %s60
    %s77 = sphi 0, %s61
    %s83 = sphi 0, %s85
    %s86 = sphi 0, %s83
    %s87 = sphi 0, %s86
    %s103 = sphi 0, %s87
    %s109 = sphi 0, %s111
    %s112 = sphi 0, %s109
    %s113 = sphi 0, %s112
    %s129 = sphi 0, %s113
  $region4: #{gin_layer_w_ef_update.4} parent=0 // loop_header_branch
    %12 = sbr.rel (%p10) target = $region8
  $region5: #{gin_layer_w_ef_update.4} parent=0 // loop_body
    %s14 = ssub.s32 %s9, 1
    %s15 = ssub.s32 %s9, 2
    %s22 = sadd.s32 1, %s17
    %p23 = scmp.ge.s32.totalorder %s22, 2
    %s24 = scalar_select %p23, 0, %s22
    %s25 = sadd.s32 1, %s16
    %s26 = scalar_select %p23, %s25, %s16
    %p27 = scmp.ge.s32.totalorder %s26, 1
    %s28 = scalar_select %p27, 0, %s26
    %s29 = ssub.s32 %s16, %s28
    %p30 = scmp.eq.s32.totalorder %s29, 0
    %s32 = sadd.s32 %s31, 1
    %s33 = scalar_select %p30, %s31, %s32
    %p36 = pneg %p30
    %p37 = scmp.eq.s32.totalorder %s9, 1
    %p38 = por %p36, %p37
    %p39 = scmp.ne.s32.totalorder %s31, %s34
    %p40 = scmp.eq.s32.totalorder %s9, 0
    %p41 = por %p39, %p40
    %p42 = scmp.ne.s32.totalorder %s31, %s34
    %p43 = scmp.eq.s32.totalorder %s14, 1
    %p44 = por %p42, %p43
    %p45 = scmp.ne.s32.totalorder %s34, %s35
    %p46 = scmp.eq.s32.totalorder %s14, 0
    %p47 = por %p45, %p46
    %p48 = scmp.ne.s32.totalorder %s34, %s35
    %p49 = scmp.eq.s32.totalorder %s15, 1
    %p50 = por %p48, %p49
    %p52 = scmp.ne.s32.totalorder %s35, %s51
    %p53 = scmp.eq.s32.totalorder %s15, 0
    %p54 = por %p52, %p53
    %s55 = ssub.s32 %s17, %s24
    %p56 = scmp.eq.s32.totalorder %s55, 0
    %s58 = sadd.s32 %s57, 1
    %s59 = scalar_select %p56, %s57, %s58
    %p62 = pneg %p56
    %p63 = scmp.eq.s32.totalorder %s9, 1
    %p64 = por %p62, %p63
    %p65 = scmp.ne.s32.totalorder %s57, %s60
    %p66 = scmp.eq.s32.totalorder %s9, 0
    %p67 = por %p65, %p66
    %p68 = scmp.ne.s32.totalorder %s57, %s60
    %p69 = scmp.eq.s32.totalorder %s14, 1
    %p70 = por %p68, %p69
    %p71 = scmp.ne.s32.totalorder %s60, %s61
    %p72 = scmp.eq.s32.totalorder %s14, 0
    %p73 = por %p71, %p72
    %p74 = scmp.ne.s32.totalorder %s60, %s61
    %p75 = scmp.eq.s32.totalorder %s15, 1
    %p76 = por %p74, %p75
    %p78 = scmp.ne.s32.totalorder %s61, %s77
    %p79 = scmp.eq.s32.totalorder %s15, 0
    %p80 = por %p78, %p79
    %s81 = ssub.s32 %s16, %s28
    %p82 = scmp.eq.s32.totalorder %s81, 0
    %s84 = sadd.s32 %s83, 1
    %s85 = scalar_select %p82, %s83, %s84
    %p88 = pneg %p82
    %p89 = scmp.eq.s32.totalorder %s9, 1
    %p90 = por %p88, %p89
    %p91 = scmp.ne.s32.totalorder %s83, %s86
    %p92 = scmp.eq.s32.totalorder %s9, 0
    %p93 = por %p91, %p92
    %p94 = scmp.ne.s32.totalorder %s83, %s86
    %p95 = scmp.eq.s32.totalorder %s14, 1
    %p96 = por %p94, %p95
    %p97 = scmp.ne.s32.totalorder %s86, %s87
    %p98 = scmp.eq.s32.totalorder %s14, 0
    %p99 = por %p97, %p98
    %p100 = scmp.ne.s32.totalorder %s86, %s87
    %p101 = scmp.eq.s32.totalorder %s15, 1
    %p102 = por %p100, %p101
    %p104 = scmp.ne.s32.totalorder %s87, %s103
    %p105 = scmp.eq.s32.totalorder %s15, 0
    %p106 = por %p104, %p105
    %s107 = ssub.s32 %s16, %s28
    %p108 = scmp.eq.s32.totalorder %s107, 0
    %s110 = sadd.s32 %s109, 1
    %s111 = scalar_select %p108, %s109, %s110
    %p114 = pneg %p108
    %p115 = scmp.eq.s32.totalorder %s9, 1
    %p116 = por %p114, %p115
    %p117 = scmp.ne.s32.totalorder %s109, %s112
    %p118 = scmp.eq.s32.totalorder %s9, 0
    %p119 = por %p117, %p118
    %p120 = scmp.ne.s32.totalorder %s109, %s112
    %p121 = scmp.eq.s32.totalorder %s14, 1
    %p122 = por %p120, %p121
    %p123 = scmp.ne.s32.totalorder %s112, %s113
    %p124 = scmp.eq.s32.totalorder %s14, 0
    %p125 = por %p123, %p124
    %p126 = scmp.ne.s32.totalorder %s112, %s113
    %p127 = scmp.eq.s32.totalorder %s15, 1
    %p128 = por %p126, %p127
    %p130 = scmp.ne.s32.totalorder %s113, %s129
    %p131 = scmp.eq.s32.totalorder %s15, 0
    %p132 = por %p130, %p131
    %p133 = scmp.le.s32.totalorder 1, %s9
    %p134 = scmp.lt.s32.totalorder %s9, 3
    %p135 = pnand %p133, %p134
    %p136 = pneg %p135
    // Predicated region
    $region9: #{gin_layer_w_ef_update.4} parent=5 // pred_check
      _
    $region10: #{gin_layer_w_ef_update.4} parent=5 // pred_check_branch
      %138 = sbr.rel (%p135) target = $region12
    $region11: #{gin_layer_w_ef_update.4} parent=5 // pred_region
      %s139 = ssub.s32 %s9, 1
      // Predicated region
      $region13: #{gin_layer_w_ef_update.4} parent=11 // pred_check
        %p140 = pneg %p47
      $region14: #{gin_layer_w_ef_update.4} parent=11 // pred_check_branch
        %142 = sbr.rel (%p140) target = $region16
      $region15: #{gin_layer_w_ef_update.4} parent=11 // pred_region
        %s143 = smul.u32 32, %s18
        %p144 = scmp.lt.s32.totalorder %s143, 31
        %s145 = scalar_select %p144, %s143, 31
        %s146 = smul.addr %s145, 8
        %s147 = scalar_lea.vmem %s0, %s146
        %s148 = smul.u32 32, %s18
      $region16: #{gin_layer_w_ef_update.4} parent=11 // pred_fallthru
        _
      // Predicated region
      $region17: #{gin_layer_w_ef_update.4} parent=11 // pred_check
        %p149 = pneg %p99
      $region18: #{gin_layer_w_ef_update.4} parent=11 // pred_check_branch
        %151 = sbr.rel (%p149) target = $region20
      $region19: #{gin_layer_w_ef_update.4} parent=11 // pred_region
        %s152 = smul.u32 32, %s18
        %p153 = scmp.lt.s32.totalorder %s152, 31
        %s154 = scalar_select %p153, %s152, 31
        %s155 = smul.addr %s154, 8
        %s156 = scalar_lea.vmem %s2, %s155
        %s157 = smul.u32 32, %s18
      $region20: #{gin_layer_w_ef_update.4} parent=11 // pred_fallthru
        _
    $region12: #{gin_layer_w_ef_update.4} parent=5 // pred_fallthru
      _
    %p158 = scmp.lt.s32.totalorder %s9, 2
    // Predicated region
    $region21: #{gin_layer_w_ef_update.4} parent=5 // pred_check
      %p159 = pneg %p158
    $region22: #{gin_layer_w_ef_update.4} parent=5 // pred_check_branch
      %161 = sbr.rel (%p159) target = $region24
    $region23: #{gin_layer_w_ef_update.4} parent=5 // pred_region
      // Predicated region
      $region25: #{gin_layer_w_ef_update.4} parent=23 // pred_check
        %p162 = pneg %p67
      $region26: #{gin_layer_w_ef_update.4} parent=23 // pred_check_branch
        %164 = sbr.rel (%p162) target = $region28
      $region27: #{gin_layer_w_ef_update.4} parent=23 // pred_region
        %s165 = smul.u32 16, %s17
        %p166 = scmp.lt.s32.totalorder %s165, 31
        %s167 = scalar_select %p166, %s165, 31
        %s168 = smul.addr %s167, 8
        %s169 = scalar_lea.vmem %s1, %s168
        %s170 = smul.u32 16, %s17
      $region28: #{gin_layer_w_ef_update.4} parent=23 // pred_fallthru
        _
    $region24: #{gin_layer_w_ef_update.4} parent=5 // pred_fallthru
      _
    %p171 = scmp.le.s32.totalorder 1, %s9
    %p172 = scmp.lt.s32.totalorder %s9, 3
    %p173 = pnand %p171, %p172
    %p174 = pneg %p173
    // Predicated region
    $region29: #{gin_layer_w_ef_update.4} parent=5 // pred_check
      _
    $region30: #{gin_layer_w_ef_update.4} parent=5 // pred_check_branch
      %176 = sbr.rel (%p173) target = $region32
    $region31: #{gin_layer_w_ef_update.4} parent=5 // pred_region
      %s177 = ssub.s32 %s9, 1
      %s178 = smul.u32 32, %s18
      %p179 = scmp.lt.s32.totalorder %s178, 31
      %s180 = scalar_select %p179, %s178, 31
      %s181 = smul.addr %s180, 8
      %s182 = scalar_lea.vmem %s0, %s181
      %p183 = pneg %p47
      %p184 = pneg %p44
      %s185 = smul.u32 16, %s19
      %p186 = scmp.lt.s32.totalorder %s185, 31
      %s187 = scalar_select %p186, %s185, 31
      %s188 = smul.addr %s187, 8
      %s189 = scalar_lea.vmem %s1, %s188
      %p190 = pneg %p73
      %p191 = pneg %p70
      %s192 = smul.u32 32, %s18
      %p193 = scmp.lt.s32.totalorder %s192, 31
      %s194 = scalar_select %p193, %s192, 31
      %s195 = smul.addr %s194, 8
      %s196 = scalar_lea.vmem %s2, %s195
      %p197 = pneg %p99
      %p198 = pneg %p96
      %p199 = pneg %p125
      %p200 = pneg %p122
      %s201 = smul.u32 32, %s18
      %p202 = scmp.lt.s32.totalorder %s201, 31
      %s203 = scalar_select %p202, %s201, 31
      %s204 = smul.addr %s203, 8
      %s205 = scalar_lea.vmem %s3, %s204
      %s206 = smul.u32 32, %s18
      %p207 = scmp.lt.s32.totalorder %s206, 31
      %s208 = scalar_select %p207, %s206, 31
      %s209 = smul.addr %s208, 8
      %s210 = scalar_lea.vmem %s0, %s209
      %s211 = smul.u32 32, %s18
      %s212 = smul.u32 16, %s19
      %p213 = scmp.lt.s32.totalorder %s212, 31
      %s214 = scalar_select %p213, %s212, 31
      %s215 = smul.addr %s214, 8
      %s216 = scalar_lea.vmem %s1, %s215
      %s217 = smul.u32 16, %s19
      %s218 = smul.u32 32, %s18
      %p219 = scmp.lt.s32.totalorder %s218, 31
      %s220 = scalar_select %p219, %s218, 31
      %s221 = smul.addr %s220, 8
      %s222 = scalar_lea.vmem %s2, %s221
      %s223 = smul.u32 32, %s18
      %s224 = smul.u32 32, %s18
      %p225 = scmp.lt.s32.totalorder %s224, 31
      %s226 = scalar_select %p225, %s224, 31
      %s227 = smul.addr %s226, 8
      %s228 = scalar_lea.vmem %s3, %s227
      %s229 = smul.u32 32, %s18
      %p230 = scmp.eq.s32.totalorder %s19, 0
      // Predicated region
      $region33: #{gin_layer_w_ef_update.4} parent=31 // pred_check
        %p231 = pneg %p230
      $region34: #{gin_layer_w_ef_update.4} parent=31 // pred_check_branch
        %233 = sbr.rel (%p231) target = $region36
      $region35: #{gin_layer_w_ef_update.4} parent=31 // pred_region
        %234 = vst [vmem:[%s228] sm:$0xff] 0.0
        %235 = vst [vmem:[%s228 + $0x8] sm:$0xff] 0.0
        %236 = vst [vmem:[%s228 + $0x10] sm:$0xff] 0.0
        %237 = vst [vmem:[%s228 + $0x18] sm:$0xff] 0.0
        %238 = vst [vmem:[%s228 + $0x20] sm:$0xff] 0.0
        %239 = vst [vmem:[%s228 + $0x28] sm:$0xff] 0.0
        %240 = vst [vmem:[%s228 + $0x30] sm:$0xff] 0.0
        %241 = vst [vmem:[%s228 + $0x38] sm:$0xff] 0.0
        %242 = vst [vmem:[%s228 + $0x40] sm:$0xff] 0.0
        %243 = vst [vmem:[%s228 + $0x48] sm:$0xff] 0.0
        %244 = vst [vmem:[%s228 + $0x50] sm:$0xff] 0.0
        %245 = vst [vmem:[%s228 + $0x58] sm:$0xff] 0.0
        %246 = vst [vmem:[%s228 + $0x60] sm:$0xff] 0.0
        %247 = vst [vmem:[%s228 + $0x68] sm:$0xff] 0.0
        %248 = vst [vmem:[%s228 + $0x70] sm:$0xff] 0.0
        %249 = vst [vmem:[%s228 + $0x78] sm:$0xff] 0.0
        %250 = vst [vmem:[%s228 + $0x80] sm:$0xff] 0.0
        %251 = vst [vmem:[%s228 + $0x88] sm:$0xff] 0.0
        %252 = vst [vmem:[%s228 + $0x90] sm:$0xff] 0.0
        %253 = vst [vmem:[%s228 + $0x98] sm:$0xff] 0.0
        %254 = vst [vmem:[%s228 + $0xa0] sm:$0xff] 0.0
        %255 = vst [vmem:[%s228 + $0xa8] sm:$0xff] 0.0
        %256 = vst [vmem:[%s228 + $0xb0] sm:$0xff] 0.0
        %257 = vst [vmem:[%s228 + $0xb8] sm:$0xff] 0.0
        %258 = vst [vmem:[%s228 + $0xc0] sm:$0xff] 0.0
        %259 = vst [vmem:[%s228 + $0xc8] sm:$0xff] 0.0
        %260 = vst [vmem:[%s228 + $0xd0] sm:$0xff] 0.0
        %261 = vst [vmem:[%s228 + $0xd8] sm:$0xff] 0.0
        %262 = vst [vmem:[%s228 + $0xe0] sm:$0xff] 0.0
        %263 = vst [vmem:[%s228 + $0xe8] sm:$0xff] 0.0
        %264 = vst [vmem:[%s228 + $0xf0] sm:$0xff] 0.0
        %265 = vst [vmem:[%s228 + $0xf8] sm:$0xff] 0.0
      $region36: #{gin_layer_w_ef_update.4} parent=31 // pred_fallthru
        _
      %v266 = vlaneseq
      %v267 = vand.u32 %v266, 127
      %s268 = smul.u32 %s19, 128
      %v269 = vstv %s268
      %v270 = vadd.s32 %v267, %v269
      %v271 = vld [vmem:[%s210] sm:$0xff]
      %v272 = vld [vmem:[%s210 + $0x8] sm:$0xff]
      %v273 = vld [vmem:[%s210 + $0x10] sm:$0xff]
      %v274 = vld [vmem:[%s210 + $0x18] sm:$0xff]
      %v275 = vld [vmem:[%s210 + $0x20] sm:$0xff]
      %v276 = vld [vmem:[%s210 + $0x28] sm:$0xff]
      %v277 = vld [vmem:[%s210 + $0x30] sm:$0xff]
      %v278 = vld [vmem:[%s210 + $0x38] sm:$0xff]
      %v279 = vld [vmem:[%s210 + $0x40] sm:$0xff]
      %v280 = vld [vmem:[%s210 + $0x48] sm:$0xff]
      %v281 = vld [vmem:[%s210 + $0x50] sm:$0xff]
      %v282 = vld [vmem:[%s210 + $0x58] sm:$0xff]
      %v283 = vld [vmem:[%s210 + $0x60] sm:$0xff]
      %v284 = vld [vmem:[%s210 + $0x68] sm:$0xff]
      %v285 = vld [vmem:[%s210 + $0x70] sm:$0xff]
      %v286 = vld [vmem:[%s210 + $0x78] sm:$0xff]
      %v287 = vld [vmem:[%s210 + $0x80] sm:$0xff]
      %v288 = vld [vmem:[%s210 + $0x88] sm:$0xff]
      %v289 = vld [vmem:[%s210 + $0x90] sm:$0xff]
      %v290 = vld [vmem:[%s210 + $0x98] sm:$0xff]
      %v291 = vld [vmem:[%s210 + $0xa0] sm:$0xff]
      %v292 = vld [vmem:[%s210 + $0xa8] sm:$0xff]
      %v293 = vld [vmem:[%s210 + $0xb0] sm:$0xff]
      %v294 = vld [vmem:[%s210 + $0xb8] sm:$0xff]
      %v295 = vld [vmem:[%s210 + $0xc0] sm:$0xff]
      %v296 = vld [vmem:[%s210 + $0xc8] sm:$0xff]
      %v297 = vld [vmem:[%s210 + $0xd0] sm:$0xff]
      %v298 = vld [vmem:[%s210 + $0xd8] sm:$0xff]
      %v299 = vld [vmem:[%s210 + $0xe0] sm:$0xff]
      %v300 = vld [vmem:[%s210 + $0xe8] sm:$0xff]
      %v301 = vld [vmem:[%s210 + $0xf0] sm:$0xff]
      %v302 = vld [vmem:[%s210 + $0xf8] sm:$0xff]
      %303 = vset.pattern.permute.xlu0 0
      %304 = vperm.xlu0 %303, %v271
      %v305 = vpop.permute.xlu0 %304
      %306 = vset.pattern.permute.xlu0 0
      %307 = vperm.xlu0 %306, %v272
      %v308 = vpop.permute.xlu0 %307
      %309 = vset.pattern.permute.xlu0 0
      %310 = vperm.xlu0 %309, %v273
      %v311 = vpop.permute.xlu0 %310
      %312 = vset.pattern.permute.xlu0 0
      %313 = vperm.xlu0 %312, %v274
      %v314 = vpop.permute.xlu0 %313
      %315 = vset.pattern.permute.xlu0 0
      %316 = vperm.xlu0 %315, %v275
      %v317 = vpop.permute.xlu0 %316
      %318 = vset.pattern.permute.xlu0 0
      %319 = vperm.xlu0 %318, %v276
      %v320 = vpop.permute.xlu0 %319
      %321 = vset.pattern.permute.xlu0 0
      %322 = vperm.xlu0 %321, %v277
      %v323 = vpop.permute.xlu0 %322
      %324 = vset.pattern.permute.xlu0 0
      %325 = vperm.xlu0 %324, %v278
      %v326 = vpop.permute.xlu0 %325
      %327 = vset.pattern.permute.xlu0 0
      %328 = vperm.xlu0 %327, %v279
      %v329 = vpop.permute.xlu0 %328
      %330 = vset.pattern.permute.xlu0 0
      %331 = vperm.xlu0 %330, %v280
      %v332 = vpop.permute.xlu0 %331
      %333 = vset.pattern.permute.xlu0 0
      %334 = vperm.xlu0 %333, %v281
      %v335 = vpop.permute.xlu0 %334
      %336 = vset.pattern.permute.xlu0 0
      %337 = vperm.xlu0 %336, %v282
      %v338 = vpop.permute.xlu0 %337
      %339 = vset.pattern.permute.xlu0 0
      %340 = vperm.xlu0 %339, %v283
      %v341 = vpop.permute.xlu0 %340
      %342 = vset.pattern.permute.xlu0 0
      %343 = vperm.xlu0 %342, %v284
      %v344 = vpop.permute.xlu0 %343
      %345 = vset.pattern.permute.xlu0 0
      %346 = vperm.xlu0 %345, %v285
      %v347 = vpop.permute.xlu0 %346
      %348 = vset.pattern.permute.xlu0 0
      %349 = vperm.xlu0 %348, %v286
      %v350 = vpop.permute.xlu0 %349
      %351 = vset.pattern.permute.xlu0 0
      %352 = vperm.xlu0 %351, %v287
      %v353 = vpop.permute.xlu0 %352
      %354 = vset.pattern.permute.xlu0 0
      %355 = vperm.xlu0 %354, %v288
      %v356 = vpop.permute.xlu0 %355
      %357 = vset.pattern.permute.xlu0 0
      %358 = vperm.xlu0 %357, %v289
      %v359 = vpop.permute.xlu0 %358
      %360 = vset.pattern.permute.xlu0 0
      %361 = vperm.xlu0 %360, %v290
      %v362 = vpop.permute.xlu0 %361
      %363 = vset.pattern.permute.xlu0 0
      %364 = vperm.xlu0 %363, %v291
      %v365 = vpop.permute.xlu0 %364
      %366 = vset.pattern.permute.xlu0 0
      %367 = vperm.xlu0 %366, %v292
      %v368 = vpop.permute.xlu0 %367
      %369 = vset.pattern.permute.xlu0 0
      %370 = vperm.xlu0 %369, %v293
      %v371 = vpop.permute.xlu0 %370
      %372 = vset.pattern.permute.xlu0 0
      %373 = vperm.xlu0 %372, %v294
      %v374 = vpop.permute.xlu0 %373
      %375 = vset.pattern.permute.xlu0 0
      %376 = vperm.xlu0 %375, %v295
      %v377 = vpop.permute.xlu0 %376
      %378 = vset.pattern.permute.xlu0 0
      %379 = vperm.xlu0 %378, %v296
      %v380 = vpop.permute.xlu0 %379
      %381 = vset.pattern.permute.xlu0 0
      %382 = vperm.xlu0 %381, %v297
      %v383 = vpop.permute.xlu0 %382
      %384 = vset.pattern.permute.xlu0 0
      %385 = vperm.xlu0 %384, %v298
      %v386 = vpop.permute.xlu0 %385
      %387 = vset.pattern.permute.xlu0 0
      %388 = vperm.xlu0 %387, %v299
      %v389 = vpop.permute.xlu0 %388
      %390 = vset.pattern.permute.xlu0 0
      %391 = vperm.xlu0 %390, %v300
      %v392 = vpop.permute.xlu0 %391
      %393 = vset.pattern.permute.xlu0 0
      %394 = vperm.xlu0 %393, %v301
      %v395 = vpop.permute.xlu0 %394
      %396 = vset.pattern.permute.xlu0 0
      %397 = vperm.xlu0 %396, %v302
      %v398 = vpop.permute.xlu0 %397
      %vm399 = vcmp.eq.s32.totalorder %v270, %v305
      %vm400 = vcmp.eq.s32.totalorder %v270, %v308
      %vm401 = vcmp.eq.s32.totalorder %v270, %v311
      %vm402 = vcmp.eq.s32.totalorder %v270, %v314
      %vm403 = vcmp.eq.s32.totalorder %v270, %v317
      %vm404 = vcmp.eq.s32.totalorder %v270, %v320
      %vm405 = vcmp.eq.s32.totalorder %v270, %v323
      %vm406 = vcmp.eq.s32.totalorder %v270, %v326
      %vm407 = vcmp.eq.s32.totalorder %v270, %v329
      %vm408 = vcmp.eq.s32.totalorder %v270, %v332
      %vm409 = vcmp.eq.s32.totalorder %v270, %v335
      %vm410 = vcmp.eq.s32.totalorder %v270, %v338
      %vm411 = vcmp.eq.s32.totalorder %v270, %v341
      %vm412 = vcmp.eq.s32.totalorder %v270, %v344
      %vm413 = vcmp.eq.s32.totalorder %v270, %v347
      %vm414 = vcmp.eq.s32.totalorder %v270, %v350
      %vm415 = vcmp.eq.s32.totalorder %v270, %v353
      %vm416 = vcmp.eq.s32.totalorder %v270, %v356
      %vm417 = vcmp.eq.s32.totalorder %v270, %v359
      %vm418 = vcmp.eq.s32.totalorder %v270, %v362
      %vm419 = vcmp.eq.s32.totalorder %v270, %v365
      %vm420 = vcmp.eq.s32.totalorder %v270, %v368
      %vm421 = vcmp.eq.s32.totalorder %v270, %v371
      %vm422 = vcmp.eq.s32.totalorder %v270, %v374
      %vm423 = vcmp.eq.s32.totalorder %v270, %v377
      %vm424 = vcmp.eq.s32.totalorder %v270, %v380
      %vm425 = vcmp.eq.s32.totalorder %v270, %v383
      %vm426 = vcmp.eq.s32.totalorder %v270, %v386
      %vm427 = vcmp.eq.s32.totalorder %v270, %v389
      %vm428 = vcmp.eq.s32.totalorder %v270, %v392
      %vm429 = vcmp.eq.s32.totalorder %v270, %v395
      %vm430 = vcmp.eq.s32.totalorder %v270, %v398
      %v431 = vsel %vm399, 1, 0
      %v432 = vsel %vm400, 1, 0
      %v433 = vsel %vm401, 1, 0
      %v434 = vsel %vm402, 1, 0
      %v435 = vsel %vm403, 1, 0
      %v436 = vsel %vm404, 1, 0
      %v437 = vsel %vm405, 1, 0
      %v438 = vsel %vm406, 1, 0
      %v439 = vsel %vm407, 1, 0
      %v440 = vsel %vm408, 1, 0
      %v441 = vsel %vm409, 1, 0
      %v442 = vsel %vm410, 1, 0
      %v443 = vsel %vm411, 1, 0
      %v444 = vsel %vm412, 1, 0
      %v445 = vsel %vm413, 1, 0
      %v446 = vsel %vm414, 1, 0
      %v447 = vsel %vm415, 1, 0
      %v448 = vsel %vm416, 1, 0
      %v449 = vsel %vm417, 1, 0
      %v450 = vsel %vm418, 1, 0
      %v451 = vsel %vm419, 1, 0
      %v452 = vsel %vm420, 1, 0
      %v453 = vsel %vm421, 1, 0
      %v454 = vsel %vm422, 1, 0
      %v455 = vsel %vm423, 1, 0
      %v456 = vsel %vm424, 1, 0
      %v457 = vsel %vm425, 1, 0
      %v458 = vsel %vm426, 1, 0
      %v459 = vsel %vm427, 1, 0
      %v460 = vsel %vm428, 1, 0
      %v461 = vsel %vm429, 1, 0
      %v462 = vsel %vm430, 1, 0
      %v463 = vcvt.s32.f32 %v431
      %v464 = vcvt.s32.f32 %v432
      %v465 = vcvt.s32.f32 %v433
      %v466 = vcvt.s32.f32 %v434
      %v467 = vcvt.s32.f32 %v435
      %v468 = vcvt.s32.f32 %v436
      %v469 = vcvt.s32.f32 %v437
      %v470 = vcvt.s32.f32 %v438
      %v471 = vcvt.s32.f32 %v439
      %v472 = vcvt.s32.f32 %v440
      %v473 = vcvt.s32.f32 %v441
      %v474 = vcvt.s32.f32 %v442
      %v475 = vcvt.s32.f32 %v443
      %v476 = vcvt.s32.f32 %v444
      %v477 = vcvt.s32.f32 %v445
      %v478 = vcvt.s32.f32 %v446
      %v479 = vcvt.s32.f32 %v447
      %v480 = vcvt.s32.f32 %v448
      %v481 = vcvt.s32.f32 %v449
      %v482 = vcvt.s32.f32 %v450
      %v483 = vcvt.s32.f32 %v451
      %v484 = vcvt.s32.f32 %v452
      %v485 = vcvt.s32.f32 %v453
      %v486 = vcvt.s32.f32 %v454
      %v487 = vcvt.s32.f32 %v455
      %v488 = vcvt.s32.f32 %v456
      %v489 = vcvt.s32.f32 %v457
      %v490 = vcvt.s32.f32 %v458
      %v491 = vcvt.s32.f32 %v459
      %v492 = vcvt.s32.f32 %v460
      %v493 = vcvt.s32.f32 %v461
      %v494 = vcvt.s32.f32 %v462
      %v495 = vpack.c.bf16 %v464, %v463
      %v496 = vpack.c.bf16 %v466, %v465
      %v497 = vpack.c.bf16 %v468, %v467
      %v498 = vpack.c.bf16 %v470, %v469
      %v499 = vpack.c.bf16 %v472, %v471
      %v500 = vpack.c.bf16 %v474, %v473
      %v501 = vpack.c.bf16 %v476, %v475
      %v502 = vpack.c.bf16 %v478, %v477
      %v503 = vpack.c.bf16 %v480, %v479
      %v504 = vpack.c.bf16 %v482, %v481
      %v505 = vpack.c.bf16 %v484, %v483
      %v506 = vpack.c.bf16 %v486, %v485
      %v507 = vpack.c.bf16 %v488, %v487
      %v508 = vpack.c.bf16 %v490, %v489
      %v509 = vpack.c.bf16 %v492, %v491
      %v510 = vpack.c.bf16 %v494, %v493
      %v511 = vld [vmem:[%s228] sm:$0xff]
      %v512 = vld [vmem:[%s228 + $0x8] sm:$0xff]
      %v513 = vld [vmem:[%s228 + $0x10] sm:$0xff]
      %v514 = vld [vmem:[%s228 + $0x18] sm:$0xff]
      %v515 = vld [vmem:[%s228 + $0x20] sm:$0xff]
      %v516 = vld [vmem:[%s228 + $0x28] sm:$0xff]
      %v517 = vld [vmem:[%s228 + $0x30] sm:$0xff]
      %v518 = vld [vmem:[%s228 + $0x38] sm:$0xff]
      %v519 = vld [vmem:[%s228 + $0x40] sm:$0xff]
      %v520 = vld [vmem:[%s228 + $0x48] sm:$0xff]
      %v521 = vld [vmem:[%s228 + $0x50] sm:$0xff]
      %v522 = vld [vmem:[%s228 + $0x58] sm:$0xff]
      %v523 = vld [vmem:[%s228 + $0x60] sm:$0xff]
      %v524 = vld [vmem:[%s228 + $0x68] sm:$0xff]
      %v525 = vld [vmem:[%s228 + $0x70] sm:$0xff]
      %v526 = vld [vmem:[%s228 + $0x78] sm:$0xff]
      %v527 = vld [vmem:[%s228 + $0x80] sm:$0xff]
      %v528 = vld [vmem:[%s228 + $0x88] sm:$0xff]
      %v529 = vld [vmem:[%s228 + $0x90] sm:$0xff]
      %v530 = vld [vmem:[%s228 + $0x98] sm:$0xff]
      %v531 = vld [vmem:[%s228 + $0xa0] sm:$0xff]
      %v532 = vld [vmem:[%s228 + $0xa8] sm:$0xff]
      %v533 = vld [vmem:[%s228 + $0xb0] sm:$0xff]
      %v534 = vld [vmem:[%s228 + $0xb8] sm:$0xff]
      %v535 = vld [vmem:[%s228 + $0xc0] sm:$0xff]
      %v536 = vld [vmem:[%s228 + $0xc8] sm:$0xff]
      %v537 = vld [vmem:[%s228 + $0xd0] sm:$0xff]
      %v538 = vld [vmem:[%s228 + $0xd8] sm:$0xff]
      %v539 = vld [vmem:[%s228 + $0xe0] sm:$0xff]
      %v540 = vld [vmem:[%s228 + $0xe8] sm:$0xff]
      %v541 = vld [vmem:[%s228 + $0xf0] sm:$0xff]
      %v542 = vld [vmem:[%s228 + $0xf8] sm:$0xff]
      %v543 = vld [vmem:[%s216] sm:$0xff]
      %v544 = vld [vmem:[%s216 + $0x8] sm:$0xff]
      %v545 = vld [vmem:[%s216 + $0x10] sm:$0xff]
      %v546 = vld [vmem:[%s216 + $0x18] sm:$0xff]
      %v547 = vld [vmem:[%s216 + $0x20] sm:$0xff]
      %v548 = vld [vmem:[%s216 + $0x28] sm:$0xff]
      %v549 = vld [vmem:[%s216 + $0x30] sm:$0xff]
      %v550 = vld [vmem:[%s216 + $0x38] sm:$0xff]
      %v551 = vld [vmem:[%s216 + $0x40] sm:$0xff]
      %v552 = vld [vmem:[%s216 + $0x48] sm:$0xff]
      %v553 = vld [vmem:[%s216 + $0x50] sm:$0xff]
      %v554 = vld [vmem:[%s216 + $0x58] sm:$0xff]
      %v555 = vld [vmem:[%s216 + $0x60] sm:$0xff]
      %v556 = vld [vmem:[%s216 + $0x68] sm:$0xff]
      %v557 = vld [vmem:[%s216 + $0x70] sm:$0xff]
      %v558 = vld [vmem:[%s216 + $0x78] sm:$0xff]
      %v559 = vpack.c.bf16 %v544, %v543
      %v560 = vpack.c.bf16 %v546, %v545
      %v561 = vpack.c.bf16 %v548, %v547
      %v562 = vpack.c.bf16 %v550, %v549
      %v563 = vpack.c.bf16 %v552, %v551
      %v564 = vpack.c.bf16 %v554, %v553
      %v565 = vpack.c.bf16 %v556, %v555
      %v566 = vpack.c.bf16 %v558, %v557
      %567 = vmatpush.bf16.msra.mxu0 %v566
      %568 = vmatpush.bf16.msra.mxu0 %v565
      %569 = vmatpush.bf16.msra.mxu0 %v564
      %570 = vmatpush.bf16.msra.mxu0 %v563
      %571 = vmatpush.bf16.msra.mxu0 %v562
      %572 = vmatpush.bf16.msra.mxu0 %v561
      %573 = vmatpush.bf16.msra.mxu0 %v560
      %574 = vmatpush.bf16.msra.mxu0 %v559
      %575 = vmatmul.bf16.gmra.mxu0 %v495
      %v576 = vpop.f32.mrf.mxu0
      %v577 = vadd.f32 0.0, %v576
      %v578 = vpop.f32.mrf.mxu0
      %v579 = vadd.f32 0.0, %v578
      %580 = vmatmul.bf16.gmra.mxu0 %v496
      %v581 = vpop.f32.mrf.mxu0
      %v582 = vadd.f32 0.0, %v581
      %v583 = vpop.f32.mrf.mxu0
      %v584 = vadd.f32 0.0, %v583
      %585 = vmatmul.bf16.gmra.mxu0 %v497
      %v586 = vpop.f32.mrf.mxu0
      %v587 = vadd.f32 0.0, %v586
      %v588 = vpop.f32.mrf.mxu0
      %v589 = vadd.f32 0.0, %v588
      %590 = vmatmul.bf16.gmra.mxu0 %v498
      %v591 = vpop.f32.mrf.mxu0
      %v592 = vadd.f32 0.0, %v591
      %v593 = vpop.f32.mrf.mxu0
      %v594 = vadd.f32 0.0, %v593
      %595 = vmatmul.bf16.gmra.mxu0 %v499
      %v596 = vpop.f32.mrf.mxu0
      %v597 = vadd.f32 0.0, %v596
      %v598 = vpop.f32.mrf.mxu0
      %v599 = vadd.f32 0.0, %v598
      %600 = vmatmul.bf16.gmra.mxu0 %v500
      %v601 = vpop.f32.mrf.mxu0
      %v602 = vadd.f32 0.0, %v601
      %v603 = vpop.f32.mrf.mxu0
      %v604 = vadd.f32 0.0, %v603
      %605 = vmatmul.bf16.gmra.mxu0 %v501
      %v606 = vpop.f32.mrf.mxu0
      %v607 = vadd.f32 0.0, %v606
      %v608 = vpop.f32.mrf.mxu0
      %v609 = vadd.f32 0.0, %v608
      %610 = vmatmul.bf16.gmra.mxu0 %v502
      %v611 = vpop.f32.mrf.mxu0
      %v612 = vadd.f32 0.0, %v611
      %v613 = vpop.f32.mrf.mxu0
      %v614 = vadd.f32 0.0, %v613
      %615 = vmatmul.bf16.gmra.mxu0 %v503
      %v616 = vpop.f32.mrf.mxu0
      %v617 = vadd.f32 0.0, %v616
      %v618 = vpop.f32.mrf.mxu0
      %v619 = vadd.f32 0.0, %v618
      %620 = vmatmul.bf16.gmra.mxu0 %v504
      %v621 = vpop.f32.mrf.mxu0
      %v622 = vadd.f32 0.0, %v621
      %v623 = vpop.f32.mrf.mxu0
      %v624 = vadd.f32 0.0, %v623
      %625 = vmatmul.bf16.gmra.mxu0 %v505
      %v626 = vpop.f32.mrf.mxu0
      %v627 = vadd.f32 0.0, %v626
      %v628 = vpop.f32.mrf.mxu0
      %v629 = vadd.f32 0.0, %v628
      %630 = vmatmul.bf16.gmra.mxu0 %v506
      %v631 = vpop.f32.mrf.mxu0
      %v632 = vadd.f32 0.0, %v631
      %v633 = vpop.f32.mrf.mxu0
      %v634 = vadd.f32 0.0, %v633
      %635 = vmatmul.bf16.gmra.mxu0 %v507
      %v636 = vpop.f32.mrf.mxu0
      %v637 = vadd.f32 0.0, %v636
      %v638 = vpop.f32.mrf.mxu0
      %v639 = vadd.f32 0.0, %v638
      %640 = vmatmul.bf16.gmra.mxu0 %v508
      %v641 = vpop.f32.mrf.mxu0
      %v642 = vadd.f32 0.0, %v641
      %v643 = vpop.f32.mrf.mxu0
      %v644 = vadd.f32 0.0, %v643
      %645 = vmatmul.bf16.gmra.mxu0 %v509
      %v646 = vpop.f32.mrf.mxu0
      %v647 = vadd.f32 0.0, %v646
      %v648 = vpop.f32.mrf.mxu0
      %v649 = vadd.f32 0.0, %v648
      %650 = vmatmul.bf16.gmra.mxu0 %v510
      %v651 = vpop.f32.mrf.mxu0
      %v652 = vadd.f32 0.0, %v651
      %v653 = vpop.f32.mrf.mxu0
      %v654 = vadd.f32 0.0, %v653
      %655 = vdwg.mxu0
      %v656 = vadd.f32 %v511, %v577
      %v657 = vadd.f32 %v512, %v579
      %v658 = vadd.f32 %v513, %v582
      %v659 = vadd.f32 %v514, %v584
      %v660 = vadd.f32 %v515, %v587
      %v661 = vadd.f32 %v516, %v589
      %v662 = vadd.f32 %v517, %v592
      %v663 = vadd.f32 %v518, %v594
      %v664 = vadd.f32 %v519, %v597
      %v665 = vadd.f32 %v520, %v599
      %v666 = vadd.f32 %v521, %v602
      %v667 = vadd.f32 %v522, %v604
      %v668 = vadd.f32 %v523, %v607
      %v669 = vadd.f32 %v524, %v609
      %v670 = vadd.f32 %v525, %v612
      %v671 = vadd.f32 %v526, %v614
      %v672 = vadd.f32 %v527, %v617
      %v673 = vadd.f32 %v528, %v619
      %v674 = vadd.f32 %v529, %v622
      %v675 = vadd.f32 %v530, %v624
      %v676 = vadd.f32 %v531, %v627
      %v677 = vadd.f32 %v532, %v629
      %v678 = vadd.f32 %v533, %v632
      %v679 = vadd.f32 %v534, %v634
      %v680 = vadd.f32 %v535, %v637
      %v681 = vadd.f32 %v536, %v639
      %v682 = vadd.f32 %v537, %v642
      %v683 = vadd.f32 %v538, %v644
      %v684 = vadd.f32 %v539, %v647
      %v685 = vadd.f32 %v540, %v649
      %v686 = vadd.f32 %v541, %v652
      %v687 = vadd.f32 %v542, %v654
      %688 = vst [vmem:[%s228] sm:$0xff] %v656
      %689 = vst [vmem:[%s228 + $0x8] sm:$0xff] %v657
      %690 = vst [vmem:[%s228 + $0x10] sm:$0xff] %v658
      %691 = vst [vmem:[%s228 + $0x18] sm:$0xff] %v659
      %692 = vst [vmem:[%s228 + $0x20] sm:$0xff] %v660
      %693 = vst [vmem:[%s228 + $0x28] sm:$0xff] %v661
      %694 = vst [vmem:[%s228 + $0x30] sm:$0xff] %v662
      %695 = vst [vmem:[%s228 + $0x38] sm:$0xff] %v663
      %696 = vst [vmem:[%s228 + $0x40] sm:$0xff] %v664
      %697 = vst [vmem:[%s228 + $0x48] sm:$0xff] %v665
      %698 = vst [vmem:[%s228 + $0x50] sm:$0xff] %v666
      %699 = vst [vmem:[%s228 + $0x58] sm:$0xff] %v667
      %700 = vst [vmem:[%s228 + $0x60] sm:$0xff] %v668
      %701 = vst [vmem:[%s228 + $0x68] sm:$0xff] %v669
      %702 = vst [vmem:[%s228 + $0x70] sm:$0xff] %v670
      %703 = vst [vmem:[%s228 + $0x78] sm:$0xff] %v671
      %704 = vst [vmem:[%s228 + $0x80] sm:$0xff] %v672
      %705 = vst [vmem:[%s228 + $0x88] sm:$0xff] %v673
      %706 = vst [vmem:[%s228 + $0x90] sm:$0xff] %v674
      %707 = vst [vmem:[%s228 + $0x98] sm:$0xff] %v675
      %708 = vst [vmem:[%s228 + $0xa0] sm:$0xff] %v676
      %709 = vst [vmem:[%s228 + $0xa8] sm:$0xff] %v677
      %710 = vst [vmem:[%s228 + $0xb0] sm:$0xff] %v678
      %711 = vst [vmem:[%s228 + $0xb8] sm:$0xff] %v679
      %712 = vst [vmem:[%s228 + $0xc0] sm:$0xff] %v680
      %713 = vst [vmem:[%s228 + $0xc8] sm:$0xff] %v681
      %714 = vst [vmem:[%s228 + $0xd0] sm:$0xff] %v682
      %715 = vst [vmem:[%s228 + $0xd8] sm:$0xff] %v683
      %716 = vst [vmem:[%s228 + $0xe0] sm:$0xff] %v684
      %717 = vst [vmem:[%s228 + $0xe8] sm:$0xff] %v685
      %718 = vst [vmem:[%s228 + $0xf0] sm:$0xff] %v686
      %719 = vst [vmem:[%s228 + $0xf8] sm:$0xff] %v687
      %p720 = scmp.eq.s32.totalorder %s19, 1
      // Predicated region
      $region37: #{gin_layer_w_ef_update.4} parent=31 // pred_check
        %p721 = pneg %p720
      $region38: #{gin_layer_w_ef_update.4} parent=31 // pred_check_branch
        %723 = sbr.rel (%p721) target = $region40
      $region39: #{gin_layer_w_ef_update.4} parent=31 // pred_region
        %v724 = vld [vmem:[%s228] sm:$0xff]
        %v725 = vld [vmem:[%s228 + $0x8] sm:$0xff]
        %v726 = vld [vmem:[%s228 + $0x10] sm:$0xff]
        %v727 = vld [vmem:[%s228 + $0x18] sm:$0xff]
        %v728 = vld [vmem:[%s228 + $0x20] sm:$0xff]
        %v729 = vld [vmem:[%s228 + $0x28] sm:$0xff]
        %v730 = vld [vmem:[%s228 + $0x30] sm:$0xff]
        %v731 = vld [vmem:[%s228 + $0x38] sm:$0xff]
        %v732 = vld [vmem:[%s228 + $0x40] sm:$0xff]
        %v733 = vld [vmem:[%s228 + $0x48] sm:$0xff]
        %v734 = vld [vmem:[%s228 + $0x50] sm:$0xff]
        %v735 = vld [vmem:[%s228 + $0x58] sm:$0xff]
        %v736 = vld [vmem:[%s228 + $0x60] sm:$0xff]
        %v737 = vld [vmem:[%s228 + $0x68] sm:$0xff]
        %v738 = vld [vmem:[%s228 + $0x70] sm:$0xff]
        %v739 = vld [vmem:[%s228 + $0x78] sm:$0xff]
        %v740 = vld [vmem:[%s228 + $0x80] sm:$0xff]
        %v741 = vld [vmem:[%s228 + $0x88] sm:$0xff]
        %v742 = vld [vmem:[%s228 + $0x90] sm:$0xff]
        %v743 = vld [vmem:[%s228 + $0x98] sm:$0xff]
        %v744 = vld [vmem:[%s228 + $0xa0] sm:$0xff]
        %v745 = vld [vmem:[%s228 + $0xa8] sm:$0xff]
        %v746 = vld [vmem:[%s228 + $0xb0] sm:$0xff]
        %v747 = vld [vmem:[%s228 + $0xb8] sm:$0xff]
        %v748 = vld [vmem:[%s228 + $0xc0] sm:$0xff]
        %v749 = vld [vmem:[%s228 + $0xc8] sm:$0xff]
        %v750 = vld [vmem:[%s228 + $0xd0] sm:$0xff]
        %v751 = vld [vmem:[%s228 + $0xd8] sm:$0xff]
        %v752 = vld [vmem:[%s228 + $0xe0] sm:$0xff]
        %v753 = vld [vmem:[%s228 + $0xe8] sm:$0xff]
        %v754 = vld [vmem:[%s228 + $0xf0] sm:$0xff]
        %v755 = vld [vmem:[%s228 + $0xf8] sm:$0xff]
        %v756 = vld [vmem:[%s222] sm:$0xff]
        %v757 = vld [vmem:[%s222 + $0x8] sm:$0xff]
        %v758 = vld [vmem:[%s222 + $0x10] sm:$0xff]
        %v759 = vld [vmem:[%s222 + $0x18] sm:$0xff]
        %v760 = vld [vmem:[%s222 + $0x20] sm:$0xff]
        %v761 = vld [vmem:[%s222 + $0x28] sm:$0xff]
        %v762 = vld [vmem:[%s222 + $0x30] sm:$0xff]
        %v763 = vld [vmem:[%s222 + $0x38] sm:$0xff]
        %v764 = vld [vmem:[%s222 + $0x40] sm:$0xff]
        %v765 = vld [vmem:[%s222 + $0x48] sm:$0xff]
        %v766 = vld [vmem:[%s222 + $0x50] sm:$0xff]
        %v767 = vld [vmem:[%s222 + $0x58] sm:$0xff]
        %v768 = vld [vmem:[%s222 + $0x60] sm:$0xff]
        %v769 = vld [vmem:[%s222 + $0x68] sm:$0xff]
        %v770 = vld [vmem:[%s222 + $0x70] sm:$0xff]
        %v771 = vld [vmem:[%s222 + $0x78] sm:$0xff]
        %v772 = vld [vmem:[%s222 + $0x80] sm:$0xff]
        %v773 = vld [vmem:[%s222 + $0x88] sm:$0xff]
        %v774 = vld [vmem:[%s222 + $0x90] sm:$0xff]
        %v775 = vld [vmem:[%s222 + $0x98] sm:$0xff]
        %v776 = vld [vmem:[%s222 + $0xa0] sm:$0xff]
        %v777 = vld [vmem:[%s222 + $0xa8] sm:$0xff]
        %v778 = vld [vmem:[%s222 + $0xb0] sm:$0xff]
        %v779 = vld [vmem:[%s222 + $0xb8] sm:$0xff]
        %v780 = vld [vmem:[%s222 + $0xc0] sm:$0xff]
        %v781 = vld [vmem:[%s222 + $0xc8] sm:$0xff]
        %v782 = vld [vmem:[%s222 + $0xd0] sm:$0xff]
        %v783 = vld [vmem:[%s222 + $0xd8] sm:$0xff]
        %v784 = vld [vmem:[%s222 + $0xe0] sm:$0xff]
        %v785 = vld [vmem:[%s222 + $0xe8] sm:$0xff]
        %v786 = vld [vmem:[%s222 + $0xf0] sm:$0xff]
        %v787 = vld [vmem:[%s222 + $0xf8] sm:$0xff]
        %v788 = vmul.f32 %v724, %v756
        %v789 = vmul.f32 %v725, %v757
        %v790 = vmul.f32 %v726, %v758
        %v791 = vmul.f32 %v727, %v759
        %v792 = vmul.f32 %v728, %v760
        %v793 = vmul.f32 %v729, %v761
        %v794 = vmul.f32 %v730, %v762
        %v795 = vmul.f32 %v731, %v763
        %v796 = vmul.f32 %v732, %v764
        %v797 = vmul.f32 %v733, %v765
        %v798 = vmul.f32 %v734, %v766
        %v799 = vmul.f32 %v735, %v767
        %v800 = vmul.f32 %v736, %v768
        %v801 = vmul.f32 %v737, %v769
        %v802 = vmul.f32 %v738, %v770
        %v803 = vmul.f32 %v739, %v771
        %v804 = vmul.f32 %v740, %v772
        %v805 = vmul.f32 %v741, %v773
        %v806 = vmul.f32 %v742, %v774
        %v807 = vmul.f32 %v743, %v775
        %v808 = vmul.f32 %v744, %v776
        %v809 = vmul.f32 %v745, %v777
        %v810 = vmul.f32 %v746, %v778
        %v811 = vmul.f32 %v747, %v779
        %v812 = vmul.f32 %v748, %v780
        %v813 = vmul.f32 %v749, %v781
        %v814 = vmul.f32 %v750, %v782
        %v815 = vmul.f32 %v751, %v783
        %v816 = vmul.f32 %v752, %v784
        %v817 = vmul.f32 %v753, %v785
        %v818 = vmul.f32 %v754, %v786
        %v819 = vmul.f32 %v755, %v787
        %820 = vst [vmem:[%s228] sm:$0xff] %v788
        %821 = vst [vmem:[%s228 + $0x8] sm:$0xff] %v789
        %822 = vst [vmem:[%s228 + $0x10] sm:$0xff] %v790
        %823 = vst [vmem:[%s228 + $0x18] sm:$0xff] %v791
        %824 = vst [vmem:[%s228 + $0x20] sm:$0xff] %v792
        %825 = vst [vmem:[%s228 + $0x28] sm:$0xff] %v793
        %826 = vst [vmem:[%s228 + $0x30] sm:$0xff] %v794
        %827 = vst [vmem:[%s228 + $0x38] sm:$0xff] %v795
        %828 = vst [vmem:[%s228 + $0x40] sm:$0xff] %v796
        %829 = vst [vmem:[%s228 + $0x48] sm:$0xff] %v797
        %830 = vst [vmem:[%s228 + $0x50] sm:$0xff] %v798
        %831 = vst [vmem:[%s228 + $0x58] sm:$0xff] %v799
        %832 = vst [vmem:[%s228 + $0x60] sm:$0xff] %v800
        %833 = vst [vmem:[%s228 + $0x68] sm:$0xff] %v801
        %834 = vst [vmem:[%s228 + $0x70] sm:$0xff] %v802
        %835 = vst [vmem:[%s228 + $0x78] sm:$0xff] %v803
        %836 = vst [vmem:[%s228 + $0x80] sm:$0xff] %v804
        %837 = vst [vmem:[%s228 + $0x88] sm:$0xff] %v805
        %838 = vst [vmem:[%s228 + $0x90] sm:$0xff] %v806
        %839 = vst [vmem:[%s228 + $0x98] sm:$0xff] %v807
        %840 = vst [vmem:[%s228 + $0xa0] sm:$0xff] %v808
        %841 = vst [vmem:[%s228 + $0xa8] sm:$0xff] %v809
        %842 = vst [vmem:[%s228 + $0xb0] sm:$0xff] %v810
        %843 = vst [vmem:[%s228 + $0xb8] sm:$0xff] %v811
        %844 = vst [vmem:[%s228 + $0xc0] sm:$0xff] %v812
        %845 = vst [vmem:[%s228 + $0xc8] sm:$0xff] %v813
        %846 = vst [vmem:[%s228 + $0xd0] sm:$0xff] %v814
        %847 = vst [vmem:[%s228 + $0xd8] sm:$0xff] %v815
        %848 = vst [vmem:[%s228 + $0xe0] sm:$0xff] %v816
        %849 = vst [vmem:[%s228 + $0xe8] sm:$0xff] %v817
        %850 = vst [vmem:[%s228 + $0xf0] sm:$0xff] %v818
        %851 = vst [vmem:[%s228 + $0xf8] sm:$0xff] %v819
      $region40: #{gin_layer_w_ef_update.4} parent=31 // pred_fallthru
        _
      %s852 = smul.u32 32, %s18
      %p853 = scmp.lt.s32.totalorder %s852, 31
      %s854 = scalar_select %p853, %s852, 31
      %s855 = smul.addr %s854, 8
      %s856 = scalar_lea.vmem %s3, %s855
      // Predicated region
      $region41: #{gin_layer_w_ef_update.4} parent=31 // pred_check
        %p857 = pneg %p122
      $region42: #{gin_layer_w_ef_update.4} parent=31 // pred_check_branch
        %859 = sbr.rel (%p857) target = $region44
      $region43: #{gin_layer_w_ef_update.4} parent=31 // pred_region
        %s860 = smul.u32 32, %s18
      $region44: #{gin_layer_w_ef_update.4} parent=31 // pred_fallthru
        _
      // Predicated region
      $region45: #{gin_layer_w_ef_update.4} parent=31 // pred_check
        %p861 = pneg %p122
      $region46: #{gin_layer_w_ef_update.4} parent=31 // pred_check_branch
        %863 = sbr.rel (%p861) target = $region48
      $region47: #{gin_layer_w_ef_update.4} parent=31 // pred_region
        %s864 = smul.u32 32, %s18
        %p865 = scmp.lt.s32.totalorder %s864, 31
        %s866 = scalar_select %p865, %s864, 31
        %s867 = smul.addr %s866, 8
        %s868 = scalar_lea.vmem %s3, %s867
      $region48: #{gin_layer_w_ef_update.4} parent=31 // pred_fallthru
        _
    $region32: #{gin_layer_w_ef_update.4} parent=5 // pred_fallthru
      _
    %p869 = scmp.le.s32.totalorder 2, %s9
    // Predicated region
    $region49: #{gin_layer_w_ef_update.4} parent=5 // pred_check
      %p870 = pneg %p869
    $region50: #{gin_layer_w_ef_update.4} parent=5 // pred_check_branch
      %872 = sbr.rel (%p870) target = $region52
    $region51: #{gin_layer_w_ef_update.4} parent=5 // pred_region
      %s873 = ssub.s32 %s9, 2
    $region52: #{gin_layer_w_ef_update.4} parent=5 // pred_fallthru
      _
  $region6: #{gin_layer_w_ef_update.4} parent=0 // loop_footer
    %s13 = sadd.s32 1, %s9
  $region7: #{gin_layer_w_ef_update.4} parent=0 // loop_footer_branch
    %8 = sbr.rel target = $region3
  $region8: #{gin_layer_w_ef_update.4} parent=0 // loop_exit
    _

// kernel: gin_layer_w_ef_update.7
$region0: #{gin_layer_w_ef_update.7}
  #allocation0 [shape = 'u32[]', space=smem, size = 0x4, offset = 0x4, fixed_abs, tag = 'smem constant byte address 0x4 - core index']
  #allocation1 [shape = 'u32[72,128]{1,0:T(1,128)}', space=vmem, size = 0x9000, scoped, tag = 'internal scratch']
  #allocation2 [shape = 'f32[256,128]{1,0:T(8,128)}', space=vmem, size = 0x20000, scoped, tag = 'scratch operand']
  #allocation3 [shape = 'f32[1]{0:T(128)S(6)}', space=smem, size = 0x200, scoped, tag = 'scoped memory for gin_layer_w_ef_update.7']
  %s0 = inlined_call_operand.<no memory space> [shape: f32[1], index: 0, kind: input, shape index: {}]
  %s1 = inlined_call_operand.vmem [shape: s32[256,1], index: 1, kind: input, shape index: {}]
  %s2 = inlined_call_operand.vmem [shape: s32[256,1], index: 2, kind: input, shape index: {}]
  %s3 = inlined_call_operand.vmem [shape: f32[256,128], index: 3, kind: input, shape index: {}]
  %s4 = inlined_call_operand.vmem [shape: f32[256,128], index: 4, kind: input, shape index: {}]
  %s5 = inlined_call_operand.vmem [shape: f32[128,128], index: 5, kind: input, shape index: {}]
  %s6 = inlined_call_operand.vmem [shape: f32[1,128], index: 6, kind: input, shape index: {}]
  %s7 = inlined_call_operand.vmem [shape: f32[128,128], index: 7, kind: input, shape index: {}]
  %s8 = inlined_call_operand.vmem [shape: f32[1,128], index: 8, kind: input, shape index: {}]
  %s9 = inlined_call_operand.vmem [shape: f32[256,128], index: 9, kind: output, shape index: {}]
  %s10 = sld [smem:[#allocation0]]
  $region77: #{gin_layer_w_ef_update.7} parent=0
    _
  %s12 = ssub.s32 1, %s10
  %s13 = scalar_select 0, %s12, %s10
  %14 = sst [smem:[#allocation3]] %s0
  loop: start=0, step=1, limit=4
  $region2: #{gin_layer_w_ef_update.7} parent=0 // loop_pre_header
    _
  $region3: #{gin_layer_w_ef_update.7} parent=0 // loop_header
    %s16 = sphi 0, %s20
    %p17 = scmp.ge.s32.totalorder %s16, 4
    %s23 = sphi 0, %s35
    %s24 = sphi 0, %s31
    %s25 = sphi 0, %s23
    %s26 = sphi 0, %s24
    %s27 = sphi 0, %s25
    %s28 = sphi 0, %s26
    %s36 = sphi 0, %s36
    %s38 = sphi 0, %s36
    %s39 = sphi 0, %s38
    %s53 = sphi 0, %s39
    %s59 = sphi 0, %s61
    %s62 = sphi 0, %s59
    %s63 = sphi 0, %s62
    %s79 = sphi 0, %s63
    %s85 = sphi 0, %s87
    %s88 = sphi 0, %s85
    %s89 = sphi 0, %s88
    %s105 = sphi 0, %s89
    %s111 = sphi 0, %s113
    %s114 = sphi 0, %s111
    %s115 = sphi 0, %s114
    %s131 = sphi 0, %s115
    %s137 = sphi 0, %s139
    %s140 = sphi 0, %s137
    %s141 = sphi 0, %s140
    %s157 = sphi 0, %s141
    %s161 = sphi 0, %s161
    %s163 = sphi 0, %s161
    %s164 = sphi 0, %s163
    %s178 = sphi 0, %s164
    %s182 = sphi 0, %s182
    %s184 = sphi 0, %s182
    %s185 = sphi 0, %s184
    %s199 = sphi 0, %s185
    %s203 = sphi 0, %s203
    %s205 = sphi 0, %s203
    %s206 = sphi 0, %s205
    %s220 = sphi 0, %s206
    %s224 = sphi 0, %s224
    %s226 = sphi 0, %s224
    %s227 = sphi 0, %s226
    %s241 = sphi 0, %s227
    %s247 = sphi 0, %s249
    %s250 = sphi 0, %s247
    %s251 = sphi 0, %s250
    %s267 = sphi 0, %s251
  $region4: #{gin_layer_w_ef_update.7} parent=0 // loop_header_branch
    %19 = sbr.rel (%p17) target = $region8
  $region5: #{gin_layer_w_ef_update.7} parent=0 // loop_body
    %s21 = ssub.s32 %s16, 1
    %s22 = ssub.s32 %s16, 2
    %s29 = sadd.s32 1, %s24
    %p30 = scmp.ge.s32.totalorder %s29, 2
    %s31 = scalar_select %p30, 0, %s29
    %s32 = sadd.s32 1, %s23
    %s33 = scalar_select %p30, %s32, %s23
    %p34 = scmp.ge.s32.totalorder %s33, 1
    %s35 = scalar_select %p34, 0, %s33
    %s37 = sadd.s32 %s36, 1
    %p40 = scmp.eq.s32.totalorder %s16, 1
    %p41 = scmp.ne.s32.totalorder %s36, %s38
    %p42 = scmp.eq.s32.totalorder %s16, 0
    %p43 = por %p41, %p42
    %p44 = scmp.ne.s32.totalorder %s36, %s38
    %p45 = scmp.eq.s32.totalorder %s21, 1
    %p46 = por %p44, %p45
    %p47 = scmp.ne.s32.totalorder %s38, %s39
    %p48 = scmp.eq.s32.totalorder %s21, 0
    %p49 = por %p47, %p48
    %p50 = scmp.ne.s32.totalorder %s38, %s39
    %p51 = scmp.eq.s32.totalorder %s22, 1
    %p52 = por %p50, %p51
    %p54 = scmp.ne.s32.totalorder %s39, %s53
    %p55 = scmp.eq.s32.totalorder %s22, 0
    %p56 = por %p54, %p55
    %s57 = ssub.s32 %s23, %s35
    %p58 = scmp.eq.s32.totalorder %s57, 0
    %s60 = sadd.s32 %s59, 1
    %s61 = scalar_select %p58, %s59, %s60
    %p64 = pneg %p58
    %p65 = scmp.eq.s32.totalorder %s16, 1
    %p66 = por %p64, %p65
    %p67 = scmp.ne.s32.totalorder %s59, %s62
    %p68 = scmp.eq.s32.totalorder %s16, 0
    %p69 = por %p67, %p68
    %p70 = scmp.ne.s32.totalorder %s59, %s62
    %p71 = scmp.eq.s32.totalorder %s21, 1
    %p72 = por %p70, %p71
    %p73 = scmp.ne.s32.totalorder %s62, %s63
    %p74 = scmp.eq.s32.totalorder %s21, 0
    %p75 = por %p73, %p74
    %p76 = scmp.ne.s32.totalorder %s62, %s63
    %p77 = scmp.eq.s32.totalorder %s22, 1
    %p78 = por %p76, %p77
    %p80 = scmp.ne.s32.totalorder %s63, %s79
    %p81 = scmp.eq.s32.totalorder %s22, 0
    %p82 = por %p80, %p81
    %s83 = ssub.s32 %s23, %s35
    %p84 = scmp.eq.s32.totalorder %s83, 0
    %s86 = sadd.s32 %s85, 1
    %s87 = scalar_select %p84, %s85, %s86
    %p90 = pneg %p84
    %p91 = scmp.eq.s32.totalorder %s16, 1
    %p92 = por %p90, %p91
    %p93 = scmp.ne.s32.totalorder %s85, %s88
    %p94 = scmp.eq.s32.totalorder %s16, 0
    %p95 = por %p93, %p94
    %p96 = scmp.ne.s32.totalorder %s85, %s88
    %p97 = scmp.eq.s32.totalorder %s21, 1
    %p98 = por %p96, %p97
    %p99 = scmp.ne.s32.totalorder %s88, %s89
    %p100 = scmp.eq.s32.totalorder %s21, 0
    %p101 = por %p99, %p100
    %p102 = scmp.ne.s32.totalorder %s88, %s89
    %p103 = scmp.eq.s32.totalorder %s22, 1
    %p104 = por %p102, %p103
    %p106 = scmp.ne.s32.totalorder %s89, %s105
    %p107 = scmp.eq.s32.totalorder %s22, 0
    %p108 = por %p106, %p107
    %s109 = ssub.s32 %s23, %s35
    %p110 = scmp.eq.s32.totalorder %s109, 0
    %s112 = sadd.s32 %s111, 1
    %s113 = scalar_select %p110, %s111, %s112
    %p116 = pneg %p110
    %p117 = scmp.eq.s32.totalorder %s16, 1
    %p118 = por %p116, %p117
    %p119 = scmp.ne.s32.totalorder %s111, %s114
    %p120 = scmp.eq.s32.totalorder %s16, 0
    %p121 = por %p119, %p120
    %p122 = scmp.ne.s32.totalorder %s111, %s114
    %p123 = scmp.eq.s32.totalorder %s21, 1
    %p124 = por %p122, %p123
    %p125 = scmp.ne.s32.totalorder %s114, %s115
    %p126 = scmp.eq.s32.totalorder %s21, 0
    %p127 = por %p125, %p126
    %p128 = scmp.ne.s32.totalorder %s114, %s115
    %p129 = scmp.eq.s32.totalorder %s22, 1
    %p130 = por %p128, %p129
    %p132 = scmp.ne.s32.totalorder %s115, %s131
    %p133 = scmp.eq.s32.totalorder %s22, 0
    %p134 = por %p132, %p133
    %s135 = ssub.s32 %s24, %s31
    %p136 = scmp.eq.s32.totalorder %s135, 0
    %s138 = sadd.s32 %s137, 1
    %s139 = scalar_select %p136, %s137, %s138
    %p142 = pneg %p136
    %p143 = scmp.eq.s32.totalorder %s16, 1
    %p144 = por %p142, %p143
    %p145 = scmp.ne.s32.totalorder %s137, %s140
    %p146 = scmp.eq.s32.totalorder %s16, 0
    %p147 = por %p145, %p146
    %p148 = scmp.ne.s32.totalorder %s137, %s140
    %p149 = scmp.eq.s32.totalorder %s21, 1
    %p150 = por %p148, %p149
    %p151 = scmp.ne.s32.totalorder %s140, %s141
    %p152 = scmp.eq.s32.totalorder %s21, 0
    %p153 = por %p151, %p152
    %p154 = scmp.ne.s32.totalorder %s140, %s141
    %p155 = scmp.eq.s32.totalorder %s22, 1
    %p156 = por %p154, %p155
    %p158 = scmp.ne.s32.totalorder %s141, %s157
    %p159 = scmp.eq.s32.totalorder %s22, 0
    %p160 = por %p158, %p159
    %s162 = sadd.s32 %s161, 1
    %p165 = scmp.eq.s32.totalorder %s16, 1
    %p166 = scmp.ne.s32.totalorder %s161, %s163
    %p167 = scmp.eq.s32.totalorder %s16, 0
    %p168 = por %p166, %p167
    %p169 = scmp.ne.s32.totalorder %s161, %s163
    %p170 = scmp.eq.s32.totalorder %s21, 1
    %p171 = por %p169, %p170
    %p172 = scmp.ne.s32.totalorder %s163, %s164
    %p173 = scmp.eq.s32.totalorder %s21, 0
    %p174 = por %p172, %p173
    %p175 = scmp.ne.s32.totalorder %s163, %s164
    %p176 = scmp.eq.s32.totalorder %s22, 1
    %p177 = por %p175, %p176
    %p179 = scmp.ne.s32.totalorder %s164, %s178
    %p180 = scmp.eq.s32.totalorder %s22, 0
    %p181 = por %p179, %p180
    %s183 = sadd.s32 %s182, 1
    %p186 = scmp.eq.s32.totalorder %s16, 1
    %p187 = scmp.ne.s32.totalorder %s182, %s184
    %p188 = scmp.eq.s32.totalorder %s16, 0
    %p189 = por %p187, %p188
    %p190 = scmp.ne.s32.totalorder %s182, %s184
    %p191 = scmp.eq.s32.totalorder %s21, 1
    %p192 = por %p190, %p191
    %p193 = scmp.ne.s32.totalorder %s184, %s185
    %p194 = scmp.eq.s32.totalorder %s21, 0
    %p195 = por %p193, %p194
    %p196 = scmp.ne.s32.totalorder %s184, %s185
    %p197 = scmp.eq.s32.totalorder %s22, 1
    %p198 = por %p196, %p197
    %p200 = scmp.ne.s32.totalorder %s185, %s199
    %p201 = scmp.eq.s32.totalorder %s22, 0
    %p202 = por %p200, %p201
    %s204 = sadd.s32 %s203, 1
    %p207 = scmp.eq.s32.totalorder %s16, 1
    %p208 = scmp.ne.s32.totalorder %s203, %s205
    %p209 = scmp.eq.s32.totalorder %s16, 0
    %p210 = por %p208, %p209
    %p211 = scmp.ne.s32.totalorder %s203, %s205
    %p212 = scmp.eq.s32.totalorder %s21, 1
    %p213 = por %p211, %p212
    %p214 = scmp.ne.s32.totalorder %s205, %s206
    %p215 = scmp.eq.s32.totalorder %s21, 0
    %p216 = por %p214, %p215
    %p217 = scmp.ne.s32.totalorder %s205, %s206
    %p218 = scmp.eq.s32.totalorder %s22, 1
    %p219 = por %p217, %p218
    %p221 = scmp.ne.s32.totalorder %s206, %s220
    %p222 = scmp.eq.s32.totalorder %s22, 0
    %p223 = por %p221, %p222
    %s225 = sadd.s32 %s224, 1
    %p228 = scmp.eq.s32.totalorder %s16, 1
    %p229 = scmp.ne.s32.totalorder %s224, %s226
    %p230 = scmp.eq.s32.totalorder %s16, 0
    %p231 = por %p229, %p230
    %p232 = scmp.ne.s32.totalorder %s224, %s226
    %p233 = scmp.eq.s32.totalorder %s21, 1
    %p234 = por %p232, %p233
    %p235 = scmp.ne.s32.totalorder %s226, %s227
    %p236 = scmp.eq.s32.totalorder %s21, 0
    %p237 = por %p235, %p236
    %p238 = scmp.ne.s32.totalorder %s226, %s227
    %p239 = scmp.eq.s32.totalorder %s22, 1
    %p240 = por %p238, %p239
    %p242 = scmp.ne.s32.totalorder %s227, %s241
    %p243 = scmp.eq.s32.totalorder %s22, 0
    %p244 = por %p242, %p243
    %s245 = ssub.s32 %s23, %s35
    %p246 = scmp.eq.s32.totalorder %s245, 0
    %s248 = sadd.s32 %s247, 1
    %s249 = scalar_select %p246, %s247, %s248
    %p252 = pneg %p246
    %p253 = scmp.eq.s32.totalorder %s16, 1
    %p254 = por %p252, %p253
    %p255 = scmp.ne.s32.totalorder %s247, %s250
    %p256 = scmp.eq.s32.totalorder %s16, 0
    %p257 = por %p255, %p256
    %p258 = scmp.ne.s32.totalorder %s247, %s250
    %p259 = scmp.eq.s32.totalorder %s21, 1
    %p260 = por %p258, %p259
    %p261 = scmp.ne.s32.totalorder %s250, %s251
    %p262 = scmp.eq.s32.totalorder %s21, 0
    %p263 = por %p261, %p262
    %p264 = scmp.ne.s32.totalorder %s250, %s251
    %p265 = scmp.eq.s32.totalorder %s22, 1
    %p266 = por %p264, %p265
    %p268 = scmp.ne.s32.totalorder %s251, %s267
    %p269 = scmp.eq.s32.totalorder %s22, 0
    %p270 = por %p268, %p269
    %p271 = scmp.le.s32.totalorder 1, %s16
    %p272 = scmp.lt.s32.totalorder %s16, 3
    %p273 = pnand %p271, %p272
    %p274 = pneg %p273
    // Predicated region
    $region9: #{gin_layer_w_ef_update.7} parent=5 // pred_check
      _
    $region10: #{gin_layer_w_ef_update.7} parent=5 // pred_check_branch
      %276 = sbr.rel (%p273) target = $region12
    $region11: #{gin_layer_w_ef_update.7} parent=5 // pred_region
      %s277 = ssub.s32 %s16, 1
      // Predicated region
      $region13: #{gin_layer_w_ef_update.7} parent=11 // pred_check
        %p278 = pneg %p49
      $region14: #{gin_layer_w_ef_update.7} parent=11 // pred_check_branch
        %280 = sbr.rel (%p278) target = $region16
      $region15: #{gin_layer_w_ef_update.7} parent=11 // pred_region
        _
      $region16: #{gin_layer_w_ef_update.7} parent=11 // pred_fallthru
        _
      // Predicated region
      $region17: #{gin_layer_w_ef_update.7} parent=11 // pred_check
        %p281 = pneg %p75
      $region18: #{gin_layer_w_ef_update.7} parent=11 // pred_check_branch
        %283 = sbr.rel (%p281) target = $region20
      $region19: #{gin_layer_w_ef_update.7} parent=11 // pred_region
        %s284 = smul.u32 32, %s25
        %p285 = scmp.lt.s32.totalorder %s284, 31
        %s286 = scalar_select %p285, %s284, 31
        %s287 = smul.addr %s286, 8
        %s288 = scalar_lea.vmem %s1, %s287
        %s289 = smul.u32 32, %s25
      $region20: #{gin_layer_w_ef_update.7} parent=11 // pred_fallthru
        _
      // Predicated region
      $region21: #{gin_layer_w_ef_update.7} parent=11 // pred_check
        %p290 = pneg %p101
      $region22: #{gin_layer_w_ef_update.7} parent=11 // pred_check_branch
        %292 = sbr.rel (%p290) target = $region24
      $region23: #{gin_layer_w_ef_update.7} parent=11 // pred_region
        %s293 = smul.u32 32, %s25
        %p294 = scmp.lt.s32.totalorder %s293, 31
        %s295 = scalar_select %p294, %s293, 31
        %s296 = smul.addr %s295, 8
        %s297 = scalar_lea.vmem %s2, %s296
        %s298 = smul.u32 32, %s25
      $region24: #{gin_layer_w_ef_update.7} parent=11 // pred_fallthru
        _
      // Predicated region
      $region25: #{gin_layer_w_ef_update.7} parent=11 // pred_check
        %p299 = pneg %p127
      $region26: #{gin_layer_w_ef_update.7} parent=11 // pred_check_branch
        %301 = sbr.rel (%p299) target = $region28
      $region27: #{gin_layer_w_ef_update.7} parent=11 // pred_region
        %s302 = smul.u32 32, %s25
        %p303 = scmp.lt.s32.totalorder %s302, 31
        %s304 = scalar_select %p303, %s302, 31
        %s305 = smul.addr %s304, 8
        %s306 = scalar_lea.vmem %s3, %s305
        %s307 = smul.u32 32, %s25
      $region28: #{gin_layer_w_ef_update.7} parent=11 // pred_fallthru
        _
      // Predicated region
      $region29: #{gin_layer_w_ef_update.7} parent=11 // pred_check
        %p308 = pneg %p174
      $region30: #{gin_layer_w_ef_update.7} parent=11 // pred_check_branch
        %310 = sbr.rel (%p308) target = $region32
      $region31: #{gin_layer_w_ef_update.7} parent=11 // pred_region
        _
      $region32: #{gin_layer_w_ef_update.7} parent=11 // pred_fallthru
        _
      // Predicated region
      $region33: #{gin_layer_w_ef_update.7} parent=11 // pred_check
        %p311 = pneg %p195
      $region34: #{gin_layer_w_ef_update.7} parent=11 // pred_check_branch
        %313 = sbr.rel (%p311) target = $region36
      $region35: #{gin_layer_w_ef_update.7} parent=11 // pred_region
        _
      $region36: #{gin_layer_w_ef_update.7} parent=11 // pred_fallthru
        _
      // Predicated region
      $region37: #{gin_layer_w_ef_update.7} parent=11 // pred_check
        %p314 = pneg %p216
      $region38: #{gin_layer_w_ef_update.7} parent=11 // pred_check_branch
        %316 = sbr.rel (%p314) target = $region40
      $region39: #{gin_layer_w_ef_update.7} parent=11 // pred_region
        _
      $region40: #{gin_layer_w_ef_update.7} parent=11 // pred_fallthru
        _
      // Predicated region
      $region41: #{gin_layer_w_ef_update.7} parent=11 // pred_check
        %p317 = pneg %p237
      $region42: #{gin_layer_w_ef_update.7} parent=11 // pred_check_branch
        %319 = sbr.rel (%p317) target = $region44
      $region43: #{gin_layer_w_ef_update.7} parent=11 // pred_region
        _
      $region44: #{gin_layer_w_ef_update.7} parent=11 // pred_fallthru
        _
    $region12: #{gin_layer_w_ef_update.7} parent=5 // pred_fallthru
      _
    %p320 = scmp.lt.s32.totalorder %s16, 2
    // Predicated region
    $region45: #{gin_layer_w_ef_update.7} parent=5 // pred_check
      %p321 = pneg %p320
    $region46: #{gin_layer_w_ef_update.7} parent=5 // pred_check_branch
      %323 = sbr.rel (%p321) target = $region48
    $region47: #{gin_layer_w_ef_update.7} parent=5 // pred_region
      // Predicated region
      $region49: #{gin_layer_w_ef_update.7} parent=47 // pred_check
        %p324 = pneg %p147
      $region50: #{gin_layer_w_ef_update.7} parent=47 // pred_check_branch
        %326 = sbr.rel (%p324) target = $region52
      $region51: #{gin_layer_w_ef_update.7} parent=47 // pred_region
        %s327 = smul.u32 16, %s24
        %p328 = scmp.lt.s32.totalorder %s327, 31
        %s329 = scalar_select %p328, %s327, 31
        %s330 = smul.addr %s329, 8
        %s331 = scalar_lea.vmem %s4, %s330
        %s332 = smul.u32 16, %s24
      $region52: #{gin_layer_w_ef_update.7} parent=47 // pred_fallthru
        _
    $region48: #{gin_layer_w_ef_update.7} parent=5 // pred_fallthru
      _
    %p333 = scmp.le.s32.totalorder 1, %s16
    %p334 = scmp.lt.s32.totalorder %s16, 3
    %p335 = pnand %p333, %p334
    %p336 = pneg %p335
    // Predicated region
    $region53: #{gin_layer_w_ef_update.7} parent=5 // pred_check
      _
    $region54: #{gin_layer_w_ef_update.7} parent=5 // pred_check_branch
      %338 = sbr.rel (%p335) target = $region56
    $region55: #{gin_layer_w_ef_update.7} parent=5 // pred_region
      %s339 = ssub.s32 %s16, 1
      %p340 = pneg %p49
      %p341 = pneg %p46
      %s342 = smul.u32 32, %s25
      %p343 = scmp.lt.s32.totalorder %s342, 31
      %s344 = scalar_select %p343, %s342, 31
      %s345 = smul.addr %s344, 8
      %s346 = scalar_lea.vmem %s1, %s345
      %p347 = pneg %p75
      %p348 = pneg %p72
      %s349 = smul.u32 32, %s25
      %p350 = scmp.lt.s32.totalorder %s349, 31
      %s351 = scalar_select %p350, %s349, 31
      %s352 = smul.addr %s351, 8
      %s353 = scalar_lea.vmem %s2, %s352
      %p354 = pneg %p101
      %p355 = pneg %p98
      %s356 = smul.u32 32, %s25
      %p357 = scmp.lt.s32.totalorder %s356, 31
      %s358 = scalar_select %p357, %s356, 31
      %s359 = smul.addr %s358, 8
      %s360 = scalar_lea.vmem %s3, %s359
      %p361 = pneg %p127
      %p362 = pneg %p124
      %s363 = smul.u32 16, %s26
      %p364 = scmp.lt.s32.totalorder %s363, 31
      %s365 = scalar_select %p364, %s363, 31
      %s366 = smul.addr %s365, 8
      %s367 = scalar_lea.vmem %s4, %s366
      %p368 = pneg %p153
      %p369 = pneg %p150
      %p370 = pneg %p174
      %p371 = pneg %p171
      %p372 = pneg %p195
      %p373 = pneg %p192
      %p374 = pneg %p216
      %p375 = pneg %p213
      %p376 = pneg %p237
      %p377 = pneg %p234
      %p378 = pneg %p263
      %p379 = pneg %p260
      %s380 = smul.u32 32, %s25
      %p381 = scmp.lt.s32.totalorder %s380, 31
      %s382 = scalar_select %p381, %s380, 31
      %s383 = smul.addr %s382, 8
      %s384 = scalar_lea.vmem %s9, %s383
      %s385 = smul.u32 32, %s25
      %p386 = scmp.lt.s32.totalorder %s385, 31
      %s387 = scalar_select %p386, %s385, 31
      %s388 = smul.addr %s387, 8
      %s389 = scalar_lea.vmem %s1, %s388
      %s390 = smul.u32 32, %s25
      %s391 = smul.u32 32, %s25
      %p392 = scmp.lt.s32.totalorder %s391, 31
      %s393 = scalar_select %p392, %s391, 31
      %s394 = smul.addr %s393, 8
      %s395 = scalar_lea.vmem %s2, %s394
      %s396 = smul.u32 32, %s25
      %s397 = smul.u32 32, %s25
      %p398 = scmp.lt.s32.totalorder %s397, 31
      %s399 = scalar_select %p398, %s397, 31
      %s400 = smul.addr %s399, 8
      %s401 = scalar_lea.vmem %s3, %s400
      %s402 = smul.u32 32, %s25
      %s403 = smul.u32 16, %s26
      %p404 = scmp.lt.s32.totalorder %s403, 31
      %s405 = scalar_select %p404, %s403, 31
      %s406 = smul.addr %s405, 8
      %s407 = scalar_lea.vmem %s4, %s406
      %s408 = smul.u32 16, %s26
      %s409 = smul.u32 32, %s25
      %p410 = scmp.lt.s32.totalorder %s409, 31
      %s411 = scalar_select %p410, %s409, 31
      %s412 = smul.addr %s411, 8
      %s413 = scalar_lea.vmem %s9, %s412
      %s414 = smul.u32 32, %s25
      %p415 = scmp.eq.s32.totalorder %s26, 0
      // Predicated region
      $region57: #{gin_layer_w_ef_update.7} parent=55 // pred_check
        %p416 = pneg %p415
      $region58: #{gin_layer_w_ef_update.7} parent=55 // pred_check_branch
        %418 = sbr.rel (%p416) target = $region60
      $region59: #{gin_layer_w_ef_update.7} parent=55 // pred_region
        %419 = vst [vmem:[#allocation2] sm:$0xff] 0.0
        %420 = vst [vmem:[#allocation2 + $0x8] sm:$0xff] 0.0
        %421 = vst [vmem:[#allocation2 + $0x10] sm:$0xff] 0.0
        %422 = vst [vmem:[#allocation2 + $0x18] sm:$0xff] 0.0
        %423 = vst [vmem:[#allocation2 + $0x20] sm:$0xff] 0.0
        %424 = vst [vmem:[#allocation2 + $0x28] sm:$0xff] 0.0
        %425 = vst [vmem:[#allocation2 + $0x30] sm:$0xff] 0.0
        %426 = vst [vmem:[#allocation2 + $0x38] sm:$0xff] 0.0
        %427 = vst [vmem:[#allocation2 + $0x40] sm:$0xff] 0.0
        %428 = vst [vmem:[#allocation2 + $0x48] sm:$0xff] 0.0
        %429 = vst [vmem:[#allocation2 + $0x50] sm:$0xff] 0.0
        %430 = vst [vmem:[#allocation2 + $0x58] sm:$0xff] 0.0
        %431 = vst [vmem:[#allocation2 + $0x60] sm:$0xff] 0.0
        %432 = vst [vmem:[#allocation2 + $0x68] sm:$0xff] 0.0
        %433 = vst [vmem:[#allocation2 + $0x70] sm:$0xff] 0.0
        %434 = vst [vmem:[#allocation2 + $0x78] sm:$0xff] 0.0
        %435 = vst [vmem:[#allocation2 + $0x80] sm:$0xff] 0.0
        %436 = vst [vmem:[#allocation2 + $0x88] sm:$0xff] 0.0
        %437 = vst [vmem:[#allocation2 + $0x90] sm:$0xff] 0.0
        %438 = vst [vmem:[#allocation2 + $0x98] sm:$0xff] 0.0
        %439 = vst [vmem:[#allocation2 + $0xa0] sm:$0xff] 0.0
        %440 = vst [vmem:[#allocation2 + $0xa8] sm:$0xff] 0.0
        %441 = vst [vmem:[#allocation2 + $0xb0] sm:$0xff] 0.0
        %442 = vst [vmem:[#allocation2 + $0xb8] sm:$0xff] 0.0
        %443 = vst [vmem:[#allocation2 + $0xc0] sm:$0xff] 0.0
        %444 = vst [vmem:[#allocation2 + $0xc8] sm:$0xff] 0.0
        %445 = vst [vmem:[#allocation2 + $0xd0] sm:$0xff] 0.0
        %446 = vst [vmem:[#allocation2 + $0xd8] sm:$0xff] 0.0
        %447 = vst [vmem:[#allocation2 + $0xe0] sm:$0xff] 0.0
        %448 = vst [vmem:[#allocation2 + $0xe8] sm:$0xff] 0.0
        %449 = vst [vmem:[#allocation2 + $0xf0] sm:$0xff] 0.0
        %450 = vst [vmem:[#allocation2 + $0xf8] sm:$0xff] 0.0
      $region60: #{gin_layer_w_ef_update.7} parent=55 // pred_fallthru
        _
      %v451 = vlaneseq
      %v452 = vand.u32 %v451, 127
      %s453 = smul.u32 %s26, 128
      %v454 = vstv %s453
      %v455 = vadd.s32 %v452, %v454
      %v456 = vld [vmem:[%s389] sm:$0xff]
      %v457 = vld [vmem:[%s389 + $0x8] sm:$0xff]
      %v458 = vld [vmem:[%s389 + $0x10] sm:$0xff]
      %v459 = vld [vmem:[%s389 + $0x18] sm:$0xff]
      %v460 = vld [vmem:[%s389 + $0x20] sm:$0xff]
      %v461 = vld [vmem:[%s389 + $0x28] sm:$0xff]
      %v462 = vld [vmem:[%s389 + $0x30] sm:$0xff]
      %v463 = vld [vmem:[%s389 + $0x38] sm:$0xff]
      %v464 = vld [vmem:[%s389 + $0x40] sm:$0xff]
      %v465 = vld [vmem:[%s389 + $0x48] sm:$0xff]
      %v466 = vld [vmem:[%s389 + $0x50] sm:$0xff]
      %v467 = vld [vmem:[%s389 + $0x58] sm:$0xff]
      %v468 = vld [vmem:[%s389 + $0x60] sm:$0xff]
      %v469 = vld [vmem:[%s389 + $0x68] sm:$0xff]
      %v470 = vld [vmem:[%s389 + $0x70] sm:$0xff]
      %v471 = vld [vmem:[%s389 + $0x78] sm:$0xff]
      %v472 = vld [vmem:[%s389 + $0x80] sm:$0xff]
      %v473 = vld [vmem:[%s389 + $0x88] sm:$0xff]
      %v474 = vld [vmem:[%s389 + $0x90] sm:$0xff]
      %v475 = vld [vmem:[%s389 + $0x98] sm:$0xff]
      %v476 = vld [vmem:[%s389 + $0xa0] sm:$0xff]
      %v477 = vld [vmem:[%s389 + $0xa8] sm:$0xff]
      %v478 = vld [vmem:[%s389 + $0xb0] sm:$0xff]
      %v479 = vld [vmem:[%s389 + $0xb8] sm:$0xff]
      %v480 = vld [vmem:[%s389 + $0xc0] sm:$0xff]
      %v481 = vld [vmem:[%s389 + $0xc8] sm:$0xff]
      %v482 = vld [vmem:[%s389 + $0xd0] sm:$0xff]
      %v483 = vld [vmem:[%s389 + $0xd8] sm:$0xff]
      %v484 = vld [vmem:[%s389 + $0xe0] sm:$0xff]
      %v485 = vld [vmem:[%s389 + $0xe8] sm:$0xff]
      %v486 = vld [vmem:[%s389 + $0xf0] sm:$0xff]
      %v487 = vld [vmem:[%s389 + $0xf8] sm:$0xff]
      %488 = vset.pattern.permute.xlu0 0
      %489 = vperm.xlu0 %488, %v456
      %v490 = vpop.permute.xlu0 %489
      %491 = vset.pattern.permute.xlu0 0
      %492 = vperm.xlu0 %491, %v457
      %v493 = vpop.permute.xlu0 %492
      %494 = vset.pattern.permute.xlu0 0
      %495 = vperm.xlu0 %494, %v458
      %v496 = vpop.permute.xlu0 %495
      %497 = vset.pattern.permute.xlu0 0
      %498 = vperm.xlu0 %497, %v459
      %v499 = vpop.permute.xlu0 %498
      %500 = vset.pattern.permute.xlu0 0
      %501 = vperm.xlu0 %500, %v460
      %v502 = vpop.permute.xlu0 %501
      %503 = vset.pattern.permute.xlu0 0
      %504 = vperm.xlu0 %503, %v461
      %v505 = vpop.permute.xlu0 %504
      %506 = vset.pattern.permute.xlu0 0
      %507 = vperm.xlu0 %506, %v462
      %v508 = vpop.permute.xlu0 %507
      %509 = vset.pattern.permute.xlu0 0
      %510 = vperm.xlu0 %509, %v463
      %v511 = vpop.permute.xlu0 %510
      %512 = vset.pattern.permute.xlu0 0
      %513 = vperm.xlu0 %512, %v464
      %v514 = vpop.permute.xlu0 %513
      %515 = vset.pattern.permute.xlu0 0
      %516 = vperm.xlu0 %515, %v465
      %v517 = vpop.permute.xlu0 %516
      %518 = vset.pattern.permute.xlu0 0
      %519 = vperm.xlu0 %518, %v466
      %v520 = vpop.permute.xlu0 %519
      %521 = vset.pattern.permute.xlu0 0
      %522 = vperm.xlu0 %521, %v467
      %v523 = vpop.permute.xlu0 %522
      %524 = vset.pattern.permute.xlu0 0
      %525 = vperm.xlu0 %524, %v468
      %v526 = vpop.permute.xlu0 %525
      %527 = vset.pattern.permute.xlu0 0
      %528 = vperm.xlu0 %527, %v469
      %v529 = vpop.permute.xlu0 %528
      %530 = vset.pattern.permute.xlu0 0
      %531 = vperm.xlu0 %530, %v470
      %v532 = vpop.permute.xlu0 %531
      %533 = vset.pattern.permute.xlu0 0
      %534 = vperm.xlu0 %533, %v471
      %v535 = vpop.permute.xlu0 %534
      %536 = vset.pattern.permute.xlu0 0
      %537 = vperm.xlu0 %536, %v472
      %v538 = vpop.permute.xlu0 %537
      %539 = vset.pattern.permute.xlu0 0
      %540 = vperm.xlu0 %539, %v473
      %v541 = vpop.permute.xlu0 %540
      %542 = vset.pattern.permute.xlu0 0
      %543 = vperm.xlu0 %542, %v474
      %v544 = vpop.permute.xlu0 %543
      %545 = vset.pattern.permute.xlu0 0
      %546 = vperm.xlu0 %545, %v475
      %v547 = vpop.permute.xlu0 %546
      %548 = vset.pattern.permute.xlu0 0
      %549 = vperm.xlu0 %548, %v476
      %v550 = vpop.permute.xlu0 %549
      %551 = vset.pattern.permute.xlu0 0
      %552 = vperm.xlu0 %551, %v477
      %v553 = vpop.permute.xlu0 %552
      %554 = vset.pattern.permute.xlu0 0
      %555 = vperm.xlu0 %554, %v478
      %v556 = vpop.permute.xlu0 %555
      %557 = vset.pattern.permute.xlu0 0
      %558 = vperm.xlu0 %557, %v479
      %v559 = vpop.permute.xlu0 %558
      %560 = vset.pattern.permute.xlu0 0
      %561 = vperm.xlu0 %560, %v480
      %v562 = vpop.permute.xlu0 %561
      %563 = vset.pattern.permute.xlu0 0
      %564 = vperm.xlu0 %563, %v481
      %v565 = vpop.permute.xlu0 %564
      %566 = vset.pattern.permute.xlu0 0
      %567 = vperm.xlu0 %566, %v482
      %v568 = vpop.permute.xlu0 %567
      %569 = vset.pattern.permute.xlu0 0
      %570 = vperm.xlu0 %569, %v483
      %v571 = vpop.permute.xlu0 %570
      %572 = vset.pattern.permute.xlu0 0
      %573 = vperm.xlu0 %572, %v484
      %v574 = vpop.permute.xlu0 %573
      %575 = vset.pattern.permute.xlu0 0
      %576 = vperm.xlu0 %575, %v485
      %v577 = vpop.permute.xlu0 %576
      %578 = vset.pattern.permute.xlu0 0
      %579 = vperm.xlu0 %578, %v486
      %v580 = vpop.permute.xlu0 %579
      %581 = vset.pattern.permute.xlu0 0
      %582 = vperm.xlu0 %581, %v487
      %v583 = vpop.permute.xlu0 %582
      %vm584 = vcmp.eq.s32.totalorder %v455, %v490
      %vm585 = vcmp.eq.s32.totalorder %v455, %v493
      %vm586 = vcmp.eq.s32.totalorder %v455, %v496
      %vm587 = vcmp.eq.s32.totalorder %v455, %v499
      %vm588 = vcmp.eq.s32.totalorder %v455, %v502
      %vm589 = vcmp.eq.s32.totalorder %v455, %v505
      %vm590 = vcmp.eq.s32.totalorder %v455, %v508
      %vm591 = vcmp.eq.s32.totalorder %v455, %v511
      %vm592 = vcmp.eq.s32.totalorder %v455, %v514
      %vm593 = vcmp.eq.s32.totalorder %v455, %v517
      %vm594 = vcmp.eq.s32.totalorder %v455, %v520
      %vm595 = vcmp.eq.s32.totalorder %v455, %v523
      %vm596 = vcmp.eq.s32.totalorder %v455, %v526
      %vm597 = vcmp.eq.s32.totalorder %v455, %v529
      %vm598 = vcmp.eq.s32.totalorder %v455, %v532
      %vm599 = vcmp.eq.s32.totalorder %v455, %v535
      %vm600 = vcmp.eq.s32.totalorder %v455, %v538
      %vm601 = vcmp.eq.s32.totalorder %v455, %v541
      %vm602 = vcmp.eq.s32.totalorder %v455, %v544
      %vm603 = vcmp.eq.s32.totalorder %v455, %v547
      %vm604 = vcmp.eq.s32.totalorder %v455, %v550
      %vm605 = vcmp.eq.s32.totalorder %v455, %v553
      %vm606 = vcmp.eq.s32.totalorder %v455, %v556
      %vm607 = vcmp.eq.s32.totalorder %v455, %v559
      %vm608 = vcmp.eq.s32.totalorder %v455, %v562
      %vm609 = vcmp.eq.s32.totalorder %v455, %v565
      %vm610 = vcmp.eq.s32.totalorder %v455, %v568
      %vm611 = vcmp.eq.s32.totalorder %v455, %v571
      %vm612 = vcmp.eq.s32.totalorder %v455, %v574
      %vm613 = vcmp.eq.s32.totalorder %v455, %v577
      %vm614 = vcmp.eq.s32.totalorder %v455, %v580
      %vm615 = vcmp.eq.s32.totalorder %v455, %v583
      %v616 = vsel %vm584, 1, 0
      %v617 = vsel %vm585, 1, 0
      %v618 = vsel %vm586, 1, 0
      %v619 = vsel %vm587, 1, 0
      %v620 = vsel %vm588, 1, 0
      %v621 = vsel %vm589, 1, 0
      %v622 = vsel %vm590, 1, 0
      %v623 = vsel %vm591, 1, 0
      %v624 = vsel %vm592, 1, 0
      %v625 = vsel %vm593, 1, 0
      %v626 = vsel %vm594, 1, 0
      %v627 = vsel %vm595, 1, 0
      %v628 = vsel %vm596, 1, 0
      %v629 = vsel %vm597, 1, 0
      %v630 = vsel %vm598, 1, 0
      %v631 = vsel %vm599, 1, 0
      %v632 = vsel %vm600, 1, 0
      %v633 = vsel %vm601, 1, 0
      %v634 = vsel %vm602, 1, 0
      %v635 = vsel %vm603, 1, 0
      %v636 = vsel %vm604, 1, 0
      %v637 = vsel %vm605, 1, 0
      %v638 = vsel %vm606, 1, 0
      %v639 = vsel %vm607, 1, 0
      %v640 = vsel %vm608, 1, 0
      %v641 = vsel %vm609, 1, 0
      %v642 = vsel %vm610, 1, 0
      %v643 = vsel %vm611, 1, 0
      %v644 = vsel %vm612, 1, 0
      %v645 = vsel %vm613, 1, 0
      %v646 = vsel %vm614, 1, 0
      %v647 = vsel %vm615, 1, 0
      %v648 = vld [vmem:[%s395] sm:$0xff]
      %v649 = vld [vmem:[%s395 + $0x8] sm:$0xff]
      %v650 = vld [vmem:[%s395 + $0x10] sm:$0xff]
      %v651 = vld [vmem:[%s395 + $0x18] sm:$0xff]
      %v652 = vld [vmem:[%s395 + $0x20] sm:$0xff]
      %v653 = vld [vmem:[%s395 + $0x28] sm:$0xff]
      %v654 = vld [vmem:[%s395 + $0x30] sm:$0xff]
      %v655 = vld [vmem:[%s395 + $0x38] sm:$0xff]
      %v656 = vld [vmem:[%s395 + $0x40] sm:$0xff]
      %v657 = vld [vmem:[%s395 + $0x48] sm:$0xff]
      %v658 = vld [vmem:[%s395 + $0x50] sm:$0xff]
      %v659 = vld [vmem:[%s395 + $0x58] sm:$0xff]
      %v660 = vld [vmem:[%s395 + $0x60] sm:$0xff]
      %v661 = vld [vmem:[%s395 + $0x68] sm:$0xff]
      %v662 = vld [vmem:[%s395 + $0x70] sm:$0xff]
      %v663 = vld [vmem:[%s395 + $0x78] sm:$0xff]
      %v664 = vld [vmem:[%s395 + $0x80] sm:$0xff]
      %v665 = vld [vmem:[%s395 + $0x88] sm:$0xff]
      %v666 = vld [vmem:[%s395 + $0x90] sm:$0xff]
      %v667 = vld [vmem:[%s395 + $0x98] sm:$0xff]
      %v668 = vld [vmem:[%s395 + $0xa0] sm:$0xff]
      %v669 = vld [vmem:[%s395 + $0xa8] sm:$0xff]
      %v670 = vld [vmem:[%s395 + $0xb0] sm:$0xff]
      %v671 = vld [vmem:[%s395 + $0xb8] sm:$0xff]
      %v672 = vld [vmem:[%s395 + $0xc0] sm:$0xff]
      %v673 = vld [vmem:[%s395 + $0xc8] sm:$0xff]
      %v674 = vld [vmem:[%s395 + $0xd0] sm:$0xff]
      %v675 = vld [vmem:[%s395 + $0xd8] sm:$0xff]
      %v676 = vld [vmem:[%s395 + $0xe0] sm:$0xff]
      %v677 = vld [vmem:[%s395 + $0xe8] sm:$0xff]
      %v678 = vld [vmem:[%s395 + $0xf0] sm:$0xff]
      %v679 = vld [vmem:[%s395 + $0xf8] sm:$0xff]
      %680 = vset.pattern.permute.xlu0 0
      %681 = vperm.xlu0 %680, %v648
      %v682 = vpop.permute.xlu0 %681
      %683 = vset.pattern.permute.xlu0 0
      %684 = vperm.xlu0 %683, %v649
      %v685 = vpop.permute.xlu0 %684
      %686 = vset.pattern.permute.xlu0 0
      %687 = vperm.xlu0 %686, %v650
      %v688 = vpop.permute.xlu0 %687
      %689 = vset.pattern.permute.xlu0 0
      %690 = vperm.xlu0 %689, %v651
      %v691 = vpop.permute.xlu0 %690
      %692 = vset.pattern.permute.xlu0 0
      %693 = vperm.xlu0 %692, %v652
      %v694 = vpop.permute.xlu0 %693
      %695 = vset.pattern.permute.xlu0 0
      %696 = vperm.xlu0 %695, %v653
      %v697 = vpop.permute.xlu0 %696
      %698 = vset.pattern.permute.xlu0 0
      %699 = vperm.xlu0 %698, %v654
      %v700 = vpop.permute.xlu0 %699
      %701 = vset.pattern.permute.xlu0 0
      %702 = vperm.xlu0 %701, %v655
      %v703 = vpop.permute.xlu0 %702
      %704 = vset.pattern.permute.xlu0 0
      %705 = vperm.xlu0 %704, %v656
      %v706 = vpop.permute.xlu0 %705
      %707 = vset.pattern.permute.xlu0 0
      %708 = vperm.xlu0 %707, %v657
      %v709 = vpop.permute.xlu0 %708
      %710 = vset.pattern.permute.xlu0 0
      %711 = vperm.xlu0 %710, %v658
      %v712 = vpop.permute.xlu0 %711
      %713 = vset.pattern.permute.xlu0 0
      %714 = vperm.xlu0 %713, %v659
      %v715 = vpop.permute.xlu0 %714
      %716 = vset.pattern.permute.xlu0 0
      %717 = vperm.xlu0 %716, %v660
      %v718 = vpop.permute.xlu0 %717
      %719 = vset.pattern.permute.xlu0 0
      %720 = vperm.xlu0 %719, %v661
      %v721 = vpop.permute.xlu0 %720
      %722 = vset.pattern.permute.xlu0 0
      %723 = vperm.xlu0 %722, %v662
      %v724 = vpop.permute.xlu0 %723
      %725 = vset.pattern.permute.xlu0 0
      %726 = vperm.xlu0 %725, %v663
      %v727 = vpop.permute.xlu0 %726
      %728 = vset.pattern.permute.xlu0 0
      %729 = vperm.xlu0 %728, %v664
      %v730 = vpop.permute.xlu0 %729
      %731 = vset.pattern.permute.xlu0 0
      %732 = vperm.xlu0 %731, %v665
      %v733 = vpop.permute.xlu0 %732
      %734 = vset.pattern.permute.xlu0 0
      %735 = vperm.xlu0 %734, %v666
      %v736 = vpop.permute.xlu0 %735
      %737 = vset.pattern.permute.xlu0 0
      %738 = vperm.xlu0 %737, %v667
      %v739 = vpop.permute.xlu0 %738
      %740 = vset.pattern.permute.xlu0 0
      %741 = vperm.xlu0 %740, %v668
      %v742 = vpop.permute.xlu0 %741
      %743 = vset.pattern.permute.xlu0 0
      %744 = vperm.xlu0 %743, %v669
      %v745 = vpop.permute.xlu0 %744
      %746 = vset.pattern.permute.xlu0 0
      %747 = vperm.xlu0 %746, %v670
      %v748 = vpop.permute.xlu0 %747
      %749 = vset.pattern.permute.xlu0 0
      %750 = vperm.xlu0 %749, %v671
      %v751 = vpop.permute.xlu0 %750
      %752 = vset.pattern.permute.xlu0 0
      %753 = vperm.xlu0 %752, %v672
      %v754 = vpop.permute.xlu0 %753
      %755 = vset.pattern.permute.xlu0 0
      %756 = vperm.xlu0 %755, %v673
      %v757 = vpop.permute.xlu0 %756
      %758 = vset.pattern.permute.xlu0 0
      %759 = vperm.xlu0 %758, %v674
      %v760 = vpop.permute.xlu0 %759
      %761 = vset.pattern.permute.xlu0 0
      %762 = vperm.xlu0 %761, %v675
      %v763 = vpop.permute.xlu0 %762
      %764 = vset.pattern.permute.xlu0 0
      %765 = vperm.xlu0 %764, %v676
      %v766 = vpop.permute.xlu0 %765
      %767 = vset.pattern.permute.xlu0 0
      %768 = vperm.xlu0 %767, %v677
      %v769 = vpop.permute.xlu0 %768
      %770 = vset.pattern.permute.xlu0 0
      %771 = vperm.xlu0 %770, %v678
      %v772 = vpop.permute.xlu0 %771
      %773 = vset.pattern.permute.xlu0 0
      %774 = vperm.xlu0 %773, %v679
      %v775 = vpop.permute.xlu0 %774
      %vm776 = vcmp.eq.s32.totalorder %v455, %v682
      %vm777 = vcmp.eq.s32.totalorder %v455, %v685
      %vm778 = vcmp.eq.s32.totalorder %v455, %v688
      %vm779 = vcmp.eq.s32.totalorder %v455, %v691
      %vm780 = vcmp.eq.s32.totalorder %v455, %v694
      %vm781 = vcmp.eq.s32.totalorder %v455, %v697
      %vm782 = vcmp.eq.s32.totalorder %v455, %v700
      %vm783 = vcmp.eq.s32.totalorder %v455, %v703
      %vm784 = vcmp.eq.s32.totalorder %v455, %v706
      %vm785 = vcmp.eq.s32.totalorder %v455, %v709
      %vm786 = vcmp.eq.s32.totalorder %v455, %v712
      %vm787 = vcmp.eq.s32.totalorder %v455, %v715
      %vm788 = vcmp.eq.s32.totalorder %v455, %v718
      %vm789 = vcmp.eq.s32.totalorder %v455, %v721
      %vm790 = vcmp.eq.s32.totalorder %v455, %v724
      %vm791 = vcmp.eq.s32.totalorder %v455, %v727
      %vm792 = vcmp.eq.s32.totalorder %v455, %v730
      %vm793 = vcmp.eq.s32.totalorder %v455, %v733
      %vm794 = vcmp.eq.s32.totalorder %v455, %v736
      %vm795 = vcmp.eq.s32.totalorder %v455, %v739
      %vm796 = vcmp.eq.s32.totalorder %v455, %v742
      %vm797 = vcmp.eq.s32.totalorder %v455, %v745
      %vm798 = vcmp.eq.s32.totalorder %v455, %v748
      %vm799 = vcmp.eq.s32.totalorder %v455, %v751
      %vm800 = vcmp.eq.s32.totalorder %v455, %v754
      %vm801 = vcmp.eq.s32.totalorder %v455, %v757
      %vm802 = vcmp.eq.s32.totalorder %v455, %v760
      %vm803 = vcmp.eq.s32.totalorder %v455, %v763
      %vm804 = vcmp.eq.s32.totalorder %v455, %v766
      %vm805 = vcmp.eq.s32.totalorder %v455, %v769
      %vm806 = vcmp.eq.s32.totalorder %v455, %v772
      %vm807 = vcmp.eq.s32.totalorder %v455, %v775
      %v808 = vsel %vm776, 1, 0
      %v809 = vsel %vm777, 1, 0
      %v810 = vsel %vm778, 1, 0
      %v811 = vsel %vm779, 1, 0
      %v812 = vsel %vm780, 1, 0
      %v813 = vsel %vm781, 1, 0
      %v814 = vsel %vm782, 1, 0
      %v815 = vsel %vm783, 1, 0
      %v816 = vsel %vm784, 1, 0
      %v817 = vsel %vm785, 1, 0
      %v818 = vsel %vm786, 1, 0
      %v819 = vsel %vm787, 1, 0
      %v820 = vsel %vm788, 1, 0
      %v821 = vsel %vm789, 1, 0
      %v822 = vsel %vm790, 1, 0
      %v823 = vsel %vm791, 1, 0
      %v824 = vsel %vm792, 1, 0
      %v825 = vsel %vm793, 1, 0
      %v826 = vsel %vm794, 1, 0
      %v827 = vsel %vm795, 1, 0
      %v828 = vsel %vm796, 1, 0
      %v829 = vsel %vm797, 1, 0
      %v830 = vsel %vm798, 1, 0
      %v831 = vsel %vm799, 1, 0
      %v832 = vsel %vm800, 1, 0
      %v833 = vsel %vm801, 1, 0
      %v834 = vsel %vm802, 1, 0
      %v835 = vsel %vm803, 1, 0
      %v836 = vsel %vm804, 1, 0
      %v837 = vsel %vm805, 1, 0
      %v838 = vsel %vm806, 1, 0
      %v839 = vsel %vm807, 1, 0
      %v840 = vsub.s32 %v616, %v808
      %v841 = vsub.s32 %v617, %v809
      %v842 = vsub.s32 %v618, %v810
      %v843 = vsub.s32 %v619, %v811
      %v844 = vsub.s32 %v620, %v812
      %v845 = vsub.s32 %v621, %v813
      %v846 = vsub.s32 %v622, %v814
      %v847 = vsub.s32 %v623, %v815
      %v848 = vsub.s32 %v624, %v816
      %v849 = vsub.s32 %v625, %v817
      %v850 = vsub.s32 %v626, %v818
      %v851 = vsub.s32 %v627, %v819
      %v852 = vsub.s32 %v628, %v820
      %v853 = vsub.s32 %v629, %v821
      %v854 = vsub.s32 %v630, %v822
      %v855 = vsub.s32 %v631, %v823
      %v856 = vsub.s32 %v632, %v824
      %v857 = vsub.s32 %v633, %v825
      %v858 = vsub.s32 %v634, %v826
      %v859 = vsub.s32 %v635, %v827
      %v860 = vsub.s32 %v636, %v828
      %v861 = vsub.s32 %v637, %v829
      %v862 = vsub.s32 %v638, %v830
      %v863 = vsub.s32 %v639, %v831
      %v864 = vsub.s32 %v640, %v832
      %v865 = vsub.s32 %v641, %v833
      %v866 = vsub.s32 %v642, %v834
      %v867 = vsub.s32 %v643, %v835
      %v868 = vsub.s32 %v644, %v836
      %v869 = vsub.s32 %v645, %v837
      %v870 = vsub.s32 %v646, %v838
      %v871 = vsub.s32 %v647, %v839
      %v872 = vcvt.s32.f32 %v840
      %v873 = vcvt.s32.f32 %v841
      %v874 = vcvt.s32.f32 %v842
      %v875 = vcvt.s32.f32 %v843
      %v876 = vcvt.s32.f32 %v844
      %v877 = vcvt.s32.f32 %v845
      %v878 = vcvt.s32.f32 %v846
      %v879 = vcvt.s32.f32 %v847
      %v880 = vcvt.s32.f32 %v848
      %v881 = vcvt.s32.f32 %v849
      %v882 = vcvt.s32.f32 %v850
      %v883 = vcvt.s32.f32 %v851
      %v884 = vcvt.s32.f32 %v852
      %v885 = vcvt.s32.f32 %v853
      %v886 = vcvt.s32.f32 %v854
      %v887 = vcvt.s32.f32 %v855
      %v888 = vcvt.s32.f32 %v856
      %v889 = vcvt.s32.f32 %v857
      %v890 = vcvt.s32.f32 %v858
      %v891 = vcvt.s32.f32 %v859
      %v892 = vcvt.s32.f32 %v860
      %v893 = vcvt.s32.f32 %v861
      %v894 = vcvt.s32.f32 %v862
      %v895 = vcvt.s32.f32 %v863
      %v896 = vcvt.s32.f32 %v864
      %v897 = vcvt.s32.f32 %v865
      %v898 = vcvt.s32.f32 %v866
      %v899 = vcvt.s32.f32 %v867
      %v900 = vcvt.s32.f32 %v868
      %v901 = vcvt.s32.f32 %v869
      %v902 = vcvt.s32.f32 %v870
      %v903 = vcvt.s32.f32 %v871
      %v904 = vpack.c.bf16 %v873, %v872
      %v905 = vpack.c.bf16 %v875, %v874
      %v906 = vpack.c.bf16 %v877, %v876
      %v907 = vpack.c.bf16 %v879, %v878
      %v908 = vpack.c.bf16 %v881, %v880
      %v909 = vpack.c.bf16 %v883, %v882
      %v910 = vpack.c.bf16 %v885, %v884
      %v911 = vpack.c.bf16 %v887, %v886
      %v912 = vpack.c.bf16 %v889, %v888
      %v913 = vpack.c.bf16 %v891, %v890
      %v914 = vpack.c.bf16 %v893, %v892
      %v915 = vpack.c.bf16 %v895, %v894
      %v916 = vpack.c.bf16 %v897, %v896
      %v917 = vpack.c.bf16 %v899, %v898
      %v918 = vpack.c.bf16 %v901, %v900
      %v919 = vpack.c.bf16 %v903, %v902
      %v920 = vld [vmem:[#allocation2] sm:$0xff]
      %v921 = vld [vmem:[#allocation2 + $0x8] sm:$0xff]
      %v922 = vld [vmem:[#allocation2 + $0x10] sm:$0xff]
      %v923 = vld [vmem:[#allocation2 + $0x18] sm:$0xff]
      %v924 = vld [vmem:[#allocation2 + $0x20] sm:$0xff]
      %v925 = vld [vmem:[#allocation2 + $0x28] sm:$0xff]
      %v926 = vld [vmem:[#allocation2 + $0x30] sm:$0xff]
      %v927 = vld [vmem:[#allocation2 + $0x38] sm:$0xff]
      %v928 = vld [vmem:[#allocation2 + $0x40] sm:$0xff]
      %v929 = vld [vmem:[#allocation2 + $0x48] sm:$0xff]
      %v930 = vld [vmem:[#allocation2 + $0x50] sm:$0xff]
      %v931 = vld [vmem:[#allocation2 + $0x58] sm:$0xff]
      %v932 = vld [vmem:[#allocation2 + $0x60] sm:$0xff]
      %v933 = vld [vmem:[#allocation2 + $0x68] sm:$0xff]
      %v934 = vld [vmem:[#allocation2 + $0x70] sm:$0xff]
      %v935 = vld [vmem:[#allocation2 + $0x78] sm:$0xff]
      %v936 = vld [vmem:[#allocation2 + $0x80] sm:$0xff]
      %v937 = vld [vmem:[#allocation2 + $0x88] sm:$0xff]
      %v938 = vld [vmem:[#allocation2 + $0x90] sm:$0xff]
      %v939 = vld [vmem:[#allocation2 + $0x98] sm:$0xff]
      %v940 = vld [vmem:[#allocation2 + $0xa0] sm:$0xff]
      %v941 = vld [vmem:[#allocation2 + $0xa8] sm:$0xff]
      %v942 = vld [vmem:[#allocation2 + $0xb0] sm:$0xff]
      %v943 = vld [vmem:[#allocation2 + $0xb8] sm:$0xff]
      %v944 = vld [vmem:[#allocation2 + $0xc0] sm:$0xff]
      %v945 = vld [vmem:[#allocation2 + $0xc8] sm:$0xff]
      %v946 = vld [vmem:[#allocation2 + $0xd0] sm:$0xff]
      %v947 = vld [vmem:[#allocation2 + $0xd8] sm:$0xff]
      %v948 = vld [vmem:[#allocation2 + $0xe0] sm:$0xff]
      %v949 = vld [vmem:[#allocation2 + $0xe8] sm:$0xff]
      %v950 = vld [vmem:[#allocation2 + $0xf0] sm:$0xff]
      %v951 = vld [vmem:[#allocation2 + $0xf8] sm:$0xff]
      %v952 = vld [vmem:[%s407] sm:$0xff]
      %v953 = vld [vmem:[%s407 + $0x8] sm:$0xff]
      %v954 = vld [vmem:[%s407 + $0x10] sm:$0xff]
      %v955 = vld [vmem:[%s407 + $0x18] sm:$0xff]
      %v956 = vld [vmem:[%s407 + $0x20] sm:$0xff]
      %v957 = vld [vmem:[%s407 + $0x28] sm:$0xff]
      %v958 = vld [vmem:[%s407 + $0x30] sm:$0xff]
      %v959 = vld [vmem:[%s407 + $0x38] sm:$0xff]
      %v960 = vld [vmem:[%s407 + $0x40] sm:$0xff]
      %v961 = vld [vmem:[%s407 + $0x48] sm:$0xff]
      %v962 = vld [vmem:[%s407 + $0x50] sm:$0xff]
      %v963 = vld [vmem:[%s407 + $0x58] sm:$0xff]
      %v964 = vld [vmem:[%s407 + $0x60] sm:$0xff]
      %v965 = vld [vmem:[%s407 + $0x68] sm:$0xff]
      %v966 = vld [vmem:[%s407 + $0x70] sm:$0xff]
      %v967 = vld [vmem:[%s407 + $0x78] sm:$0xff]
      %v968 = vpack.c.bf16 %v953, %v952
      %v969 = vpack.c.bf16 %v955, %v954
      %v970 = vpack.c.bf16 %v957, %v956
      %v971 = vpack.c.bf16 %v959, %v958
      %v972 = vpack.c.bf16 %v961, %v960
      %v973 = vpack.c.bf16 %v963, %v962
      %v974 = vpack.c.bf16 %v965, %v964
      %v975 = vpack.c.bf16 %v967, %v966
      %976 = vmatpush.bf16.msra.mxu0 %v975
      %977 = vmatpush.bf16.msra.mxu0 %v974
      %978 = vmatpush.bf16.msra.mxu0 %v973
      %979 = vmatpush.bf16.msra.mxu0 %v972
      %980 = vmatpush.bf16.msra.mxu0 %v971
      %981 = vmatpush.bf16.msra.mxu0 %v970
      %982 = vmatpush.bf16.msra.mxu0 %v969
      %983 = vmatpush.bf16.msra.mxu0 %v968
      %984 = vmatmul.bf16.gmra.mxu0 %v904
      %v985 = vpop.f32.mrf.mxu0
      %v986 = vadd.f32 0.0, %v985
      %v987 = vpop.f32.mrf.mxu0
      %v988 = vadd.f32 0.0, %v987
      %989 = vmatmul.bf16.gmra.mxu0 %v905
      %v990 = vpop.f32.mrf.mxu0
      %v991 = vadd.f32 0.0, %v990
      %v992 = vpop.f32.mrf.mxu0
      %v993 = vadd.f32 0.0, %v992
      %994 = vmatmul.bf16.gmra.mxu0 %v906
      %v995 = vpop.f32.mrf.mxu0
      %v996 = vadd.f32 0.0, %v995
      %v997 = vpop.f32.mrf.mxu0
      %v998 = vadd.f32 0.0, %v997
      %999 = vmatmul.bf16.gmra.mxu0 %v907
      %v1000 = vpop.f32.mrf.mxu0
      %v1001 = vadd.f32 0.0, %v1000
      %v1002 = vpop.f32.mrf.mxu0
      %v1003 = vadd.f32 0.0, %v1002
      %1004 = vmatmul.bf16.gmra.mxu0 %v908
      %v1005 = vpop.f32.mrf.mxu0
      %v1006 = vadd.f32 0.0, %v1005
      %v1007 = vpop.f32.mrf.mxu0
      %v1008 = vadd.f32 0.0, %v1007
      %1009 = vmatmul.bf16.gmra.mxu0 %v909
      %v1010 = vpop.f32.mrf.mxu0
      %v1011 = vadd.f32 0.0, %v1010
      %v1012 = vpop.f32.mrf.mxu0
      %v1013 = vadd.f32 0.0, %v1012
      %1014 = vmatmul.bf16.gmra.mxu0 %v910
      %v1015 = vpop.f32.mrf.mxu0
      %v1016 = vadd.f32 0.0, %v1015
      %v1017 = vpop.f32.mrf.mxu0
      %v1018 = vadd.f32 0.0, %v1017
      %1019 = vmatmul.bf16.gmra.mxu0 %v911
      %v1020 = vpop.f32.mrf.mxu0
      %v1021 = vadd.f32 0.0, %v1020
      %v1022 = vpop.f32.mrf.mxu0
      %v1023 = vadd.f32 0.0, %v1022
      %1024 = vmatmul.bf16.gmra.mxu0 %v912
      %v1025 = vpop.f32.mrf.mxu0
      %v1026 = vadd.f32 0.0, %v1025
      %v1027 = vpop.f32.mrf.mxu0
      %v1028 = vadd.f32 0.0, %v1027
      %1029 = vmatmul.bf16.gmra.mxu0 %v913
      %v1030 = vpop.f32.mrf.mxu0
      %v1031 = vadd.f32 0.0, %v1030
      %v1032 = vpop.f32.mrf.mxu0
      %v1033 = vadd.f32 0.0, %v1032
      %1034 = vmatmul.bf16.gmra.mxu0 %v914
      %v1035 = vpop.f32.mrf.mxu0
      %v1036 = vadd.f32 0.0, %v1035
      %v1037 = vpop.f32.mrf.mxu0
      %v1038 = vadd.f32 0.0, %v1037
      %1039 = vmatmul.bf16.gmra.mxu0 %v915
      %v1040 = vpop.f32.mrf.mxu0
      %v1041 = vadd.f32 0.0, %v1040
      %v1042 = vpop.f32.mrf.mxu0
      %v1043 = vadd.f32 0.0, %v1042
      %1044 = vmatmul.bf16.gmra.mxu0 %v916
      %v1045 = vpop.f32.mrf.mxu0
      %v1046 = vadd.f32 0.0, %v1045
      %v1047 = vpop.f32.mrf.mxu0
      %v1048 = vadd.f32 0.0, %v1047
      %1049 = vmatmul.bf16.gmra.mxu0 %v917
      %v1050 = vpop.f32.mrf.mxu0
      %v1051 = vadd.f32 0.0, %v1050
      %v1052 = vpop.f32.mrf.mxu0
      %v1053 = vadd.f32 0.0, %v1052
      %1054 = vmatmul.bf16.gmra.mxu0 %v918
      %v1055 = vpop.f32.mrf.mxu0
      %v1056 = vadd.f32 0.0, %v1055
      %v1057 = vpop.f32.mrf.mxu0
      %v1058 = vadd.f32 0.0, %v1057
      %1059 = vmatmul.bf16.gmra.mxu0 %v919
      %v1060 = vpop.f32.mrf.mxu0
      %v1061 = vadd.f32 0.0, %v1060
      %v1062 = vpop.f32.mrf.mxu0
      %v1063 = vadd.f32 0.0, %v1062
      %1064 = vdwg.mxu0
      %v1065 = vadd.f32 %v920, %v986
      %v1066 = vadd.f32 %v921, %v988
      %v1067 = vadd.f32 %v922, %v991
      %v1068 = vadd.f32 %v923, %v993
      %v1069 = vadd.f32 %v924, %v996
      %v1070 = vadd.f32 %v925, %v998
      %v1071 = vadd.f32 %v926, %v1001
      %v1072 = vadd.f32 %v927, %v1003
      %v1073 = vadd.f32 %v928, %v1006
      %v1074 = vadd.f32 %v929, %v1008
      %v1075 = vadd.f32 %v930, %v1011
      %v1076 = vadd.f32 %v931, %v1013
      %v1077 = vadd.f32 %v932, %v1016
      %v1078 = vadd.f32 %v933, %v1018
      %v1079 = vadd.f32 %v934, %v1021
      %v1080 = vadd.f32 %v935, %v1023
      %v1081 = vadd.f32 %v936, %v1026
      %v1082 = vadd.f32 %v937, %v1028
      %v1083 = vadd.f32 %v938, %v1031
      %v1084 = vadd.f32 %v939, %v1033
      %v1085 = vadd.f32 %v940, %v1036
      %v1086 = vadd.f32 %v941, %v1038
      %v1087 = vadd.f32 %v942, %v1041
      %v1088 = vadd.f32 %v943, %v1043
      %v1089 = vadd.f32 %v944, %v1046
      %v1090 = vadd.f32 %v945, %v1048
      %v1091 = vadd.f32 %v946, %v1051
      %v1092 = vadd.f32 %v947, %v1053
      %v1093 = vadd.f32 %v948, %v1056
      %v1094 = vadd.f32 %v949, %v1058
      %v1095 = vadd.f32 %v950, %v1061
      %v1096 = vadd.f32 %v951, %v1063
      %1097 = vst [vmem:[#allocation2] sm:$0xff] %v1065
      %1098 = vst [vmem:[#allocation2 + $0x8] sm:$0xff] %v1066
      %1099 = vst [vmem:[#allocation2 + $0x10] sm:$0xff] %v1067
      %1100 = vst [vmem:[#allocation2 + $0x18] sm:$0xff] %v1068
      %1101 = vst [vmem:[#allocation2 + $0x20] sm:$0xff] %v1069
      %1102 = vst [vmem:[#allocation2 + $0x28] sm:$0xff] %v1070
      %1103 = vst [vmem:[#allocation2 + $0x30] sm:$0xff] %v1071
      %1104 = vst [vmem:[#allocation2 + $0x38] sm:$0xff] %v1072
      %1105 = vst [vmem:[#allocation2 + $0x40] sm:$0xff] %v1073
      %1106 = vst [vmem:[#allocation2 + $0x48] sm:$0xff] %v1074
      %1107 = vst [vmem:[#allocation2 + $0x50] sm:$0xff] %v1075
      %1108 = vst [vmem:[#allocation2 + $0x58] sm:$0xff] %v1076
      %1109 = vst [vmem:[#allocation2 + $0x60] sm:$0xff] %v1077
      %1110 = vst [vmem:[#allocation2 + $0x68] sm:$0xff] %v1078
      %1111 = vst [vmem:[#allocation2 + $0x70] sm:$0xff] %v1079
      %1112 = vst [vmem:[#allocation2 + $0x78] sm:$0xff] %v1080
      %1113 = vst [vmem:[#allocation2 + $0x80] sm:$0xff] %v1081
      %1114 = vst [vmem:[#allocation2 + $0x88] sm:$0xff] %v1082
      %1115 = vst [vmem:[#allocation2 + $0x90] sm:$0xff] %v1083
      %1116 = vst [vmem:[#allocation2 + $0x98] sm:$0xff] %v1084
      %1117 = vst [vmem:[#allocation2 + $0xa0] sm:$0xff] %v1085
      %1118 = vst [vmem:[#allocation2 + $0xa8] sm:$0xff] %v1086
      %1119 = vst [vmem:[#allocation2 + $0xb0] sm:$0xff] %v1087
      %1120 = vst [vmem:[#allocation2 + $0xb8] sm:$0xff] %v1088
      %1121 = vst [vmem:[#allocation2 + $0xc0] sm:$0xff] %v1089
      %1122 = vst [vmem:[#allocation2 + $0xc8] sm:$0xff] %v1090
      %1123 = vst [vmem:[#allocation2 + $0xd0] sm:$0xff] %v1091
      %1124 = vst [vmem:[#allocation2 + $0xd8] sm:$0xff] %v1092
      %1125 = vst [vmem:[#allocation2 + $0xe0] sm:$0xff] %v1093
      %1126 = vst [vmem:[#allocation2 + $0xe8] sm:$0xff] %v1094
      %1127 = vst [vmem:[#allocation2 + $0xf0] sm:$0xff] %v1095
      %1128 = vst [vmem:[#allocation2 + $0xf8] sm:$0xff] %v1096
      %p1129 = scmp.eq.s32.totalorder %s26, 1
      // Predicated region
      $region61: #{gin_layer_w_ef_update.7} parent=55 // pred_check
        %p1130 = pneg %p1129
      $region62: #{gin_layer_w_ef_update.7} parent=55 // pred_check_branch
        %1132 = sbr.rel (%p1130) target = $region64
      $region63: #{gin_layer_w_ef_update.7} parent=55 // pred_region
        %s1133 = sld [smem:[#allocation3]]
        %s1134 = sadd.f32 %s1133, 1.0
        %v1135 = vld [vmem:[%s401] sm:$0xff]
        %v1136 = vld [vmem:[%s401 + $0x8] sm:$0xff]
        %v1137 = vld [vmem:[%s401 + $0x10] sm:$0xff]
        %v1138 = vld [vmem:[%s401 + $0x18] sm:$0xff]
        %v1139 = vld [vmem:[%s401 + $0x20] sm:$0xff]
        %v1140 = vld [vmem:[%s401 + $0x28] sm:$0xff]
        %v1141 = vld [vmem:[%s401 + $0x30] sm:$0xff]
        %v1142 = vld [vmem:[%s401 + $0x38] sm:$0xff]
        %v1143 = vld [vmem:[%s401 + $0x40] sm:$0xff]
        %v1144 = vld [vmem:[%s401 + $0x48] sm:$0xff]
        %v1145 = vld [vmem:[%s401 + $0x50] sm:$0xff]
        %v1146 = vld [vmem:[%s401 + $0x58] sm:$0xff]
        %v1147 = vld [vmem:[%s401 + $0x60] sm:$0xff]
        %v1148 = vld [vmem:[%s401 + $0x68] sm:$0xff]
        %v1149 = vld [vmem:[%s401 + $0x70] sm:$0xff]
        %v1150 = vld [vmem:[%s401 + $0x78] sm:$0xff]
        %v1151 = vld [vmem:[%s401 + $0x80] sm:$0xff]
        %v1152 = vld [vmem:[%s401 + $0x88] sm:$0xff]
        %v1153 = vld [vmem:[%s401 + $0x90] sm:$0xff]
        %v1154 = vld [vmem:[%s401 + $0x98] sm:$0xff]
        %v1155 = vld [vmem:[%s401 + $0xa0] sm:$0xff]
        %v1156 = vld [vmem:[%s401 + $0xa8] sm:$0xff]
        %v1157 = vld [vmem:[%s401 + $0xb0] sm:$0xff]
        %v1158 = vld [vmem:[%s401 + $0xb8] sm:$0xff]
        %v1159 = vld [vmem:[%s401 + $0xc0] sm:$0xff]
        %v1160 = vld [vmem:[%s401 + $0xc8] sm:$0xff]
        %v1161 = vld [vmem:[%s401 + $0xd0] sm:$0xff]
        %v1162 = vld [vmem:[%s401 + $0xd8] sm:$0xff]
        %v1163 = vld [vmem:[%s401 + $0xe0] sm:$0xff]
        %v1164 = vld [vmem:[%s401 + $0xe8] sm:$0xff]
        %v1165 = vld [vmem:[%s401 + $0xf0] sm:$0xff]
        %v1166 = vld [vmem:[%s401 + $0xf8] sm:$0xff]
        %v1167 = vstv %s1134
        %v1168 = vmul.f32 %v1167, %v1135
        %v1169 = vmul.f32 %v1167, %v1136
        %v1170 = vmul.f32 %v1167, %v1137
        %v1171 = vmul.f32 %v1167, %v1138
        %v1172 = vmul.f32 %v1167, %v1139
        %v1173 = vmul.f32 %v1167, %v1140
        %v1174 = vmul.f32 %v1167, %v1141
        %v1175 = vmul.f32 %v1167, %v1142
        %v1176 = vmul.f32 %v1167, %v1143
        %v1177 = vmul.f32 %v1167, %v1144
        %v1178 = vmul.f32 %v1167, %v1145
        %v1179 = vmul.f32 %v1167, %v1146
        %v1180 = vmul.f32 %v1167, %v1147
        %v1181 = vmul.f32 %v1167, %v1148
        %v1182 = vmul.f32 %v1167, %v1149
        %v1183 = vmul.f32 %v1167, %v1150
        %v1184 = vmul.f32 %v1167, %v1151
        %v1185 = vmul.f32 %v1167, %v1152
        %v1186 = vmul.f32 %v1167, %v1153
        %v1187 = vmul.f32 %v1167, %v1154
        %v1188 = vmul.f32 %v1167, %v1155
        %v1189 = vmul.f32 %v1167, %v1156
        %v1190 = vmul.f32 %v1167, %v1157
        %v1191 = vmul.f32 %v1167, %v1158
        %v1192 = vmul.f32 %v1167, %v1159
        %v1193 = vmul.f32 %v1167, %v1160
        %v1194 = vmul.f32 %v1167, %v1161
        %v1195 = vmul.f32 %v1167, %v1162
        %v1196 = vmul.f32 %v1167, %v1163
        %v1197 = vmul.f32 %v1167, %v1164
        %v1198 = vmul.f32 %v1167, %v1165
        %v1199 = vmul.f32 %v1167, %v1166
        %v1200 = vld [vmem:[#allocation2] sm:$0xff]
        %v1201 = vld [vmem:[#allocation2 + $0x8] sm:$0xff]
        %v1202 = vld [vmem:[#allocation2 + $0x10] sm:$0xff]
        %v1203 = vld [vmem:[#allocation2 + $0x18] sm:$0xff]
        %v1204 = vld [vmem:[#allocation2 + $0x20] sm:$0xff]
        %v1205 = vld [vmem:[#allocation2 + $0x28] sm:$0xff]
        %v1206 = vld [vmem:[#allocation2 + $0x30] sm:$0xff]
        %v1207 = vld [vmem:[#allocation2 + $0x38] sm:$0xff]
        %v1208 = vld [vmem:[#allocation2 + $0x40] sm:$0xff]
        %v1209 = vld [vmem:[#allocation2 + $0x48] sm:$0xff]
        %v1210 = vld [vmem:[#allocation2 + $0x50] sm:$0xff]
        %v1211 = vld [vmem:[#allocation2 + $0x58] sm:$0xff]
        %v1212 = vld [vmem:[#allocation2 + $0x60] sm:$0xff]
        %v1213 = vld [vmem:[#allocation2 + $0x68] sm:$0xff]
        %v1214 = vld [vmem:[#allocation2 + $0x70] sm:$0xff]
        %v1215 = vld [vmem:[#allocation2 + $0x78] sm:$0xff]
        %v1216 = vld [vmem:[#allocation2 + $0x80] sm:$0xff]
        %v1217 = vld [vmem:[#allocation2 + $0x88] sm:$0xff]
        %v1218 = vld [vmem:[#allocation2 + $0x90] sm:$0xff]
        %v1219 = vld [vmem:[#allocation2 + $0x98] sm:$0xff]
        %v1220 = vld [vmem:[#allocation2 + $0xa0] sm:$0xff]
        %v1221 = vld [vmem:[#allocation2 + $0xa8] sm:$0xff]
        %v1222 = vld [vmem:[#allocation2 + $0xb0] sm:$0xff]
        %v1223 = vld [vmem:[#allocation2 + $0xb8] sm:$0xff]
        %v1224 = vld [vmem:[#allocation2 + $0xc0] sm:$0xff]
        %v1225 = vld [vmem:[#allocation2 + $0xc8] sm:$0xff]
        %v1226 = vld [vmem:[#allocation2 + $0xd0] sm:$0xff]
        %v1227 = vld [vmem:[#allocation2 + $0xd8] sm:$0xff]
        %v1228 = vld [vmem:[#allocation2 + $0xe0] sm:$0xff]
        %v1229 = vld [vmem:[#allocation2 + $0xe8] sm:$0xff]
        %v1230 = vld [vmem:[#allocation2 + $0xf0] sm:$0xff]
        %v1231 = vld [vmem:[#allocation2 + $0xf8] sm:$0xff]
        %v1232 = vadd.f32 %v1168, %v1200
        %v1233 = vadd.f32 %v1169, %v1201
        %v1234 = vadd.f32 %v1170, %v1202
        %v1235 = vadd.f32 %v1171, %v1203
        %v1236 = vadd.f32 %v1172, %v1204
        %v1237 = vadd.f32 %v1173, %v1205
        %v1238 = vadd.f32 %v1174, %v1206
        %v1239 = vadd.f32 %v1175, %v1207
        %v1240 = vadd.f32 %v1176, %v1208
        %v1241 = vadd.f32 %v1177, %v1209
        %v1242 = vadd.f32 %v1178, %v1210
        %v1243 = vadd.f32 %v1179, %v1211
        %v1244 = vadd.f32 %v1180, %v1212
        %v1245 = vadd.f32 %v1181, %v1213
        %v1246 = vadd.f32 %v1182, %v1214
        %v1247 = vadd.f32 %v1183, %v1215
        %v1248 = vadd.f32 %v1184, %v1216
        %v1249 = vadd.f32 %v1185, %v1217
        %v1250 = vadd.f32 %v1186, %v1218
        %v1251 = vadd.f32 %v1187, %v1219
        %v1252 = vadd.f32 %v1188, %v1220
        %v1253 = vadd.f32 %v1189, %v1221
        %v1254 = vadd.f32 %v1190, %v1222
        %v1255 = vadd.f32 %v1191, %v1223
        %v1256 = vadd.f32 %v1192, %v1224
        %v1257 = vadd.f32 %v1193, %v1225
        %v1258 = vadd.f32 %v1194, %v1226
        %v1259 = vadd.f32 %v1195, %v1227
        %v1260 = vadd.f32 %v1196, %v1228
        %v1261 = vadd.f32 %v1197, %v1229
        %v1262 = vadd.f32 %v1198, %v1230
        %v1263 = vadd.f32 %v1199, %v1231
        %v1264 = vld [vmem:[%s5] sm:$0xff]
        %v1265 = vld [vmem:[%s5 + $0x8] sm:$0xff]
        %v1266 = vld [vmem:[%s5 + $0x10] sm:$0xff]
        %v1267 = vld [vmem:[%s5 + $0x18] sm:$0xff]
        %v1268 = vld [vmem:[%s5 + $0x20] sm:$0xff]
        %v1269 = vld [vmem:[%s5 + $0x28] sm:$0xff]
        %v1270 = vld [vmem:[%s5 + $0x30] sm:$0xff]
        %v1271 = vld [vmem:[%s5 + $0x38] sm:$0xff]
        %v1272 = vld [vmem:[%s5 + $0x40] sm:$0xff]
        %v1273 = vld [vmem:[%s5 + $0x48] sm:$0xff]
        %v1274 = vld [vmem:[%s5 + $0x50] sm:$0xff]
        %v1275 = vld [vmem:[%s5 + $0x58] sm:$0xff]
        %v1276 = vld [vmem:[%s5 + $0x60] sm:$0xff]
        %v1277 = vld [vmem:[%s5 + $0x68] sm:$0xff]
        %v1278 = vld [vmem:[%s5 + $0x70] sm:$0xff]
        %v1279 = vld [vmem:[%s5 + $0x78] sm:$0xff]
        %v1280 = vld [vmem:[%s6] sm:$0x1]
        %v1282 = vperm.slane %v1280, 0
        %1284 = vmatpush.msra.mxu0 %v1279
        %1285 = vmatpush.msra.mxu0 %v1278
        %1286 = vmatpush.msra.mxu0 %v1277
        %1287 = vmatpush.msra.mxu0 %v1276
        %1288 = vmatpush.msra.mxu0 %v1275
        %1289 = vmatpush.msra.mxu0 %v1274
        %1290 = vmatpush.msra.mxu0 %v1273
        %1291 = vmatpush.msra.mxu0 %v1272
        %1292 = vmatpush.msra.mxu0 %v1271
        %1293 = vmatpush.msra.mxu0 %v1270
        %1294 = vmatpush.msra.mxu0 %v1269
        %1295 = vmatpush.msra.mxu0 %v1268
        %1296 = vmatpush.msra.mxu0 %v1267
        %1297 = vmatpush.msra.mxu0 %v1266
        %1298 = vmatpush.msra.mxu0 %v1265
        %1299 = vmatpush.msra.mxu0 %v1264
        %1300 = vmatmul.f32.gmra.mxu0 %v1232
        %v1301 = vpop.f32.mrf.mxu0
        %v1302 = vadd.f32 %v1282, %v1301
        %1303 = vmatmul.f32.gmra.mxu0 %v1233
        %v1304 = vpop.f32.mrf.mxu0
        %v1305 = vadd.f32 %v1282, %v1304
        %1306 = vmatmul.f32.gmra.mxu0 %v1234
        %v1307 = vpop.f32.mrf.mxu0
        %v1308 = vadd.f32 %v1282, %v1307
        %1309 = vmatmul.f32.gmra.mxu0 %v1235
        %v1310 = vpop.f32.mrf.mxu0
        %v1311 = vadd.f32 %v1282, %v1310
        %1312 = vmatmul.f32.gmra.mxu0 %v1236
        %v1313 = vpop.f32.mrf.mxu0
        %v1314 = vadd.f32 %v1282, %v1313
        %1315 = vmatmul.f32.gmra.mxu0 %v1237
        %v1316 = vpop.f32.mrf.mxu0
        %v1317 = vadd.f32 %v1282, %v1316
        %1318 = vmatmul.f32.gmra.mxu0 %v1238
        %v1319 = vpop.f32.mrf.mxu0
        %v1320 = vadd.f32 %v1282, %v1319
        %1321 = vmatmul.f32.gmra.mxu0 %v1239
        %v1322 = vpop.f32.mrf.mxu0
        %v1323 = vadd.f32 %v1282, %v1322
        %1324 = vmatmul.f32.gmra.mxu0 %v1240
        %v1325 = vpop.f32.mrf.mxu0
        %v1326 = vadd.f32 %v1282, %v1325
        %1327 = vmatmul.f32.gmra.mxu0 %v1241
        %v1328 = vpop.f32.mrf.mxu0
        %v1329 = vadd.f32 %v1282, %v1328
        %1330 = vmatmul.f32.gmra.mxu0 %v1242
        %v1331 = vpop.f32.mrf.mxu0
        %v1332 = vadd.f32 %v1282, %v1331
        %1333 = vmatmul.f32.gmra.mxu0 %v1243
        %v1334 = vpop.f32.mrf.mxu0
        %v1335 = vadd.f32 %v1282, %v1334
        %1336 = vmatmul.f32.gmra.mxu0 %v1244
        %v1337 = vpop.f32.mrf.mxu0
        %v1338 = vadd.f32 %v1282, %v1337
        %1339 = vmatmul.f32.gmra.mxu0 %v1245
        %v1340 = vpop.f32.mrf.mxu0
        %v1341 = vadd.f32 %v1282, %v1340
        %1342 = vmatmul.f32.gmra.mxu0 %v1246
        %v1343 = vpop.f32.mrf.mxu0
        %v1344 = vadd.f32 %v1282, %v1343
        %1345 = vmatmul.f32.gmra.mxu0 %v1247
        %v1346 = vpop.f32.mrf.mxu0
        %v1347 = vadd.f32 %v1282, %v1346
        %1348 = vmatmul.f32.gmra.mxu0 %v1248
        %v1349 = vpop.f32.mrf.mxu0
        %v1350 = vadd.f32 %v1282, %v1349
        %1351 = vmatmul.f32.gmra.mxu0 %v1249
        %v1352 = vpop.f32.mrf.mxu0
        %v1353 = vadd.f32 %v1282, %v1352
        %1354 = vmatmul.f32.gmra.mxu0 %v1250
        %v1355 = vpop.f32.mrf.mxu0
        %v1356 = vadd.f32 %v1282, %v1355
        %1357 = vmatmul.f32.gmra.mxu0 %v1251
        %v1358 = vpop.f32.mrf.mxu0
        %v1359 = vadd.f32 %v1282, %v1358
        %1360 = vmatmul.f32.gmra.mxu0 %v1252
        %v1361 = vpop.f32.mrf.mxu0
        %v1362 = vadd.f32 %v1282, %v1361
        %1363 = vmatmul.f32.gmra.mxu0 %v1253
        %v1364 = vpop.f32.mrf.mxu0
        %v1365 = vadd.f32 %v1282, %v1364
        %1366 = vmatmul.f32.gmra.mxu0 %v1254
        %v1367 = vpop.f32.mrf.mxu0
        %v1368 = vadd.f32 %v1282, %v1367
        %1369 = vmatmul.f32.gmra.mxu0 %v1255
        %v1370 = vpop.f32.mrf.mxu0
        %v1371 = vadd.f32 %v1282, %v1370
        %1372 = vmatmul.f32.gmra.mxu0 %v1256
        %v1373 = vpop.f32.mrf.mxu0
        %v1374 = vadd.f32 %v1282, %v1373
        %1375 = vmatmul.f32.gmra.mxu0 %v1257
        %v1376 = vpop.f32.mrf.mxu0
        %v1377 = vadd.f32 %v1282, %v1376
        %1378 = vmatmul.f32.gmra.mxu0 %v1258
        %v1379 = vpop.f32.mrf.mxu0
        %v1380 = vadd.f32 %v1282, %v1379
        %1381 = vmatmul.f32.gmra.mxu0 %v1259
        %v1382 = vpop.f32.mrf.mxu0
        %v1383 = vadd.f32 %v1282, %v1382
        %1384 = vmatmul.f32.gmra.mxu0 %v1260
        %v1385 = vpop.f32.mrf.mxu0
        %v1386 = vadd.f32 %v1282, %v1385
        %1387 = vmatmul.f32.gmra.mxu0 %v1261
        %v1388 = vpop.f32.mrf.mxu0
        %v1389 = vadd.f32 %v1282, %v1388
        %1390 = vmatmul.f32.gmra.mxu0 %v1262
        %v1391 = vpop.f32.mrf.mxu0
        %v1392 = vadd.f32 %v1282, %v1391
        %1393 = vmatmul.f32.gmra.mxu0 %v1263
        %v1394 = vpop.f32.mrf.mxu0
        %v1395 = vadd.f32 %v1282, %v1394
        %1396 = vdwg.mxu0
        %v1397 = vmax.f32 %v1302, 0.0
        %v1398 = vmax.f32 %v1305, 0.0
        %v1399 = vmax.f32 %v1308, 0.0
        %v1400 = vmax.f32 %v1311, 0.0
        %v1401 = vmax.f32 %v1314, 0.0
        %v1402 = vmax.f32 %v1317, 0.0
        %v1403 = vmax.f32 %v1320, 0.0
        %v1404 = vmax.f32 %v1323, 0.0
        %v1405 = vmax.f32 %v1326, 0.0
        %v1406 = vmax.f32 %v1329, 0.0
        %v1407 = vmax.f32 %v1332, 0.0
        %v1408 = vmax.f32 %v1335, 0.0
        %v1409 = vmax.f32 %v1338, 0.0
        %v1410 = vmax.f32 %v1341, 0.0
        %v1411 = vmax.f32 %v1344, 0.0
        %v1412 = vmax.f32 %v1347, 0.0
        %v1413 = vmax.f32 %v1350, 0.0
        %v1414 = vmax.f32 %v1353, 0.0
        %v1415 = vmax.f32 %v1356, 0.0
        %v1416 = vmax.f32 %v1359, 0.0
        %v1417 = vmax.f32 %v1362, 0.0
        %v1418 = vmax.f32 %v1365, 0.0
        %v1419 = vmax.f32 %v1368, 0.0
        %v1420 = vmax.f32 %v1371, 0.0
        %v1421 = vmax.f32 %v1374, 0.0
        %v1422 = vmax.f32 %v1377, 0.0
        %v1423 = vmax.f32 %v1380, 0.0
        %v1424 = vmax.f32 %v1383, 0.0
        %v1425 = vmax.f32 %v1386, 0.0
        %v1426 = vmax.f32 %v1389, 0.0
        %v1427 = vmax.f32 %v1392, 0.0
        %v1428 = vmax.f32 %v1395, 0.0
        %v1429 = vld [vmem:[%s7] sm:$0xff]
        %v1430 = vld [vmem:[%s7 + $0x8] sm:$0xff]
        %v1431 = vld [vmem:[%s7 + $0x10] sm:$0xff]
        %v1432 = vld [vmem:[%s7 + $0x18] sm:$0xff]
        %v1433 = vld [vmem:[%s7 + $0x20] sm:$0xff]
        %v1434 = vld [vmem:[%s7 + $0x28] sm:$0xff]
        %v1435 = vld [vmem:[%s7 + $0x30] sm:$0xff]
        %v1436 = vld [vmem:[%s7 + $0x38] sm:$0xff]
        %v1437 = vld [vmem:[%s7 + $0x40] sm:$0xff]
        %v1438 = vld [vmem:[%s7 + $0x48] sm:$0xff]
        %v1439 = vld [vmem:[%s7 + $0x50] sm:$0xff]
        %v1440 = vld [vmem:[%s7 + $0x58] sm:$0xff]
        %v1441 = vld [vmem:[%s7 + $0x60] sm:$0xff]
        %v1442 = vld [vmem:[%s7 + $0x68] sm:$0xff]
        %v1443 = vld [vmem:[%s7 + $0x70] sm:$0xff]
        %v1444 = vld [vmem:[%s7 + $0x78] sm:$0xff]
        %v1445 = vld [vmem:[%s8] sm:$0x1]
        %v1447 = vperm.slane %v1445, 0
        %1449 = vmatpush.msra.mxu0 %v1444
        %1450 = vmatpush.msra.mxu0 %v1443
        %1451 = vmatpush.msra.mxu0 %v1442
        %1452 = vmatpush.msra.mxu0 %v1441
        %1453 = vmatpush.msra.mxu0 %v1440
        %1454 = vmatpush.msra.mxu0 %v1439
        %1455 = vmatpush.msra.mxu0 %v1438
        %1456 = vmatpush.msra.mxu0 %v1437
        %1457 = vmatpush.msra.mxu0 %v1436
        %1458 = vmatpush.msra.mxu0 %v1435
        %1459 = vmatpush.msra.mxu0 %v1434
        %1460 = vmatpush.msra.mxu0 %v1433
        %1461 = vmatpush.msra.mxu0 %v1432
        %1462 = vmatpush.msra.mxu0 %v1431
        %1463 = vmatpush.msra.mxu0 %v1430
        %1464 = vmatpush.msra.mxu0 %v1429
        %1465 = vmatmul.f32.gmra.mxu0 %v1397
        %v1466 = vpop.f32.mrf.mxu0
        %v1467 = vadd.f32 %v1447, %v1466
        %1468 = vmatmul.f32.gmra.mxu0 %v1398
        %v1469 = vpop.f32.mrf.mxu0
        %v1470 = vadd.f32 %v1447, %v1469
        %1471 = vmatmul.f32.gmra.mxu0 %v1399
        %v1472 = vpop.f32.mrf.mxu0
        %v1473 = vadd.f32 %v1447, %v1472
        %1474 = vmatmul.f32.gmra.mxu0 %v1400
        %v1475 = vpop.f32.mrf.mxu0
        %v1476 = vadd.f32 %v1447, %v1475
        %1477 = vmatmul.f32.gmra.mxu0 %v1401
        %v1478 = vpop.f32.mrf.mxu0
        %v1479 = vadd.f32 %v1447, %v1478
        %1480 = vmatmul.f32.gmra.mxu0 %v1402
        %v1481 = vpop.f32.mrf.mxu0
        %v1482 = vadd.f32 %v1447, %v1481
        %1483 = vmatmul.f32.gmra.mxu0 %v1403
        %v1484 = vpop.f32.mrf.mxu0
        %v1485 = vadd.f32 %v1447, %v1484
        %1486 = vmatmul.f32.gmra.mxu0 %v1404
        %v1487 = vpop.f32.mrf.mxu0
        %v1488 = vadd.f32 %v1447, %v1487
        %1489 = vmatmul.f32.gmra.mxu0 %v1405
        %v1490 = vpop.f32.mrf.mxu0
        %v1491 = vadd.f32 %v1447, %v1490
        %1492 = vmatmul.f32.gmra.mxu0 %v1406
        %v1493 = vpop.f32.mrf.mxu0
        %v1494 = vadd.f32 %v1447, %v1493
        %1495 = vmatmul.f32.gmra.mxu0 %v1407
        %v1496 = vpop.f32.mrf.mxu0
        %v1497 = vadd.f32 %v1447, %v1496
        %1498 = vmatmul.f32.gmra.mxu0 %v1408
        %v1499 = vpop.f32.mrf.mxu0
        %v1500 = vadd.f32 %v1447, %v1499
        %1501 = vmatmul.f32.gmra.mxu0 %v1409
        %v1502 = vpop.f32.mrf.mxu0
        %v1503 = vadd.f32 %v1447, %v1502
        %1504 = vmatmul.f32.gmra.mxu0 %v1410
        %v1505 = vpop.f32.mrf.mxu0
        %v1506 = vadd.f32 %v1447, %v1505
        %1507 = vmatmul.f32.gmra.mxu0 %v1411
        %v1508 = vpop.f32.mrf.mxu0
        %v1509 = vadd.f32 %v1447, %v1508
        %1510 = vmatmul.f32.gmra.mxu0 %v1412
        %v1511 = vpop.f32.mrf.mxu0
        %v1512 = vadd.f32 %v1447, %v1511
        %1513 = vmatmul.f32.gmra.mxu0 %v1413
        %v1514 = vpop.f32.mrf.mxu0
        %v1515 = vadd.f32 %v1447, %v1514
        %1516 = vmatmul.f32.gmra.mxu0 %v1414
        %v1517 = vpop.f32.mrf.mxu0
        %v1518 = vadd.f32 %v1447, %v1517
        %1519 = vmatmul.f32.gmra.mxu0 %v1415
        %v1520 = vpop.f32.mrf.mxu0
        %v1521 = vadd.f32 %v1447, %v1520
        %1522 = vmatmul.f32.gmra.mxu0 %v1416
        %v1523 = vpop.f32.mrf.mxu0
        %v1524 = vadd.f32 %v1447, %v1523
        %1525 = vmatmul.f32.gmra.mxu0 %v1417
        %v1526 = vpop.f32.mrf.mxu0
        %v1527 = vadd.f32 %v1447, %v1526
        %1528 = vmatmul.f32.gmra.mxu0 %v1418
        %v1529 = vpop.f32.mrf.mxu0
        %v1530 = vadd.f32 %v1447, %v1529
        %1531 = vmatmul.f32.gmra.mxu0 %v1419
        %v1532 = vpop.f32.mrf.mxu0
        %v1533 = vadd.f32 %v1447, %v1532
        %1534 = vmatmul.f32.gmra.mxu0 %v1420
        %v1535 = vpop.f32.mrf.mxu0
        %v1536 = vadd.f32 %v1447, %v1535
        %1537 = vmatmul.f32.gmra.mxu0 %v1421
        %v1538 = vpop.f32.mrf.mxu0
        %v1539 = vadd.f32 %v1447, %v1538
        %1540 = vmatmul.f32.gmra.mxu0 %v1422
        %v1541 = vpop.f32.mrf.mxu0
        %v1542 = vadd.f32 %v1447, %v1541
        %1543 = vmatmul.f32.gmra.mxu0 %v1423
        %v1544 = vpop.f32.mrf.mxu0
        %v1545 = vadd.f32 %v1447, %v1544
        %1546 = vmatmul.f32.gmra.mxu0 %v1424
        %v1547 = vpop.f32.mrf.mxu0
        %v1548 = vadd.f32 %v1447, %v1547
        %1549 = vmatmul.f32.gmra.mxu0 %v1425
        %v1550 = vpop.f32.mrf.mxu0
        %v1551 = vadd.f32 %v1447, %v1550
        %1552 = vmatmul.f32.gmra.mxu0 %v1426
        %v1553 = vpop.f32.mrf.mxu0
        %v1554 = vadd.f32 %v1447, %v1553
        %1555 = vmatmul.f32.gmra.mxu0 %v1427
        %v1556 = vpop.f32.mrf.mxu0
        %v1557 = vadd.f32 %v1447, %v1556
        %1558 = vmatmul.f32.gmra.mxu0 %v1428
        %v1559 = vpop.f32.mrf.mxu0
        %v1560 = vadd.f32 %v1447, %v1559
        %1561 = vdwg.mxu0
        %1562 = vst [vmem:[%s413] sm:$0xff] %v1467
        %1563 = vst [vmem:[%s413 + $0x8] sm:$0xff] %v1470
        %1564 = vst [vmem:[%s413 + $0x10] sm:$0xff] %v1473
        %1565 = vst [vmem:[%s413 + $0x18] sm:$0xff] %v1476
        %1566 = vst [vmem:[%s413 + $0x20] sm:$0xff] %v1479
        %1567 = vst [vmem:[%s413 + $0x28] sm:$0xff] %v1482
        %1568 = vst [vmem:[%s413 + $0x30] sm:$0xff] %v1485
        %1569 = vst [vmem:[%s413 + $0x38] sm:$0xff] %v1488
        %1570 = vst [vmem:[%s413 + $0x40] sm:$0xff] %v1491
        %1571 = vst [vmem:[%s413 + $0x48] sm:$0xff] %v1494
        %1572 = vst [vmem:[%s413 + $0x50] sm:$0xff] %v1497
        %1573 = vst [vmem:[%s413 + $0x58] sm:$0xff] %v1500
        %1574 = vst [vmem:[%s413 + $0x60] sm:$0xff] %v1503
        %1575 = vst [vmem:[%s413 + $0x68] sm:$0xff] %v1506
        %1576 = vst [vmem:[%s413 + $0x70] sm:$0xff] %v1509
        %1577 = vst [vmem:[%s413 + $0x78] sm:$0xff] %v1512
        %1578 = vst [vmem:[%s413 + $0x80] sm:$0xff] %v1515
        %1579 = vst [vmem:[%s413 + $0x88] sm:$0xff] %v1518
        %1580 = vst [vmem:[%s413 + $0x90] sm:$0xff] %v1521
        %1581 = vst [vmem:[%s413 + $0x98] sm:$0xff] %v1524
        %1582 = vst [vmem:[%s413 + $0xa0] sm:$0xff] %v1527
        %1583 = vst [vmem:[%s413 + $0xa8] sm:$0xff] %v1530
        %1584 = vst [vmem:[%s413 + $0xb0] sm:$0xff] %v1533
        %1585 = vst [vmem:[%s413 + $0xb8] sm:$0xff] %v1536
        %1586 = vst [vmem:[%s413 + $0xc0] sm:$0xff] %v1539
        %1587 = vst [vmem:[%s413 + $0xc8] sm:$0xff] %v1542
        %1588 = vst [vmem:[%s413 + $0xd0] sm:$0xff] %v1545
        %1589 = vst [vmem:[%s413 + $0xd8] sm:$0xff] %v1548
        %1590 = vst [vmem:[%s413 + $0xe0] sm:$0xff] %v1551
        %1591 = vst [vmem:[%s413 + $0xe8] sm:$0xff] %v1554
        %1592 = vst [vmem:[%s413 + $0xf0] sm:$0xff] %v1557
        %1593 = vst [vmem:[%s413 + $0xf8] sm:$0xff] %v1560
      $region64: #{gin_layer_w_ef_update.7} parent=55 // pred_fallthru
        _
      %s1594 = smul.u32 32, %s25
      %p1595 = scmp.lt.s32.totalorder %s1594, 31
      %s1596 = scalar_select %p1595, %s1594, 31
      %s1597 = smul.addr %s1596, 8
      %s1598 = scalar_lea.vmem %s9, %s1597
      // Predicated region
      $region65: #{gin_layer_w_ef_update.7} parent=55 // pred_check
        %p1599 = pneg %p260
      $region66: #{gin_layer_w_ef_update.7} parent=55 // pred_check_branch
        %1601 = sbr.rel (%p1599) target = $region68
      $region67: #{gin_layer_w_ef_update.7} parent=55 // pred_region
        %s1602 = smul.u32 32, %s25
      $region68: #{gin_layer_w_ef_update.7} parent=55 // pred_fallthru
        _
      // Predicated region
      $region69: #{gin_layer_w_ef_update.7} parent=55 // pred_check
        %p1603 = pneg %p260
      $region70: #{gin_layer_w_ef_update.7} parent=55 // pred_check_branch
        %1605 = sbr.rel (%p1603) target = $region72
      $region71: #{gin_layer_w_ef_update.7} parent=55 // pred_region
        %s1606 = smul.u32 32, %s25
        %p1607 = scmp.lt.s32.totalorder %s1606, 31
        %s1608 = scalar_select %p1607, %s1606, 31
        %s1609 = smul.addr %s1608, 8
        %s1610 = scalar_lea.vmem %s9, %s1609
      $region72: #{gin_layer_w_ef_update.7} parent=55 // pred_fallthru
        _
    $region56: #{gin_layer_w_ef_update.7} parent=5 // pred_fallthru
      _
    %p1611 = scmp.le.s32.totalorder 2, %s16
    // Predicated region
    $region73: #{gin_layer_w_ef_update.7} parent=5 // pred_check
      %p1612 = pneg %p1611
    $region74: #{gin_layer_w_ef_update.7} parent=5 // pred_check_branch
      %1614 = sbr.rel (%p1612) target = $region76
    $region75: #{gin_layer_w_ef_update.7} parent=5 // pred_region
      %s1615 = ssub.s32 %s16, 2
    $region76: #{gin_layer_w_ef_update.7} parent=5 // pred_fallthru
      _
  $region6: #{gin_layer_w_ef_update.7} parent=0 // loop_footer
    %s20 = sadd.s32 1, %s16
  $region7: #{gin_layer_w_ef_update.7} parent=0 // loop_footer_branch
    %15 = sbr.rel target = $region3
  $region8: #{gin_layer_w_ef_update.7} parent=0 // loop_exit
    _

</llo_original>
